<compile_context>
chip_gen: v5e
topology: v5e:2x2
jax: 0.10.0
libtpu: 0.0.40
codegen_flags: <defaults>
</compile_context>

<pallas_src>
import jax
import jax.numpy as jnp
from jax.experimental import pallas as pl
from jax.experimental.pallas import tpu as pltpu

EPS = 1e-5
_LPAD = 16  # interior column offset in the padded scratch (bf16 packs 16 sublanes)
_PARAM_ORDER = ("s1", "b1", "w1", "cb1", "w2", "cb2", "w3", "cb3")


def _round_up(x, m):
    return (x + m - 1) // m * m


def _pick_row_block(h, target=8):
    hb = min(h, target)
    while h % hb:
        hb -= 1
    return hb


def _vmem_limit_bytes():
    try:
        cap = int(pltpu.get_tpu_info().vmem_capacity_bytes)
    except Exception:
        return 32 * 1024 * 1024
    return max(32 * 1024 * 1024, min(int(cap * 0.55), 96 * 1024 * 1024))


# ----------------------------------------------------------------------------
# Fused kernel: one (image, row-block) tile per grid step.
# ----------------------------------------------------------------------------
def _bottleneck_kernel(xm_ref, xt_ref, xb_ref,
                       s1_ref, b1_ref, w1_ref, cb1_ref,
                       w2_ref, cb2_ref, w3_ref, cb3_ref,
                       o_ref, tpad_ref):
    _, HB, W, Cin = xm_ref.shape
    P = w1_ref.shape[1]
    Cout = w3_ref.shape[1]
    HT = HB + 2
    LP = _LPAD

    rb = pl.program_id(1)
    last = pl.num_programs(1) - 1

    # ---- BN1 + ReLU (f32 VPU) over main + 2 halo rows ----
    # TODO(synk): could run in bf16 on v6e/v7x (bf16 VALU); keep f32 for v5e.
    x_all = jnp.concatenate([xt_ref[0], xm_ref[0], xb_ref[0]], axis=0)  # (HT,W,Cin)
    a = jnp.maximum(x_all.reshape(HT * W, Cin) * s1_ref[...] + b1_ref[...], 0.0)

    # ---- conv1 (1x1, BN2 folded) + ReLU -> bf16 intermediate ----
    t = jnp.dot(a.astype(jnp.bfloat16), w1_ref[...],
                preferred_element_type=jnp.float32)
    t = jnp.maximum(t + cb1_ref[...], 0.0).astype(jnp.bfloat16)         # (HT*W, P)

    # ---- zero-padded intermediate in bf16 VMEM scratch ----
    # Only the halo columns are zeroed each step (aligned stores); the interior
    # store starts at the sublane-aligned column LP -> unmasked vst.
    tpad_ref[:, 0:LP, :] = jnp.zeros((HT, LP, P), jnp.bfloat16)
    tpad_ref[:, LP + W:LP + W + LP, :] = jnp.zeros((HT, LP, P), jnp.bfloat16)
    tpad_ref[:, LP:LP + W, :] = t.reshape(HT, W, P)

    @pl.when(rb == 0)           # top image border: halo row is conv zero padding
    def _():
        tpad_ref[0:1, LP:LP + W, :] = jnp.zeros((1, W, P), jnp.bfloat16)

    @pl.when(rb == last)        # bottom image border
    def _():
        tpad_ref[HB + 1:HB + 2, LP:LP + W, :] = jnp.zeros((1, W, P), jnp.bfloat16)

    # ---- conv2 (3x3, BN3 folded): 9 accumulated MXU matmuls, no im2col temp ----
    u = jnp.zeros((HB * W, P), jnp.float32)
    for k in range(9):
        dy, dx = k // 3, k % 3
        slab = tpad_ref[dy:dy + HB, LP - 1 + dx:LP - 1 + dx + W, :]
        u = u + jnp.dot(slab.reshape(HB * W, P),
                        w2_ref[k * P:(k + 1) * P, :],
                        preferred_element_type=jnp.float32)
    v = jnp.maximum(u + cb2_ref[...], 0.0).astype(jnp.bfloat16)

    # ---- conv3 (1x1) + bias + pre-activation residual add ----
    o = jnp.dot(v, w3_ref[...], preferred_element_type=jnp.float32) + cb3_ref[...]
    o_ref[0] = o.reshape(HB, W, Cout) + xm_ref[0]


# ----------------------------------------------------------------------------
# Wrappers
# ----------------------------------------------------------------------------
def bottleneck_forward_nhwc(x, params, row_block=8):
    """PreAct Bottleneck forward, NHWC in / NHWC out (f32)."""
    N, H, W, Cin = x.shape
    P = params["w1"].shape[1]
    Cout = params["w3"].shape[1]
    assert Cout == Cin, (
        "identity shortcut (shortcut=None) requires inplanes == planes * 4")
    if x.dtype != jnp.float32:
        x = x.astype(jnp.float32)

    HB = _pick_row_block(H, row_block)
    R = H // HB
    param_args = tuple(params[k] for k in _PARAM_ORDER)
    param_bytes = sum(int(p.size) * p.dtype.itemsize for p in param_args)

    flops = 2 * N * R * W * ((HB + 2) * Cin * P + HB * 9 * P * P + HB * P * Cout)
    bytes_accessed = (4 * N * (H + 2 * R) * W * Cin
                      + 4 * N * H * W * Cout + param_bytes)
    cost = pl.CostEstimate(flops=int(flops), transcendentals=0,
                           bytes_accessed=int(bytes_accessed))

    # Whole-array weights/scales resident in VMEM: single copy, not
    # double-buffered (their block index never changes).
    param_spec = pl.BlockSpec(memory_space=pltpu.MemorySpace.VMEM)

    grid_spec = pltpu.PrefetchScalarGridSpec(
        num_scalar_prefetch=0,
        grid=(N, R),
        in_specs=[
            # main HB-row tile
            pl.BlockSpec((1, HB, W, Cin), lambda n, r: (n, r, 0, 0)),
            # 1-row top / bottom halo tiles (clamped at the image border; the
            # kernel zeroes the corresponding scratch halo row there instead).
            pl.BlockSpec((1, 1, W, Cin),
                         lambda n, r: (n, jnp.maximum(r * HB - 1, 0), 0, 0)),
            pl.BlockSpec((1, 1, W, Cin),
                         lambda n, r: (n, jnp.minimum((r + 1) * HB, H - 1), 0, 0)),
        ] + [param_spec] * len(param_args),
        out_specs=pl.BlockSpec((1, HB, W, Cout), lambda n, r: (n, r, 0, 0)),
        scratch_shapes=[pltpu.VMEM((HB + 2, W + 2 * _LPAD, P), jnp.bfloat16)],
    )

    return pl.pallas_call(
        _bottleneck_kernel,
        out_shape=jax.ShapeDtypeStruct((N, H, W, Cout), jnp.float32),
        grid_spec=grid_spec,
        compiler_params=pltpu.CompilerParams(
            dimension_semantics=("parallel", "parallel"),
            vmem_limit_bytes=_vmem_limit_bytes()),
        cost_estimate=cost,
    )(x, x, x, *param_args)


def bottleneck_forward(x_nchw, params):
    """PyTorch-parity entry point: NCHW in / NCHW out."""
    x = jnp.transpose(x_nchw, (0, 2, 3, 1))          # one transpose in
    y = bottleneck_forward_nhwc(x, params)
    return jnp.transpose(y, (0, 3, 1, 2))            # one transpose out


# ----------------------------------------------------------------------------
# Parameter prep: BN folding (BN1 standalone; BN2->conv1, BN3->conv2),
# NHWC-matmul weight layout, bf16 weights, lane-padding of P.
# ----------------------------------------------------------------------------
def make_params(key, inplanes, planes):
    ex = 4
    ks = list(jax.random.split(key, 9))
    cout = planes * ex

    def bn_params(k, c):
        k1, k2, k3, k4 = jax.random.split(k, 4)
        gamma = jax.random.uniform(k1, (c,), jnp.float32, 0.5, 1.5)
        beta = 0.1 * jax.random.normal(k2, (c,), jnp.float32)
        mean = 0.1 * jax.random.normal(k3, (c,), jnp.float32)
        var = jax.random.uniform(k4, (c,), jnp.float32, 0.5, 1.5)
        return gamma, beta, mean, var

    raw = {
        "bn1": bn_params(ks[0], inplanes),
        "conv1": (0.2 * jax.random.normal(ks[1], (planes, inplanes, 1, 1)),
                  0.05 * jax.random.normal(ks[2], (planes,))),
        "bn2": bn_params(ks[3], planes),
        "conv2": (0.2 * jax.random.normal(ks[4], (planes, planes, 3, 3)),
                  0.05 * jax.random.normal(ks[5], (planes,))),
        "bn3": bn_params(ks[6], planes),
        "conv3": (0.2 * jax.random.normal(ks[7], (cout, planes, 1, 1)),
                  0.05 * jax.random.normal(ks[8], (cout,))),
    }

    def fold(g, b, m, v):
        s = g / jnp.sqrt(v + EPS)
        return s, b - m * s

    s1, b1 = fold(*raw["bn1"])                       # (Cin,)
    s2, b2 = fold(*raw["bn2"])                       # (P0,)
    s3, b3 = fold(*raw["bn3"])                       # (P0,)

    w1 = raw["conv1"][0][:, :, 0, 0].T               # (Cin, P0)
    cb1 = raw["conv1"][1]
    w2 = jnp.transpose(raw["conv2"][0], (2, 3, 1, 0))  # (3,3,P0_in,P0_out)
    cb2 = raw["conv2"][1]
    w3 = raw["conv3"][0][:, :, 0, 0].T               # (P0, Cout)
    cb3 = raw["conv3"][1]

    # Fold BN2 into conv1 and BN3 into conv2.
    w1f = w1 * s2[None, :]
    cb1f = cb1 * s2 + b2
    w2f = w2 * s3[None, None, None, :]
    cb2f = cb2 * s3 + b3

    # Lane-pad internal bottleneck width. Exact: padded channels get zero
    # weight & bias -> relu(0)=0 -> contribute 0.
    P0 = planes
    if P0 >= 256:
        P = _round_up(P0, 256)   # keep v6e/v7x's 256-wide MXU at native width
    else:
        P = _round_up(P0, 128)
    # TODO(synk): for P0 < 128 benchmark an unpadded-P variant — lane tiling
    # pads the last dim to 128 in vregs/VMEM anyway, so the padding only adds
    # w2 rows (K) and MXU FLOPs, not VPU/store work.
    w1p = jnp.zeros((inplanes, P), jnp.float32).at[:, :P0].set(w1f)
    cb1p = jnp.zeros((P,), jnp.float32).at[:P0].set(cb1f)
    w2p = jnp.zeros((3, 3, P, P), jnp.float32).at[:, :, :P0, :P0].set(w2f)
    cb2p = jnp.zeros((P,), jnp.float32).at[:P0].set(cb2f)
    w3p = jnp.zeros((P, cout), jnp.float32).at[:P0, :].set(w3)

    params = {
        "s1": s1.reshape(1, -1).astype(jnp.float32),
        "b1": b1.reshape(1, -1).astype(jnp.float32),
        "w1": w1p.astype(jnp.bfloat16),
        "cb1": cb1p.reshape(1, -1).astype(jnp.float32),
        # (dy, dx, cin) flattened -> rows, matching the kernel's tap order.
        "w2": w2p.reshape(9 * P, P).astype(jnp.bfloat16),
        "cb2": cb2p.reshape(1, -1).astype(jnp.float32),
        "w3": w3p.astype(jnp.bfloat16),
        "cb3": cb3.reshape(1, -1).astype(jnp.float32),
    }
    return params, raw


# ----------------------------------------------------------------------------
# Pure-JAX reference (NCHW, PyTorch conventions) for correctness checking.
# ----------------------------------------------------------------------------
def reference_forward(x, raw):
    def bn(h, g, b, m, v):
        sh = (1, -1, 1, 1)
        return (h - m.reshape(sh)) / jnp.sqrt(v.reshape(sh) + EPS) \
            * g.reshape(sh) + b.reshape(sh)

    def conv(h, w, b, pad):
        y = jax.lax.conv_general_dilated(
            h, w, (1, 1), [(pad, pad), (pad, pad)],
            dimension_numbers=("NCHW", "OIHW", "NCHW"))
        return y + b.reshape(1, -1, 1, 1)

    identity = x
    h = jax.nn.relu(bn(x, *raw["bn1"]))
    h = conv(h, *raw["conv1"], pad=0)
    h = jax.nn.relu(bn(h, *raw["bn2"]))
    h = conv(h, *raw["conv2"], pad=1)
    h = jax.nn.relu(bn(h, *raw["bn3"]))
    h = conv(h, *raw["conv3"], pad=0)
    return h + identity


if __name__ == "__main__":
    key = jax.random.PRNGKey(0)
    k_x, k_p = jax.random.split(key)

    inplanes, planes = 16, 4          # planes * 4 == inplanes  (shortcut=None)
    N, H, W = 2, 16, 16
    x = jax.random.normal(k_x, (N, inplanes, H, W), jnp.float32)   # NCHW

    kernel_params, raw = make_params(k_p, inplanes, planes)

    fwd = jax.jit(bottleneck_forward)
    out = jax.block_until_ready(fwd(x, kernel_params))

    ref = jax.block_until_ready(reference_forward(x, raw))
    assert out.shape == (N, planes * 4, H, W)
    # bf16 matmul operands (f32 accumulation) -> loosened tolerance.
    assert jnp.allclose(out, ref, rtol=5e-2, atol=5e-2), \
        f"max abs err = {jnp.max(jnp.abs(out - ref))}"

    print("KERNEL_OK")
</pallas_src>

<mosaic_0001>
module attributes {stable_mosaic.version = 11 : i64} {
  func.func @_bottleneck_kernel(%arg0: i32, %arg1: i32, %arg2: memref<1x8x16x16xf32, #tpu.memory_space<vmem>>, %arg3: memref<1x1x16x16xf32, #tpu.memory_space<vmem>>, %arg4: memref<1x1x16x16xf32, #tpu.memory_space<vmem>>, %arg5: memref<1x16xf32, #tpu.memory_space<vmem>>, %arg6: memref<1x16xf32, #tpu.memory_space<vmem>>, %arg7: memref<16x128xbf16, #tpu.memory_space<vmem>>, %arg8: memref<1x128xf32, #tpu.memory_space<vmem>>, %arg9: memref<1152x128xbf16, #tpu.memory_space<vmem>>, %arg10: memref<1x128xf32, #tpu.memory_space<vmem>>, %arg11: memref<128x16xbf16, #tpu.memory_space<vmem>>, %arg12: memref<1x16xf32, #tpu.memory_space<vmem>>, %arg13: memref<1x8x16x16xf32, #tpu.memory_space<vmem>>, %arg14: memref<10x48x128xbf16, #tpu.memory_space<vmem>>) attributes {dimension_semantics = [#tpu.dimension_semantics<parallel>, #tpu.dimension_semantics<parallel>], iteration_bounds = array<i64: 2, 2>, scalar_prefetch = 0 : i64, scratch_operands = 1 : i64, tpu.core_type = #tpu.core_type<tc>, window_params = [{transform_indices = @transform_0, window_bounds = array<i64: 1, 8, 16, 16>}, {transform_indices = @transform_1, window_bounds = array<i64: 1, 1, 16, 16>}, {transform_indices = @transform_2, window_bounds = array<i64: 1, 1, 16, 16>}, {pipeline_mode = #tpu.pipeline_mode<synchronous>, transform_indices = @transform_3, window_bounds = array<i64: 1, 16>}, {pipeline_mode = #tpu.pipeline_mode<synchronous>, transform_indices = @transform_4, window_bounds = array<i64: 1, 16>}, {pipeline_mode = #tpu.pipeline_mode<synchronous>, transform_indices = @transform_5, window_bounds = array<i64: 16, 128>}, {pipeline_mode = #tpu.pipeline_mode<synchronous>, transform_indices = @transform_6, window_bounds = array<i64: 1, 128>}, {pipeline_mode = #tpu.pipeline_mode<synchronous>, transform_indices = @transform_7, window_bounds = array<i64: 1152, 128>}, {pipeline_mode = #tpu.pipeline_mode<synchronous>, transform_indices = @transform_8, window_bounds = array<i64: 1, 128>}, {pipeline_mode = #tpu.pipeline_mode<synchronous>, transform_indices = @transform_9, window_bounds = array<i64: 128, 16>}, {pipeline_mode = #tpu.pipeline_mode<synchronous>, transform_indices = @transform_10, window_bounds = array<i64: 1, 16>}, {transform_indices = @transform_11, window_bounds = array<i64: 1, 8, 16, 16>}]} {
    %c0 = arith.constant 0 : index
    %c0_0 = arith.constant 0 : index
    %c0_1 = arith.constant 0 : index
    %c0_2 = arith.constant 0 : index
    %0 = vector.load %arg3[%c0, %c0_0, %c0_1, %c0_2] : memref<1x1x16x16xf32, #tpu.memory_space<vmem>>, vector<1x1x16x16xf32>
    %1 = vector.shape_cast %0 : vector<1x1x16x16xf32> to vector<1x16x16xf32>
    %c0_3 = arith.constant 0 : index
    %c0_4 = arith.constant 0 : index
    %c0_5 = arith.constant 0 : index
    %c0_6 = arith.constant 0 : index
    %2 = vector.load %arg2[%c0_3, %c0_4, %c0_5, %c0_6] : memref<1x8x16x16xf32, #tpu.memory_space<vmem>>, vector<1x8x16x16xf32>
    %3 = vector.shape_cast %2 : vector<1x8x16x16xf32> to vector<8x16x16xf32>
    %c0_7 = arith.constant 0 : index
    %c0_8 = arith.constant 0 : index
    %c0_9 = arith.constant 0 : index
    %c0_10 = arith.constant 0 : index
    %4 = vector.load %arg4[%c0_7, %c0_8, %c0_9, %c0_10] : memref<1x1x16x16xf32, #tpu.memory_space<vmem>>, vector<1x1x16x16xf32>
    %5 = vector.shape_cast %4 : vector<1x1x16x16xf32> to vector<1x16x16xf32>
    %6 = tpu.concatenate %1, %3, %5 in 0 : vector<1x16x16xf32>, vector<8x16x16xf32>, vector<1x16x16xf32> -> vector<10x16x16xf32>
    %7 = vector.shape_cast %6 : vector<10x16x16xf32> to vector<160x16xf32>
    %c0_11 = arith.constant 0 : index
    %c0_12 = arith.constant 0 : index
    %8 = vector.load %arg5[%c0_11, %c0_12] : memref<1x16xf32, #tpu.memory_space<vmem>>, vector<1x16xf32>
    %9 = vector.broadcast %8 : vector<1x16xf32> to vector<160x16xf32>
    %10 = arith.mulf %7, %9 : vector<160x16xf32>
    %c0_13 = arith.constant 0 : index
    %c0_14 = arith.constant 0 : index
    %11 = vector.load %arg6[%c0_13, %c0_14] : memref<1x16xf32, #tpu.memory_space<vmem>>, vector<1x16xf32>
    %12 = vector.broadcast %11 : vector<1x16xf32> to vector<160x16xf32>
    %13 = arith.addf %10, %12 : vector<160x16xf32>
    %cst = arith.constant 0.000000e+00 : f32
    %14 = vector.broadcast %cst : f32 to vector<160x16xf32>
    %15 = arith.maximumf %13, %14 : vector<160x16xf32>
    %16 = arith.truncf %15 : vector<160x16xf32> to vector<160x16xbf16>
    %c0_15 = arith.constant 0 : index
    %c0_16 = arith.constant 0 : index
    %17 = vector.load %arg7[%c0_15, %c0_16] : memref<16x128xbf16, #tpu.memory_space<vmem>>, vector<16x128xbf16>
    %cst_17 = arith.constant dense<0.000000e+00> : vector<160x128xf32>
    %18 = tpu.matmul %16, %17, %cst_17 {dimension_numbers = #tpu.dot_dimension_numbers<[1], [0], [0], [1], [0, 0, 1, 1], [], []>} : vector<160x16xbf16>, vector<16x128xbf16>, vector<160x128xf32> -> vector<160x128xf32>
    %c0_18 = arith.constant 0 : index
    %c0_19 = arith.constant 0 : index
    %19 = vector.load %arg8[%c0_18, %c0_19] : memref<1x128xf32, #tpu.memory_space<vmem>>, vector<1x128xf32>
    %20 = vector.broadcast %19 : vector<1x128xf32> to vector<160x128xf32>
    %21 = arith.addf %18, %20 : vector<160x128xf32>
    %cst_20 = arith.constant 0.000000e+00 : f32
    %22 = vector.broadcast %cst_20 : f32 to vector<160x128xf32>
    %23 = arith.maximumf %21, %22 : vector<160x128xf32>
    %24 = arith.truncf %23 : vector<160x128xf32> to vector<160x128xbf16>
    %cst_21 = arith.constant 0.000000e+00 : bf16
    %25 = vector.broadcast %cst_21 : bf16 to vector<10x16x128xbf16>
    %c0_22 = arith.constant 0 : index
    %c0_23 = arith.constant 0 : index
    %c0_24 = arith.constant 0 : index
    %26 = vector.load %arg14[%c0_22, %c0_23, %c0_24] : memref<10x48x128xbf16, #tpu.memory_space<vmem>>, vector<10x16x128xbf16>
    tpu.vector_store %arg14[%c0_22, %c0_23, %c0_24], %25 {strides = array<i32>} : memref<10x48x128xbf16, #tpu.memory_space<vmem>>, vector<10x16x128xbf16>,
    %cst_25 = arith.constant 0.000000e+00 : bf16
    %27 = vector.broadcast %cst_25 : bf16 to vector<10x16x128xbf16>
    %c0_26 = arith.constant 0 : index
    %c32 = arith.constant 32 : index
    %c0_27 = arith.constant 0 : index
    %28 = vector.load %arg14[%c0_26, %c32, %c0_27] : memref<10x48x128xbf16, #tpu.memory_space<vmem>>, vector<10x16x128xbf16>
    tpu.vector_store %arg14[%c0_26, %c32, %c0_27], %27 {strides = array<i32>} : memref<10x48x128xbf16, #tpu.memory_space<vmem>>, vector<10x16x128xbf16>,
    %29 = vector.shape_cast %24 : vector<160x128xbf16> to vector<10x16x128xbf16>
    %c0_28 = arith.constant 0 : index
    %c16 = arith.constant 16 : index
    %c0_29 = arith.constant 0 : index
    %30 = vector.load %arg14[%c0_28, %c16, %c0_29] : memref<10x48x128xbf16, #tpu.memory_space<vmem>>, vector<10x16x128xbf16>
    tpu.vector_store %arg14[%c0_28, %c16, %c0_29], %29 {strides = array<i32>} : memref<10x48x128xbf16, #tpu.memory_space<vmem>>, vector<10x16x128xbf16>,
    %c0_i32 = arith.constant 0 : i32
    %31 = arith.cmpi eq, %arg1, %c0_i32 : i32
    %32 = arith.extui %31 : i1 to i32
    %c0_i32_30 = arith.constant 0 : i32
    %33 = arith.cmpi ne, %32, %c0_i32_30 : i32
    scf.if %33 {
      %cst_91 = arith.constant 0.000000e+00 : bf16
      %101 = vector.broadcast %cst_91 : bf16 to vector<1x16x128xbf16>
      %c0_92 = arith.constant 0 : index
      %c16_93 = arith.constant 16 : index
      %c0_94 = arith.constant 0 : index
      %102 = vector.load %arg14[%c0_92, %c16_93, %c0_94] : memref<10x48x128xbf16, #tpu.memory_space<vmem>>, vector<1x16x128xbf16>
      tpu.vector_store %arg14[%c0_92, %c16_93, %c0_94], %101 {strides = array<i32>} : memref<10x48x128xbf16, #tpu.memory_space<vmem>>, vector<1x16x128xbf16>,
    } else {
    }
    %c1_i32 = arith.constant 1 : i32
    %34 = arith.cmpi eq, %arg1, %c1_i32 : i32
    %35 = arith.extui %34 : i1 to i32
    %c0_i32_31 = arith.constant 0 : i32
    %36 = arith.cmpi ne, %35, %c0_i32_31 : i32
    scf.if %36 {
      %cst_91 = arith.constant 0.000000e+00 : bf16
      %101 = vector.broadcast %cst_91 : bf16 to vector<1x16x128xbf16>
      %c9 = arith.constant 9 : index
      %c16_92 = arith.constant 16 : index
      %c0_93 = arith.constant 0 : index
      %102 = vector.load %arg14[%c9, %c16_92, %c0_93] : memref<10x48x128xbf16, #tpu.memory_space<vmem>>, vector<1x16x128xbf16>
      tpu.vector_store %arg14[%c9, %c16_92, %c0_93], %101 {strides = array<i32>} : memref<10x48x128xbf16, #tpu.memory_space<vmem>>, vector<1x16x128xbf16>,
    } else {
    }
    %cst_32 = arith.constant 0.000000e+00 : f32
    %37 = vector.broadcast %cst_32 : f32 to vector<128x128xf32>
    %c0_33 = arith.constant 0 : index
    %c15 = arith.constant 15 : index
    %c0_34 = arith.constant 0 : index
    %38 = vector.load %arg14[%c0_33, %c15, %c0_34] : memref<10x48x128xbf16, #tpu.memory_space<vmem>>, vector<8x16x128xbf16>
    %39 = vector.shape_cast %38 : vector<8x16x128xbf16> to vector<128x128xbf16>
    %c0_35 = arith.constant 0 : index
    %c0_36 = arith.constant 0 : index
    %40 = vector.load %arg9[%c0_35, %c0_36] : memref<1152x128xbf16, #tpu.memory_space<vmem>>, vector<128x128xbf16>
    %cst_37 = arith.constant dense<0.000000e+00> : vector<128x128xf32>
    %41 = tpu.matmul %39, %40, %cst_37 {dimension_numbers = #tpu.dot_dimension_numbers<[1], [0], [0], [1], [0, 0, 1, 1], [], []>} : vector<128x128xbf16>, vector<128x128xbf16>, vector<128x128xf32> -> vector<128x128xf32>
    %42 = arith.addf %37, %41 : vector<128x128xf32>
    %c0_38 = arith.constant 0 : index
    %c16_39 = arith.constant 16 : index
    %c0_40 = arith.constant 0 : index
    %43 = vector.load %arg14[%c0_38, %c16_39, %c0_40] : memref<10x48x128xbf16, #tpu.memory_space<vmem>>, vector<8x16x128xbf16>
    %44 = vector.shape_cast %43 : vector<8x16x128xbf16> to vector<128x128xbf16>
    %c128 = arith.constant 128 : index
    %c0_41 = arith.constant 0 : index
    %45 = vector.load %arg9[%c128, %c0_41] : memref<1152x128xbf16, #tpu.memory_space<vmem>>, vector<128x128xbf16>
    %cst_42 = arith.constant dense<0.000000e+00> : vector<128x128xf32>
    %46 = tpu.matmul %44, %45, %cst_42 {dimension_numbers = #tpu.dot_dimension_numbers<[1], [0], [0], [1], [0, 0, 1, 1], [], []>} : vector<128x128xbf16>, vector<128x128xbf16>, vector<128x128xf32> -> vector<128x128xf32>
    %47 = arith.addf %42, %46 : vector<128x128xf32>
    %c0_43 = arith.constant 0 : index
    %c17 = arith.constant 17 : index
    %c0_44 = arith.constant 0 : index
    %48 = vector.load %arg14[%c0_43, %c17, %c0_44] : memref<10x48x128xbf16, #tpu.memory_space<vmem>>, vector<8x16x128xbf16>
    %49 = vector.shape_cast %48 : vector<8x16x128xbf16> to vector<128x128xbf16>
    %c256 = arith.constant 256 : index
    %c0_45 = arith.constant 0 : index
    %50 = vector.load %arg9[%c256, %c0_45] : memref<1152x128xbf16, #tpu.memory_space<vmem>>, vector<128x128xbf16>
    %cst_46 = arith.constant dense<0.000000e+00> : vector<128x128xf32>
    %51 = tpu.matmul %49, %50, %cst_46 {dimension_numbers = #tpu.dot_dimension_numbers<[1], [0], [0], [1], [0, 0, 1, 1], [], []>} : vector<128x128xbf16>, vector<128x128xbf16>, vector<128x128xf32> -> vector<128x128xf32>
    %52 = arith.addf %47, %51 : vector<128x128xf32>
    %c1 = arith.constant 1 : index
    %c15_47 = arith.constant 15 : index
    %c0_48 = arith.constant 0 : index
    %53 = vector.load %arg14[%c1, %c15_47, %c0_48] : memref<10x48x128xbf16, #tpu.memory_space<vmem>>, vector<8x16x128xbf16>
    %54 = vector.shape_cast %53 : vector<8x16x128xbf16> to vector<128x128xbf16>
    %c384 = arith.constant 384 : index
    %c0_49 = arith.constant 0 : index
    %55 = vector.load %arg9[%c384, %c0_49] : memref<1152x128xbf16, #tpu.memory_space<vmem>>, vector<128x128xbf16>
    %cst_50 = arith.constant dense<0.000000e+00> : vector<128x128xf32>
    %56 = tpu.matmul %54, %55, %cst_50 {dimension_numbers = #tpu.dot_dimension_numbers<[1], [0], [0], [1], [0, 0, 1, 1], [], []>} : vector<128x128xbf16>, vector<128x128xbf16>, vector<128x128xf32> -> vector<128x128xf32>
    %57 = arith.addf %52, %56 : vector<128x128xf32>
    %c1_51 = arith.constant 1 : index
    %c16_52 = arith.constant 16 : index
    %c0_53 = arith.constant 0 : index
    %58 = vector.load %arg14[%c1_51, %c16_52, %c0_53] : memref<10x48x128xbf16, #tpu.memory_space<vmem>>, vector<8x16x128xbf16>
    %59 = vector.shape_cast %58 : vector<8x16x128xbf16> to vector<128x128xbf16>
    %c512 = arith.constant 512 : index
    %c0_54 = arith.constant 0 : index
    %60 = vector.load %arg9[%c512, %c0_54] : memref<1152x128xbf16, #tpu.memory_space<vmem>>, vector<128x128xbf16>
    %cst_55 = arith.constant dense<0.000000e+00> : vector<128x128xf32>
    %61 = tpu.matmul %59, %60, %cst_55 {dimension_numbers = #tpu.dot_dimension_numbers<[1], [0], [0], [1], [0, 0, 1, 1], [], []>} : vector<128x128xbf16>, vector<128x128xbf16>, vector<128x128xf32> -> vector<128x128xf32>
    %62 = arith.addf %57, %61 : vector<128x128xf32>
    %c1_56 = arith.constant 1 : index
    %c17_57 = arith.constant 17 : index
    %c0_58 = arith.constant 0 : index
    %63 = vector.load %arg14[%c1_56, %c17_57, %c0_58] : memref<10x48x128xbf16, #tpu.memory_space<vmem>>, vector<8x16x128xbf16>
    %64 = vector.shape_cast %63 : vector<8x16x128xbf16> to vector<128x128xbf16>
    %c640 = arith.constant 640 : index
    %c0_59 = arith.constant 0 : index
    %65 = vector.load %arg9[%c640, %c0_59] : memref<1152x128xbf16, #tpu.memory_space<vmem>>, vector<128x128xbf16>
    %cst_60 = arith.constant dense<0.000000e+00> : vector<128x128xf32>
    %66 = tpu.matmul %64, %65, %cst_60 {dimension_numbers = #tpu.dot_dimension_numbers<[1], [0], [0], [1], [0, 0, 1, 1], [], []>} : vector<128x128xbf16>, vector<128x128xbf16>, vector<128x128xf32> -> vector<128x128xf32>
    %67 = arith.addf %62, %66 : vector<128x128xf32>
    %c2 = arith.constant 2 : index
    %c15_61 = arith.constant 15 : index
    %c0_62 = arith.constant 0 : index
    %68 = vector.load %arg14[%c2, %c15_61, %c0_62] : memref<10x48x128xbf16, #tpu.memory_space<vmem>>, vector<8x16x128xbf16>
    %69 = vector.shape_cast %68 : vector<8x16x128xbf16> to vector<128x128xbf16>
    %c768 = arith.constant 768 : index
    %c0_63 = arith.constant 0 : index
    %70 = vector.load %arg9[%c768, %c0_63] : memref<1152x128xbf16, #tpu.memory_space<vmem>>, vector<128x128xbf16>
    %cst_64 = arith.constant dense<0.000000e+00> : vector<128x128xf32>
    %71 = tpu.matmul %69, %70, %cst_64 {dimension_numbers = #tpu.dot_dimension_numbers<[1], [0], [0], [1], [0, 0, 1, 1], [], []>} : vector<128x128xbf16>, vector<128x128xbf16>, vector<128x128xf32> -> vector<128x128xf32>
    %72 = arith.addf %67, %71 : vector<128x128xf32>
    %c2_65 = arith.constant 2 : index
    %c16_66 = arith.constant 16 : index
    %c0_67 = arith.constant 0 : index
    %73 = vector.load %arg14[%c2_65, %c16_66, %c0_67] : memref<10x48x128xbf16, #tpu.memory_space<vmem>>, vector<8x16x128xbf16>
    %74 = vector.shape_cast %73 : vector<8x16x128xbf16> to vector<128x128xbf16>
    %c896 = arith.constant 896 : index
    %c0_68 = arith.constant 0 : index
    %75 = vector.load %arg9[%c896, %c0_68] : memref<1152x128xbf16, #tpu.memory_space<vmem>>, vector<128x128xbf16>
    %cst_69 = arith.constant dense<0.000000e+00> : vector<128x128xf32>
    %76 = tpu.matmul %74, %75, %cst_69 {dimension_numbers = #tpu.dot_dimension_numbers<[1], [0], [0], [1], [0, 0, 1, 1], [], []>} : vector<128x128xbf16>, vector<128x128xbf16>, vector<128x128xf32> -> vector<128x128xf32>
    %77 = arith.addf %72, %76 : vector<128x128xf32>
    %c2_70 = arith.constant 2 : index
    %c17_71 = arith.constant 17 : index
    %c0_72 = arith.constant 0 : index
    %78 = vector.load %arg14[%c2_70, %c17_71, %c0_72] : memref<10x48x128xbf16, #tpu.memory_space<vmem>>, vector<8x16x128xbf16>
    %79 = vector.shape_cast %78 : vector<8x16x128xbf16> to vector<128x128xbf16>
    %c1024 = arith.constant 1024 : index
    %c0_73 = arith.constant 0 : index
    %80 = vector.load %arg9[%c1024, %c0_73] : memref<1152x128xbf16, #tpu.memory_space<vmem>>, vector<128x128xbf16>
    %cst_74 = arith.constant dense<0.000000e+00> : vector<128x128xf32>
    %81 = tpu.matmul %79, %80, %cst_74 {dimension_numbers = #tpu.dot_dimension_numbers<[1], [0], [0], [1], [0, 0, 1, 1], [], []>} : vector<128x128xbf16>, vector<128x128xbf16>, vector<128x128xf32> -> vector<128x128xf32>
    %82 = arith.addf %77, %81 : vector<128x128xf32>
    %c0_75 = arith.constant 0 : index
    %c0_76 = arith.constant 0 : index
    %83 = vector.load %arg10[%c0_75, %c0_76] : memref<1x128xf32, #tpu.memory_space<vmem>>, vector<1x128xf32>
    %84 = vector.broadcast %83 : vector<1x128xf32> to vector<128x128xf32>
    %85 = arith.addf %82, %84 : vector<128x128xf32>
    %cst_77 = arith.constant 0.000000e+00 : f32
    %86 = vector.broadcast %cst_77 : f32 to vector<128x128xf32>
    %87 = arith.maximumf %85, %86 : vector<128x128xf32>
    %88 = arith.truncf %87 : vector<128x128xf32> to vector<128x128xbf16>
    %c0_78 = arith.constant 0 : index
    %c0_79 = arith.constant 0 : index
    %89 = vector.load %arg11[%c0_78, %c0_79] : memref<128x16xbf16, #tpu.memory_space<vmem>>, vector<128x16xbf16>
    %cst_80 = arith.constant dense<0.000000e+00> : vector<128x16xf32>
    %90 = tpu.matmul %88, %89, %cst_80 {dimension_numbers = #tpu.dot_dimension_numbers<[1], [0], [0], [1], [0, 0, 1, 1], [], []>} : vector<128x128xbf16>, vector<128x16xbf16>, vector<128x16xf32> -> vector<128x16xf32>
    %c0_81 = arith.constant 0 : index
    %c0_82 = arith.constant 0 : index
    %91 = vector.load %arg12[%c0_81, %c0_82] : memref<1x16xf32, #tpu.memory_space<vmem>>, vector<1x16xf32>
    %92 = vector.broadcast %91 : vector<1x16xf32> to vector<128x16xf32>
    %93 = arith.addf %90, %92 : vector<128x16xf32>
    %94 = vector.shape_cast %93 : vector<128x16xf32> to vector<8x16x16xf32>
    %c0_83 = arith.constant 0 : index
    %c0_84 = arith.constant 0 : index
    %c0_85 = arith.constant 0 : index
    %c0_86 = arith.constant 0 : index
    %95 = vector.load %arg2[%c0_83, %c0_84, %c0_85, %c0_86] : memref<1x8x16x16xf32, #tpu.memory_space<vmem>>, vector<1x8x16x16xf32>
    %96 = vector.shape_cast %95 : vector<1x8x16x16xf32> to vector<8x16x16xf32>
    %97 = arith.addf %94, %96 : vector<8x16x16xf32>
    %c0_87 = arith.constant 0 : index
    %c0_88 = arith.constant 0 : index
    %c0_89 = arith.constant 0 : index
    %c0_90 = arith.constant 0 : index
    %98 = vector.load %arg13[%c0_87, %c0_88, %c0_89, %c0_90] : memref<1x8x16x16xf32, #tpu.memory_space<vmem>>, vector<1x8x16x16xf32>
    %99 = vector.shape_cast %98 : vector<1x8x16x16xf32> to vector<8x16x16xf32>
    %100 = vector.shape_cast %97 : vector<8x16x16xf32> to vector<1x8x16x16xf32>
    tpu.vector_store %arg13[%c0_87, %c0_88, %c0_89, %c0_90], %100 {strides = array<i32>} : memref<1x8x16x16xf32, #tpu.memory_space<vmem>>, vector<1x8x16x16xf32>,
    return
  }
  func.func @transform_0(%arg0: i32, %arg1: i32) -> (i32, i32, i32, i32) {
    %c0_i32 = arith.constant 0 : i32
    %c0_i32_0 = arith.constant 0 : i32
    %c0_i32_1 = arith.constant 0 : i32
    return %arg0, %arg1, %c0_i32, %c0_i32_0 : i32, i32, i32, i32
  }
  func.func @transform_1(%arg0: i32, %arg1: i32) -> (i32, i32, i32, i32) {
    %c8_i32 = arith.constant 8 : i32
    %0 = arith.muli %arg1, %c8_i32 : i32
    %c1_i32 = arith.constant 1 : i32
    %1 = arith.subi %0, %c1_i32 : i32
    %c0_i32 = arith.constant 0 : i32
    %2 = arith.maxsi %1, %c0_i32 : i32
    %c0_i32_0 = arith.constant 0 : i32
    %c0_i32_1 = arith.constant 0 : i32
    %c0_i32_2 = arith.constant 0 : i32
    return %arg0, %2, %c0_i32_0, %c0_i32_1 : i32, i32, i32, i32
  }
  func.func @transform_2(%arg0: i32, %arg1: i32) -> (i32, i32, i32, i32) {
    %c1_i32 = arith.constant 1 : i32
    %0 = arith.addi %arg1, %c1_i32 : i32
    %c8_i32 = arith.constant 8 : i32
    %1 = arith.muli %0, %c8_i32 : i32
    %c15_i32 = arith.constant 15 : i32
    %2 = arith.minsi %1, %c15_i32 : i32
    %c0_i32 = arith.constant 0 : i32
    %c0_i32_0 = arith.constant 0 : i32
    %c0_i32_1 = arith.constant 0 : i32
    return %arg0, %2, %c0_i32, %c0_i32_0 : i32, i32, i32, i32
  }
  func.func @transform_3(%arg0: i32, %arg1: i32) -> (i32, i32) {
    %c0_i32 = arith.constant 0 : i32
    %c0_i32_0 = arith.constant 0 : i32
    %c0_i32_1 = arith.constant 0 : i32
    return %c0_i32, %c0_i32_0 : i32, i32
  }
  func.func @transform_4(%arg0: i32, %arg1: i32) -> (i32, i32) {
    %c0_i32 = arith.constant 0 : i32
    %c0_i32_0 = arith.constant 0 : i32
    %c0_i32_1 = arith.constant 0 : i32
    return %c0_i32, %c0_i32_0 : i32, i32
  }
  func.func @transform_5(%arg0: i32, %arg1: i32) -> (i32, i32) {
    %c0_i32 = arith.constant 0 : i32
    %c0_i32_0 = arith.constant 0 : i32
    %c0_i32_1 = arith.constant 0 : i32
    return %c0_i32, %c0_i32_0 : i32, i32
  }
  func.func @transform_6(%arg0: i32, %arg1: i32) -> (i32, i32) {
    %c0_i32 = arith.constant 0 : i32
    %c0_i32_0 = arith.constant 0 : i32
    %c0_i32_1 = arith.constant 0 : i32
    return %c0_i32, %c0_i32_0 : i32, i32
  }
  func.func @transform_7(%arg0: i32, %arg1: i32) -> (i32, i32) {
    %c0_i32 = arith.constant 0 : i32
    %c0_i32_0 = arith.constant 0 : i32
    %c0_i32_1 = arith.constant 0 : i32
    return %c0_i32, %c0_i32_0 : i32, i32
  }
  func.func @transform_8(%arg0: i32, %arg1: i32) -> (i32, i32) {
    %c0_i32 = arith.constant 0 : i32
    %c0_i32_0 = arith.constant 0 : i32
    %c0_i32_1 = arith.constant 0 : i32
    return %c0_i32, %c0_i32_0 : i32, i32
  }
  func.func @transform_9(%arg0: i32, %arg1: i32) -> (i32, i32) {
    %c0_i32 = arith.constant 0 : i32
    %c0_i32_0 = arith.constant 0 : i32
    %c0_i32_1 = arith.constant 0 : i32
    return %c0_i32, %c0_i32_0 : i32, i32
  }
  func.func @transform_10(%arg0: i32, %arg1: i32) -> (i32, i32) {
    %c0_i32 = arith.constant 0 : i32
    %c0_i32_0 = arith.constant 0 : i32
    %c0_i32_1 = arith.constant 0 : i32
    return %c0_i32, %c0_i32_0 : i32, i32
  }
  func.func @transform_11(%arg0: i32, %arg1: i32) -> (i32, i32, i32, i32) {
    %c0_i32 = arith.constant 0 : i32
    %c0_i32_0 = arith.constant 0 : i32
    %c0_i32_1 = arith.constant 0 : i32
    return %arg0, %arg1, %c0_i32, %c0_i32_0 : i32, i32, i32, i32
  }
}

</mosaic_0001>

<llo_original>
// kernel: bottleneck_forward.1
$region0: #{bottleneck_forward.1}
  #allocation0 [shape = 'u32[]', space=smem, size = 0x4, offset = 0x4, fixed_abs, tag = 'smem constant byte address 0x4 - core index']
  #allocation1 [shape = 'u32[72,128]{1,0:T(1,128)}', space=vmem, size = 0x9000, scoped, tag = 'internal scratch']
  #allocation2 [shape = 'bf16[10,48,128]{2,1,0:T(8,128)(2,1)}', space=vmem, size = 0x1e000, scoped, tag = 'scratch operand']
  %s0 = inlined_call_operand.vmem [shape: f32[2,16,16,16], index: 0, kind: input, shape index: {}, may-alias: {0,1,2}]
  %s1 = inlined_call_operand.vmem [shape: f32[2,16,16,16], index: 1, kind: input, shape index: {}, may-alias: {0,1,2}]
  %s2 = inlined_call_operand.vmem [shape: f32[2,16,16,16], index: 2, kind: input, shape index: {}, may-alias: {0,1,2}]
  %s3 = inlined_call_operand.vmem [shape: f32[1,16], index: 3, kind: input, shape index: {}]
  %s4 = inlined_call_operand.vmem [shape: f32[1,16], index: 4, kind: input, shape index: {}]
  %s5 = inlined_call_operand.vmem [shape: bf16[16,128], index: 5, kind: input, shape index: {}]
  %s6 = inlined_call_operand.vmem [shape: f32[1,128], index: 6, kind: input, shape index: {}]
  %s7 = inlined_call_operand.vmem [shape: bf16[1152,128], index: 7, kind: input, shape index: {}]
  %s8 = inlined_call_operand.vmem [shape: f32[1,128], index: 8, kind: input, shape index: {}]
  %s9 = inlined_call_operand.vmem [shape: bf16[128,16], index: 9, kind: input, shape index: {}]
  %s10 = inlined_call_operand.vmem [shape: f32[1,16], index: 10, kind: input, shape index: {}]
  %s11 = inlined_call_operand.vmem [shape: f32[2,16,16,16], index: 11, kind: output, shape index: {}]
  %s12 = sld [smem:[#allocation0]]
  $region85: #{bottleneck_forward.1} parent=0
    _
  %s14 = ssub.s32 1, %s12
  %s15 = scalar_select 0, %s14, %s12
  loop: start=0, step=1, limit=6
  $region2: #{bottleneck_forward.1} parent=0 // loop_pre_header
    _
  $region3: #{bottleneck_forward.1} parent=0 // loop_header
    %s17 = sphi 0, %s21
    %p18 = scmp.ge.s32.totalorder %s17, 6
    %s24 = sphi 0, %s36
    %s25 = sphi 0, %s32
    %s26 = sphi 0, %s24
    %s27 = sphi 0, %s25
    %s28 = sphi 0, %s26
    %s29 = sphi 0, %s27
    %s41 = sphi 0, %s43
    %s44 = sphi 0, %s41
    %s45 = sphi 0, %s44
    %s61 = sphi 0, %s45
    %s77 = sphi 0, %s79
    %s80 = sphi 0, %s77
    %s81 = sphi 0, %s80
    %s97 = sphi 0, %s81
    %s113 = sphi 0, %s115
    %s116 = sphi 0, %s113
    %s117 = sphi 0, %s116
    %s133 = sphi 0, %s117
    %s137 = sphi 0, %s137
    %s139 = sphi 0, %s137
    %s140 = sphi 0, %s139
    %s154 = sphi 0, %s140
    %s158 = sphi 0, %s158
    %s160 = sphi 0, %s158
    %s161 = sphi 0, %s160
    %s175 = sphi 0, %s161
    %s179 = sphi 0, %s179
    %s181 = sphi 0, %s179
    %s182 = sphi 0, %s181
    %s196 = sphi 0, %s182
    %s200 = sphi 0, %s200
    %s202 = sphi 0, %s200
    %s203 = sphi 0, %s202
    %s217 = sphi 0, %s203
    %s221 = sphi 0, %s221
    %s223 = sphi 0, %s221
    %s224 = sphi 0, %s223
    %s238 = sphi 0, %s224
    %s242 = sphi 0, %s242
    %s244 = sphi 0, %s242
    %s245 = sphi 0, %s244
    %s259 = sphi 0, %s245
    %s263 = sphi 0, %s263
    %s265 = sphi 0, %s263
    %s266 = sphi 0, %s265
    %s280 = sphi 0, %s266
    %s284 = sphi 0, %s284
    %s286 = sphi 0, %s284
    %s287 = sphi 0, %s286
    %s301 = sphi 0, %s287
    %s309 = sphi 0, %s311
    %s312 = sphi 0, %s309
    %s313 = sphi 0, %s312
    %s329 = sphi 0, %s313
  $region4: #{bottleneck_forward.1} parent=0 // loop_header_branch
    %20 = sbr.rel (%p18) target = $region8
  $region5: #{bottleneck_forward.1} parent=0 // loop_body
    %s22 = ssub.s32 %s17, 1
    %s23 = ssub.s32 %s17, 2
    %s30 = sadd.s32 1, %s25
    %p31 = scmp.ge.s32.totalorder %s30, 2
    %s32 = scalar_select %p31, 0, %s30
    %s33 = sadd.s32 1, %s24
    %s34 = scalar_select %p31, %s33, %s24
    %p35 = scmp.ge.s32.totalorder %s34, 2
    %s36 = scalar_select %p35, 0, %s34
    %s37 = ssub.s32 %s24, %s36
    %s38 = ssub.s32 %s25, %s32
    %s39 = sor.u32 %s37, %s38
    %p40 = scmp.eq.s32.totalorder %s39, 0
    %s42 = sadd.s32 %s41, 1
    %s43 = scalar_select %p40, %s41, %s42
    %p46 = pneg %p40
    %p47 = scmp.eq.s32.totalorder %s17, 3
    %p48 = por %p46, %p47
    %p49 = scmp.ne.s32.totalorder %s41, %s44
    %p50 = scmp.eq.s32.totalorder %s17, 0
    %p51 = por %p49, %p50
    %p52 = scmp.ne.s32.totalorder %s41, %s44
    %p53 = scmp.eq.s32.totalorder %s22, 3
    %p54 = por %p52, %p53
    %p55 = scmp.ne.s32.totalorder %s44, %s45
    %p56 = scmp.eq.s32.totalorder %s22, 0
    %p57 = por %p55, %p56
    %p58 = scmp.ne.s32.totalorder %s44, %s45
    %p59 = scmp.eq.s32.totalorder %s23, 3
    %p60 = por %p58, %p59
    %p62 = scmp.ne.s32.totalorder %s45, %s61
    %p63 = scmp.eq.s32.totalorder %s23, 0
    %p64 = por %p62, %p63
    %s65 = smul.u32 %s25, 8
    %s66 = ssub.s32 %s65, 1
    %p67 = scmp.gt.s32.totalorder %s66, 0
    %s68 = scalar_select %p67, %s66, 0
    %s69 = smul.u32 %s32, 8
    %s70 = ssub.s32 %s69, 1
    %p71 = scmp.gt.s32.totalorder %s70, 0
    %s72 = scalar_select %p71, %s70, 0
    %s73 = ssub.s32 %s24, %s36
    %s74 = ssub.s32 %s68, %s72
    %s75 = sor.u32 %s73, %s74
    %p76 = scmp.eq.s32.totalorder %s75, 0
    %s78 = sadd.s32 %s77, 1
    %s79 = scalar_select %p76, %s77, %s78
    %p82 = pneg %p76
    %p83 = scmp.eq.s32.totalorder %s17, 3
    %p84 = por %p82, %p83
    %p85 = scmp.ne.s32.totalorder %s77, %s80
    %p86 = scmp.eq.s32.totalorder %s17, 0
    %p87 = por %p85, %p86
    %p88 = scmp.ne.s32.totalorder %s77, %s80
    %p89 = scmp.eq.s32.totalorder %s22, 3
    %p90 = por %p88, %p89
    %p91 = scmp.ne.s32.totalorder %s80, %s81
    %p92 = scmp.eq.s32.totalorder %s22, 0
    %p93 = por %p91, %p92
    %p94 = scmp.ne.s32.totalorder %s80, %s81
    %p95 = scmp.eq.s32.totalorder %s23, 3
    %p96 = por %p94, %p95
    %p98 = scmp.ne.s32.totalorder %s81, %s97
    %p99 = scmp.eq.s32.totalorder %s23, 0
    %p100 = por %p98, %p99
    %s101 = sadd.s32 %s25, 1
    %s102 = smul.u32 %s101, 8
    %p103 = scmp.lt.s32.totalorder %s102, 15
    %s104 = scalar_select %p103, %s102, 15
    %s105 = sadd.s32 %s32, 1
    %s106 = smul.u32 %s105, 8
    %p107 = scmp.lt.s32.totalorder %s106, 15
    %s108 = scalar_select %p107, %s106, 15
    %s109 = ssub.s32 %s24, %s36
    %s110 = ssub.s32 %s104, %s108
    %s111 = sor.u32 %s109, %s110
    %p112 = scmp.eq.s32.totalorder %s111, 0
    %s114 = sadd.s32 %s113, 1
    %s115 = scalar_select %p112, %s113, %s114
    %p118 = pneg %p112
    %p119 = scmp.eq.s32.totalorder %s17, 3
    %p120 = por %p118, %p119
    %p121 = scmp.ne.s32.totalorder %s113, %s116
    %p122 = scmp.eq.s32.totalorder %s17, 0
    %p123 = por %p121, %p122
    %p124 = scmp.ne.s32.totalorder %s113, %s116
    %p125 = scmp.eq.s32.totalorder %s22, 3
    %p126 = por %p124, %p125
    %p127 = scmp.ne.s32.totalorder %s116, %s117
    %p128 = scmp.eq.s32.totalorder %s22, 0
    %p129 = por %p127, %p128
    %p130 = scmp.ne.s32.totalorder %s116, %s117
    %p131 = scmp.eq.s32.totalorder %s23, 3
    %p132 = por %p130, %p131
    %p134 = scmp.ne.s32.totalorder %s117, %s133
    %p135 = scmp.eq.s32.totalorder %s23, 0
    %p136 = por %p134, %p135
    %s138 = sadd.s32 %s137, 1
    %p141 = scmp.eq.s32.totalorder %s17, 3
    %p142 = scmp.ne.s32.totalorder %s137, %s139
    %p143 = scmp.eq.s32.totalorder %s17, 0
    %p144 = por %p142, %p143
    %p145 = scmp.ne.s32.totalorder %s137, %s139
    %p146 = scmp.eq.s32.totalorder %s22, 3
    %p147 = por %p145, %p146
    %p148 = scmp.ne.s32.totalorder %s139, %s140
    %p149 = scmp.eq.s32.totalorder %s22, 0
    %p150 = por %p148, %p149
    %p151 = scmp.ne.s32.totalorder %s139, %s140
    %p152 = scmp.eq.s32.totalorder %s23, 3
    %p153 = por %p151, %p152
    %p155 = scmp.ne.s32.totalorder %s140, %s154
    %p156 = scmp.eq.s32.totalorder %s23, 0
    %p157 = por %p155, %p156
    %s159 = sadd.s32 %s158, 1
    %p162 = scmp.eq.s32.totalorder %s17, 3
    %p163 = scmp.ne.s32.totalorder %s158, %s160
    %p164 = scmp.eq.s32.totalorder %s17, 0
    %p165 = por %p163, %p164
    %p166 = scmp.ne.s32.totalorder %s158, %s160
    %p167 = scmp.eq.s32.totalorder %s22, 3
    %p168 = por %p166, %p167
    %p169 = scmp.ne.s32.totalorder %s160, %s161
    %p170 = scmp.eq.s32.totalorder %s22, 0
    %p171 = por %p169, %p170
    %p172 = scmp.ne.s32.totalorder %s160, %s161
    %p173 = scmp.eq.s32.totalorder %s23, 3
    %p174 = por %p172, %p173
    %p176 = scmp.ne.s32.totalorder %s161, %s175
    %p177 = scmp.eq.s32.totalorder %s23, 0
    %p178 = por %p176, %p177
    %s180 = sadd.s32 %s179, 1
    %p183 = scmp.eq.s32.totalorder %s17, 3
    %p184 = scmp.ne.s32.totalorder %s179, %s181
    %p185 = scmp.eq.s32.totalorder %s17, 0
    %p186 = por %p184, %p185
    %p187 = scmp.ne.s32.totalorder %s179, %s181
    %p188 = scmp.eq.s32.totalorder %s22, 3
    %p189 = por %p187, %p188
    %p190 = scmp.ne.s32.totalorder %s181, %s182
    %p191 = scmp.eq.s32.totalorder %s22, 0
    %p192 = por %p190, %p191
    %p193 = scmp.ne.s32.totalorder %s181, %s182
    %p194 = scmp.eq.s32.totalorder %s23, 3
    %p195 = por %p193, %p194
    %p197 = scmp.ne.s32.totalorder %s182, %s196
    %p198 = scmp.eq.s32.totalorder %s23, 0
    %p199 = por %p197, %p198
    %s201 = sadd.s32 %s200, 1
    %p204 = scmp.eq.s32.totalorder %s17, 3
    %p205 = scmp.ne.s32.totalorder %s200, %s202
    %p206 = scmp.eq.s32.totalorder %s17, 0
    %p207 = por %p205, %p206
    %p208 = scmp.ne.s32.totalorder %s200, %s202
    %p209 = scmp.eq.s32.totalorder %s22, 3
    %p210 = por %p208, %p209
    %p211 = scmp.ne.s32.totalorder %s202, %s203
    %p212 = scmp.eq.s32.totalorder %s22, 0
    %p213 = por %p211, %p212
    %p214 = scmp.ne.s32.totalorder %s202, %s203
    %p215 = scmp.eq.s32.totalorder %s23, 3
    %p216 = por %p214, %p215
    %p218 = scmp.ne.s32.totalorder %s203, %s217
    %p219 = scmp.eq.s32.totalorder %s23, 0
    %p220 = por %p218, %p219
    %s222 = sadd.s32 %s221, 1
    %p225 = scmp.eq.s32.totalorder %s17, 3
    %p226 = scmp.ne.s32.totalorder %s221, %s223
    %p227 = scmp.eq.s32.totalorder %s17, 0
    %p228 = por %p226, %p227
    %p229 = scmp.ne.s32.totalorder %s221, %s223
    %p230 = scmp.eq.s32.totalorder %s22, 3
    %p231 = por %p229, %p230
    %p232 = scmp.ne.s32.totalorder %s223, %s224
    %p233 = scmp.eq.s32.totalorder %s22, 0
    %p234 = por %p232, %p233
    %p235 = scmp.ne.s32.totalorder %s223, %s224
    %p236 = scmp.eq.s32.totalorder %s23, 3
    %p237 = por %p235, %p236
    %p239 = scmp.ne.s32.totalorder %s224, %s238
    %p240 = scmp.eq.s32.totalorder %s23, 0
    %p241 = por %p239, %p240
    %s243 = sadd.s32 %s242, 1
    %p246 = scmp.eq.s32.totalorder %s17, 3
    %p247 = scmp.ne.s32.totalorder %s242, %s244
    %p248 = scmp.eq.s32.totalorder %s17, 0
    %p249 = por %p247, %p248
    %p250 = scmp.ne.s32.totalorder %s242, %s244
    %p251 = scmp.eq.s32.totalorder %s22, 3
    %p252 = por %p250, %p251
    %p253 = scmp.ne.s32.totalorder %s244, %s245
    %p254 = scmp.eq.s32.totalorder %s22, 0
    %p255 = por %p253, %p254
    %p256 = scmp.ne.s32.totalorder %s244, %s245
    %p257 = scmp.eq.s32.totalorder %s23, 3
    %p258 = por %p256, %p257
    %p260 = scmp.ne.s32.totalorder %s245, %s259
    %p261 = scmp.eq.s32.totalorder %s23, 0
    %p262 = por %p260, %p261
    %s264 = sadd.s32 %s263, 1
    %p267 = scmp.eq.s32.totalorder %s17, 3
    %p268 = scmp.ne.s32.totalorder %s263, %s265
    %p269 = scmp.eq.s32.totalorder %s17, 0
    %p270 = por %p268, %p269
    %p271 = scmp.ne.s32.totalorder %s263, %s265
    %p272 = scmp.eq.s32.totalorder %s22, 3
    %p273 = por %p271, %p272
    %p274 = scmp.ne.s32.totalorder %s265, %s266
    %p275 = scmp.eq.s32.totalorder %s22, 0
    %p276 = por %p274, %p275
    %p277 = scmp.ne.s32.totalorder %s265, %s266
    %p278 = scmp.eq.s32.totalorder %s23, 3
    %p279 = por %p277, %p278
    %p281 = scmp.ne.s32.totalorder %s266, %s280
    %p282 = scmp.eq.s32.totalorder %s23, 0
    %p283 = por %p281, %p282
    %s285 = sadd.s32 %s284, 1
    %p288 = scmp.eq.s32.totalorder %s17, 3
    %p289 = scmp.ne.s32.totalorder %s284, %s286
    %p290 = scmp.eq.s32.totalorder %s17, 0
    %p291 = por %p289, %p290
    %p292 = scmp.ne.s32.totalorder %s284, %s286
    %p293 = scmp.eq.s32.totalorder %s22, 3
    %p294 = por %p292, %p293
    %p295 = scmp.ne.s32.totalorder %s286, %s287
    %p296 = scmp.eq.s32.totalorder %s22, 0
    %p297 = por %p295, %p296
    %p298 = scmp.ne.s32.totalorder %s286, %s287
    %p299 = scmp.eq.s32.totalorder %s23, 3
    %p300 = por %p298, %p299
    %p302 = scmp.ne.s32.totalorder %s287, %s301
    %p303 = scmp.eq.s32.totalorder %s23, 0
    %p304 = por %p302, %p303
    %s305 = ssub.s32 %s24, %s36
    %s306 = ssub.s32 %s25, %s32
    %s307 = sor.u32 %s305, %s306
    %p308 = scmp.eq.s32.totalorder %s307, 0
    %s310 = sadd.s32 %s309, 1
    %s311 = scalar_select %p308, %s309, %s310
    %p314 = pneg %p308
    %p315 = scmp.eq.s32.totalorder %s17, 3
    %p316 = por %p314, %p315
    %p317 = scmp.ne.s32.totalorder %s309, %s312
    %p318 = scmp.eq.s32.totalorder %s17, 0
    %p319 = por %p317, %p318
    %p320 = scmp.ne.s32.totalorder %s309, %s312
    %p321 = scmp.eq.s32.totalorder %s22, 3
    %p322 = por %p320, %p321
    %p323 = scmp.ne.s32.totalorder %s312, %s313
    %p324 = scmp.eq.s32.totalorder %s22, 0
    %p325 = por %p323, %p324
    %p326 = scmp.ne.s32.totalorder %s312, %s313
    %p327 = scmp.eq.s32.totalorder %s23, 3
    %p328 = por %p326, %p327
    %p330 = scmp.ne.s32.totalorder %s313, %s329
    %p331 = scmp.eq.s32.totalorder %s23, 0
    %p332 = por %p330, %p331
    %p333 = scmp.le.s32.totalorder 1, %s17
    %p334 = scmp.lt.s32.totalorder %s17, 5
    %p335 = pnand %p333, %p334
    %p336 = pneg %p335
    // Predicated region
    $region9: #{bottleneck_forward.1} parent=5 // pred_check
      _
    $region10: #{bottleneck_forward.1} parent=5 // pred_check_branch
      %338 = sbr.rel (%p335) target = $region12
    $region11: #{bottleneck_forward.1} parent=5 // pred_region
      %s339 = ssub.s32 %s17, 1
      // Predicated region
      $region13: #{bottleneck_forward.1} parent=11 // pred_check
        %p340 = pneg %p150
      $region14: #{bottleneck_forward.1} parent=11 // pred_check_branch
        %342 = sbr.rel (%p340) target = $region16
      $region15: #{bottleneck_forward.1} parent=11 // pred_region
        _
      $region16: #{bottleneck_forward.1} parent=11 // pred_fallthru
        _
      // Predicated region
      $region17: #{bottleneck_forward.1} parent=11 // pred_check
        %p343 = pneg %p171
      $region18: #{bottleneck_forward.1} parent=11 // pred_check_branch
        %345 = sbr.rel (%p343) target = $region20
      $region19: #{bottleneck_forward.1} parent=11 // pred_region
        _
      $region20: #{bottleneck_forward.1} parent=11 // pred_fallthru
        _
      // Predicated region
      $region21: #{bottleneck_forward.1} parent=11 // pred_check
        %p346 = pneg %p192
      $region22: #{bottleneck_forward.1} parent=11 // pred_check_branch
        %348 = sbr.rel (%p346) target = $region24
      $region23: #{bottleneck_forward.1} parent=11 // pred_region
        _
      $region24: #{bottleneck_forward.1} parent=11 // pred_fallthru
        _
      // Predicated region
      $region25: #{bottleneck_forward.1} parent=11 // pred_check
        %p349 = pneg %p213
      $region26: #{bottleneck_forward.1} parent=11 // pred_check_branch
        %351 = sbr.rel (%p349) target = $region28
      $region27: #{bottleneck_forward.1} parent=11 // pred_region
        _
      $region28: #{bottleneck_forward.1} parent=11 // pred_fallthru
        _
      // Predicated region
      $region29: #{bottleneck_forward.1} parent=11 // pred_check
        %p352 = pneg %p234
      $region30: #{bottleneck_forward.1} parent=11 // pred_check_branch
        %354 = sbr.rel (%p352) target = $region32
      $region31: #{bottleneck_forward.1} parent=11 // pred_region
        _
      $region32: #{bottleneck_forward.1} parent=11 // pred_fallthru
        _
      // Predicated region
      $region33: #{bottleneck_forward.1} parent=11 // pred_check
        %p355 = pneg %p255
      $region34: #{bottleneck_forward.1} parent=11 // pred_check_branch
        %357 = sbr.rel (%p355) target = $region36
      $region35: #{bottleneck_forward.1} parent=11 // pred_region
        _
      $region36: #{bottleneck_forward.1} parent=11 // pred_fallthru
        _
      // Predicated region
      $region37: #{bottleneck_forward.1} parent=11 // pred_check
        %p358 = pneg %p276
      $region38: #{bottleneck_forward.1} parent=11 // pred_check_branch
        %360 = sbr.rel (%p358) target = $region40
      $region39: #{bottleneck_forward.1} parent=11 // pred_region
        _
      $region40: #{bottleneck_forward.1} parent=11 // pred_fallthru
        _
      // Predicated region
      $region41: #{bottleneck_forward.1} parent=11 // pred_check
        %p361 = pneg %p297
      $region42: #{bottleneck_forward.1} parent=11 // pred_check_branch
        %363 = sbr.rel (%p361) target = $region44
      $region43: #{bottleneck_forward.1} parent=11 // pred_region
        _
      $region44: #{bottleneck_forward.1} parent=11 // pred_fallthru
        _
    $region12: #{bottleneck_forward.1} parent=5 // pred_fallthru
      _
    %p364 = scmp.lt.s32.totalorder %s17, 4
    // Predicated region
    $region45: #{bottleneck_forward.1} parent=5 // pred_check
      %p365 = pneg %p364
    $region46: #{bottleneck_forward.1} parent=5 // pred_check_branch
      %367 = sbr.rel (%p365) target = $region48
    $region47: #{bottleneck_forward.1} parent=5 // pred_region
      // Predicated region
      $region49: #{bottleneck_forward.1} parent=47 // pred_check
        %p368 = pneg %p51
      $region50: #{bottleneck_forward.1} parent=47 // pred_check_branch
        %370 = sbr.rel (%p368) target = $region52
      $region51: #{bottleneck_forward.1} parent=47 // pred_region
        %s371 = smul.u32 8, %s25
        %p372 = scmp.lt.s32.totalorder %s24, 1
        %s373 = scalar_select %p372, %s24, 1
        %p374 = scmp.lt.s32.totalorder %s371, 15
        %s375 = scalar_select %p374, %s371, 15
        %s376 = smul.addr %s375, 2
        %s377 = smul.addr %s373, 32
        %s378 = sadd.s32 %s376, %s377
        %s379 = smul.addr %s378, 8
        %s380 = scalar_lea.vmem %s0, %s379
        %s381 = smul.u32 8, %s25
      $region52: #{bottleneck_forward.1} parent=47 // pred_fallthru
        _
      // Predicated region
      $region53: #{bottleneck_forward.1} parent=47 // pred_check
        %p382 = pneg %p87
      $region54: #{bottleneck_forward.1} parent=47 // pred_check_branch
        %384 = sbr.rel (%p382) target = $region56
      $region55: #{bottleneck_forward.1} parent=47 // pred_region
        %s385 = smul.u32 %s25, 8
        %s386 = ssub.s32 %s385, 1
        %p387 = scmp.gt.s32.totalorder %s386, 0
        %s388 = scalar_select %p387, %s386, 0
        %p389 = scmp.lt.s32.totalorder %s24, 1
        %s390 = scalar_select %p389, %s24, 1
        %p391 = scmp.lt.s32.totalorder %s388, 15
        %s392 = scalar_select %p391, %s388, 15
        %s393 = smul.addr %s392, 2
        %s394 = smul.addr %s390, 32
        %s395 = sadd.s32 %s393, %s394
        %s396 = smul.addr %s395, 8
        %s397 = scalar_lea.vmem %s1, %s396
        %s398 = smul.u32 %s25, 8
        %s399 = ssub.s32 %s398, 1
        %p400 = scmp.gt.s32.totalorder %s399, 0
        %s401 = scalar_select %p400, %s399, 0
      $region56: #{bottleneck_forward.1} parent=47 // pred_fallthru
        _
      // Predicated region
      $region57: #{bottleneck_forward.1} parent=47 // pred_check
        %p402 = pneg %p123
      $region58: #{bottleneck_forward.1} parent=47 // pred_check_branch
        %404 = sbr.rel (%p402) target = $region60
      $region59: #{bottleneck_forward.1} parent=47 // pred_region
        %s405 = sadd.s32 %s25, 1
        %s406 = smul.u32 %s405, 8
        %p407 = scmp.lt.s32.totalorder %s406, 15
        %s408 = scalar_select %p407, %s406, 15
        %p409 = scmp.lt.s32.totalorder %s24, 1
        %s410 = scalar_select %p409, %s24, 1
        %p411 = scmp.lt.s32.totalorder %s408, 15
        %s412 = scalar_select %p411, %s408, 15
        %s413 = smul.addr %s412, 2
        %s414 = smul.addr %s410, 32
        %s415 = sadd.s32 %s413, %s414
        %s416 = smul.addr %s415, 8
        %s417 = scalar_lea.vmem %s2, %s416
        %s418 = sadd.s32 %s25, 1
        %s419 = smul.u32 %s418, 8
        %p420 = scmp.lt.s32.totalorder %s419, 15
        %s421 = scalar_select %p420, %s419, 15
      $region60: #{bottleneck_forward.1} parent=47 // pred_fallthru
        _
    $region48: #{bottleneck_forward.1} parent=5 // pred_fallthru
      _
    %p422 = scmp.le.s32.totalorder 1, %s17
    %p423 = scmp.lt.s32.totalorder %s17, 5
    %p424 = pnand %p422, %p423
    %p425 = pneg %p424
    // Predicated region
    $region61: #{bottleneck_forward.1} parent=5 // pred_check
      _
    $region62: #{bottleneck_forward.1} parent=5 // pred_check_branch
      %427 = sbr.rel (%p424) target = $region64
    $region63: #{bottleneck_forward.1} parent=5 // pred_region
      %s428 = ssub.s32 %s17, 1
      %s429 = smul.u32 8, %s27
      %p430 = scmp.lt.s32.totalorder %s26, 1
      %s431 = scalar_select %p430, %s26, 1
      %p432 = scmp.lt.s32.totalorder %s429, 15
      %s433 = scalar_select %p432, %s429, 15
      %s434 = smul.addr %s433, 2
      %s435 = smul.addr %s431, 32
      %s436 = sadd.s32 %s434, %s435
      %s437 = smul.addr %s436, 8
      %s438 = scalar_lea.vmem %s0, %s437
      %p439 = pneg %p57
      %p440 = pneg %p54
      %s441 = smul.u32 %s27, 8
      %s442 = ssub.s32 %s441, 1
      %p443 = scmp.gt.s32.totalorder %s442, 0
      %s444 = scalar_select %p443, %s442, 0
      %p445 = scmp.lt.s32.totalorder %s26, 1
      %s446 = scalar_select %p445, %s26, 1
      %p447 = scmp.lt.s32.totalorder %s444, 15
      %s448 = scalar_select %p447, %s444, 15
      %s449 = smul.addr %s448, 2
      %s450 = smul.addr %s446, 32
      %s451 = sadd.s32 %s449, %s450
      %s452 = smul.addr %s451, 8
      %s453 = scalar_lea.vmem %s1, %s452
      %p454 = pneg %p93
      %p455 = pneg %p90
      %s456 = sadd.s32 %s27, 1
      %s457 = smul.u32 %s456, 8
      %p458 = scmp.lt.s32.totalorder %s457, 15
      %s459 = scalar_select %p458, %s457, 15
      %p460 = scmp.lt.s32.totalorder %s26, 1
      %s461 = scalar_select %p460, %s26, 1
      %p462 = scmp.lt.s32.totalorder %s459, 15
      %s463 = scalar_select %p462, %s459, 15
      %s464 = smul.addr %s463, 2
      %s465 = smul.addr %s461, 32
      %s466 = sadd.s32 %s464, %s465
      %s467 = smul.addr %s466, 8
      %s468 = scalar_lea.vmem %s2, %s467
      %p469 = pneg %p129
      %p470 = pneg %p126
      %p471 = pneg %p150
      %p472 = pneg %p147
      %p473 = pneg %p171
      %p474 = pneg %p168
      %p475 = pneg %p192
      %p476 = pneg %p189
      %p477 = pneg %p213
      %p478 = pneg %p210
      %p479 = pneg %p234
      %p480 = pneg %p231
      %p481 = pneg %p255
      %p482 = pneg %p252
      %p483 = pneg %p276
      %p484 = pneg %p273
      %p485 = pneg %p297
      %p486 = pneg %p294
      %p487 = pneg %p325
      %p488 = pneg %p322
      %s489 = smul.u32 8, %s27
      %p490 = scmp.lt.s32.totalorder %s26, 1
      %s491 = scalar_select %p490, %s26, 1
      %p492 = scmp.lt.s32.totalorder %s489, 15
      %s493 = scalar_select %p492, %s489, 15
      %s494 = smul.addr %s493, 2
      %s495 = smul.addr %s491, 32
      %s496 = sadd.s32 %s494, %s495
      %s497 = smul.addr %s496, 8
      %s498 = scalar_lea.vmem %s11, %s497
      %s499 = smul.u32 8, %s27
      %p500 = scmp.lt.s32.totalorder %s26, 1
      %s501 = scalar_select %p500, %s26, 1
      %p502 = scmp.lt.s32.totalorder %s499, 15
      %s503 = scalar_select %p502, %s499, 15
      %s504 = smul.addr %s503, 2
      %s505 = smul.addr %s501, 32
      %s506 = sadd.s32 %s504, %s505
      %s507 = smul.addr %s506, 8
      %s508 = scalar_lea.vmem %s0, %s507
      %s509 = smul.u32 8, %s27
      %s510 = smul.u32 %s27, 8
      %s511 = ssub.s32 %s510, 1
      %p512 = scmp.gt.s32.totalorder %s511, 0
      %s513 = scalar_select %p512, %s511, 0
      %p514 = scmp.lt.s32.totalorder %s26, 1
      %s515 = scalar_select %p514, %s26, 1
      %p516 = scmp.lt.s32.totalorder %s513, 15
      %s517 = scalar_select %p516, %s513, 15
      %s518 = smul.addr %s517, 2
      %s519 = smul.addr %s515, 32
      %s520 = sadd.s32 %s518, %s519
      %s521 = smul.addr %s520, 8
      %s522 = scalar_lea.vmem %s1, %s521
      %s523 = smul.u32 %s27, 8
      %s524 = ssub.s32 %s523, 1
      %p525 = scmp.gt.s32.totalorder %s524, 0
      %s526 = scalar_select %p525, %s524, 0
      %s527 = sadd.s32 %s27, 1
      %s528 = smul.u32 %s527, 8
      %p529 = scmp.lt.s32.totalorder %s528, 15
      %s530 = scalar_select %p529, %s528, 15
      %p531 = scmp.lt.s32.totalorder %s26, 1
      %s532 = scalar_select %p531, %s26, 1
      %p533 = scmp.lt.s32.totalorder %s530, 15
      %s534 = scalar_select %p533, %s530, 15
      %s535 = smul.addr %s534, 2
      %s536 = smul.addr %s532, 32
      %s537 = sadd.s32 %s535, %s536
      %s538 = smul.addr %s537, 8
      %s539 = scalar_lea.vmem %s2, %s538
      %s540 = sadd.s32 %s27, 1
      %s541 = smul.u32 %s540, 8
      %p542 = scmp.lt.s32.totalorder %s541, 15
      %s543 = scalar_select %p542, %s541, 15
      %s544 = smul.u32 8, %s27
      %p545 = scmp.lt.s32.totalorder %s26, 1
      %s546 = scalar_select %p545, %s26, 1
      %p547 = scmp.lt.s32.totalorder %s544, 15
      %s548 = scalar_select %p547, %s544, 15
      %s549 = smul.addr %s548, 2
      %s550 = smul.addr %s546, 32
      %s551 = sadd.s32 %s549, %s550
      %s552 = smul.addr %s551, 8
      %s553 = scalar_lea.vmem %s11, %s552
      %s554 = smul.u32 8, %s27
      %v556 = vld [vmem:[%s522] sm:$0xff]
      %v557 = vld [vmem:[%s522 + $0x8] sm:$0xff]
      %v558 = vld [vmem:[%s508] sm:$0xff]
      %v559 = vld [vmem:[%s508 + $0x8] sm:$0xff]
      %v560 = vld [vmem:[%s508 + $0x10] sm:$0xff]
      %v561 = vld [vmem:[%s508 + $0x18] sm:$0xff]
      %v562 = vld [vmem:[%s508 + $0x20] sm:$0xff]
      %v563 = vld [vmem:[%s508 + $0x28] sm:$0xff]
      %v564 = vld [vmem:[%s508 + $0x30] sm:$0xff]
      %v565 = vld [vmem:[%s508 + $0x38] sm:$0xff]
      %v566 = vld [vmem:[%s508 + $0x40] sm:$0xff]
      %v567 = vld [vmem:[%s508 + $0x48] sm:$0xff]
      %v568 = vld [vmem:[%s508 + $0x50] sm:$0xff]
      %v569 = vld [vmem:[%s508 + $0x58] sm:$0xff]
      %v570 = vld [vmem:[%s508 + $0x60] sm:$0xff]
      %v571 = vld [vmem:[%s508 + $0x68] sm:$0xff]
      %v572 = vld [vmem:[%s508 + $0x70] sm:$0xff]
      %v573 = vld [vmem:[%s508 + $0x78] sm:$0xff]
      %v574 = vld [vmem:[%s539] sm:$0xff]
      %v575 = vld [vmem:[%s539 + $0x8] sm:$0xff]
      %v576 = vld [vmem:[%s3] sm:$0x1]
      %v578 = vperm.slane %v576, 0
      %v580 = vmul.f32 %v556, %v578
      %v581 = vmul.f32 %v557, %v578
      %v582 = vmul.f32 %v558, %v578
      %v583 = vmul.f32 %v559, %v578
      %v584 = vmul.f32 %v560, %v578
      %v585 = vmul.f32 %v561, %v578
      %v586 = vmul.f32 %v562, %v578
      %v587 = vmul.f32 %v563, %v578
      %v588 = vmul.f32 %v564, %v578
      %v589 = vmul.f32 %v565, %v578
      %v590 = vmul.f32 %v566, %v578
      %v591 = vmul.f32 %v567, %v578
      %v592 = vmul.f32 %v568, %v578
      %v593 = vmul.f32 %v569, %v578
      %v594 = vmul.f32 %v570, %v578
      %v595 = vmul.f32 %v571, %v578
      %v596 = vmul.f32 %v572, %v578
      %v597 = vmul.f32 %v573, %v578
      %v598 = vmul.f32 %v574, %v578
      %v599 = vmul.f32 %v575, %v578
      %v600 = vld [vmem:[%s4] sm:$0x1]
      %v602 = vperm.slane %v600, 0
      %v604 = vadd.f32 %v580, %v602
      %v605 = vadd.f32 %v581, %v602
      %v606 = vadd.f32 %v582, %v602
      %v607 = vadd.f32 %v583, %v602
      %v608 = vadd.f32 %v584, %v602
      %v609 = vadd.f32 %v585, %v602
      %v610 = vadd.f32 %v586, %v602
      %v611 = vadd.f32 %v587, %v602
      %v612 = vadd.f32 %v588, %v602
      %v613 = vadd.f32 %v589, %v602
      %v614 = vadd.f32 %v590, %v602
      %v615 = vadd.f32 %v591, %v602
      %v616 = vadd.f32 %v592, %v602
      %v617 = vadd.f32 %v593, %v602
      %v618 = vadd.f32 %v594, %v602
      %v619 = vadd.f32 %v595, %v602
      %v620 = vadd.f32 %v596, %v602
      %v621 = vadd.f32 %v597, %v602
      %v622 = vadd.f32 %v598, %v602
      %v623 = vadd.f32 %v599, %v602
      %v624 = vmax.f32 %v604, 0.0
      %v625 = vmax.f32 %v605, 0.0
      %v626 = vmax.f32 %v606, 0.0
      %v627 = vmax.f32 %v607, 0.0
      %v628 = vmax.f32 %v608, 0.0
      %v629 = vmax.f32 %v609, 0.0
      %v630 = vmax.f32 %v610, 0.0
      %v631 = vmax.f32 %v611, 0.0
      %v632 = vmax.f32 %v612, 0.0
      %v633 = vmax.f32 %v613, 0.0
      %v634 = vmax.f32 %v614, 0.0
      %v635 = vmax.f32 %v615, 0.0
      %v636 = vmax.f32 %v616, 0.0
      %v637 = vmax.f32 %v617, 0.0
      %v638 = vmax.f32 %v618, 0.0
      %v639 = vmax.f32 %v619, 0.0
      %v640 = vmax.f32 %v620, 0.0
      %v641 = vmax.f32 %v621, 0.0
      %v642 = vmax.f32 %v622, 0.0
      %v643 = vmax.f32 %v623, 0.0
      %v644 = vpack.c.bf16 %v625, %v624
      %v645 = vpack.c.bf16 %v627, %v626
      %v646 = vpack.c.bf16 %v629, %v628
      %v647 = vpack.c.bf16 %v631, %v630
      %v648 = vpack.c.bf16 %v633, %v632
      %v649 = vpack.c.bf16 %v635, %v634
      %v650 = vpack.c.bf16 %v637, %v636
      %v651 = vpack.c.bf16 %v639, %v638
      %v652 = vpack.c.bf16 %v641, %v640
      %v653 = vpack.c.bf16 %v643, %v642
      %v654 = vld [vmem:[%s5] sm:$0xf]
      %v655 = vld [vmem:[%s5 + $0x4] sm:$0xf]
      %v656 = vld [vmem:[%s6] sm:$0x1]
      %v658 = vperm.slane %v656, 0
      %v662 = vunpack.c.l.b16 %v654
      %v663 = vunpack.c.l.b16 %v655
      %v664 = vpack.c.b16 %v663, %v662
      %vm666 = vcmask 130048
      %v668 = vsel %vm666, %v644, 0
      %v671 = vsel %vm666, %v645, 0
      %v674 = vsel %vm666, %v646, 0
      %v677 = vsel %vm666, %v647, 0
      %v680 = vsel %vm666, %v648, 0
      %v683 = vsel %vm666, %v649, 0
      %v686 = vsel %vm666, %v650, 0
      %v689 = vsel %vm666, %v651, 0
      %v692 = vsel %vm666, %v652, 0
      %v695 = vsel %vm666, %v653, 0
      %697 = vmatpush.bf16.msra.mxu0 0
      %698 = vmatpush.bf16.msra.mxu0 0
      %699 = vmatpush.bf16.msra.mxu0 0
      %700 = vmatpush.bf16.msra.mxu0 0
      %701 = vmatpush.bf16.msra.mxu0 0
      %702 = vmatpush.bf16.msra.mxu0 0
      %703 = vmatpush.bf16.msra.mxu0 0
      %704 = vmatpush.bf16.msra.mxu0 %v664
      %705 = vmatmul.bf16.gmra.mxu0 %v668
      %v706 = vpop.f32.mrf.mxu0
      %v707 = vadd.f32 %v658, %v706
      %v708 = vpop.f32.mrf.mxu0
      %v709 = vadd.f32 %v658, %v708
      %710 = vmatmul.bf16.gmra.mxu0 %v671
      %v711 = vpop.f32.mrf.mxu0
      %v712 = vadd.f32 %v658, %v711
      %v713 = vpop.f32.mrf.mxu0
      %v714 = vadd.f32 %v658, %v713
      %715 = vmatmul.bf16.gmra.mxu0 %v674
      %v716 = vpop.f32.mrf.mxu0
      %v717 = vadd.f32 %v658, %v716
      %v718 = vpop.f32.mrf.mxu0
      %v719 = vadd.f32 %v658, %v718
      %720 = vmatmul.bf16.gmra.mxu0 %v677
      %v721 = vpop.f32.mrf.mxu0
      %v722 = vadd.f32 %v658, %v721
      %v723 = vpop.f32.mrf.mxu0
      %v724 = vadd.f32 %v658, %v723
      %725 = vmatmul.bf16.gmra.mxu0 %v680
      %v726 = vpop.f32.mrf.mxu0
      %v727 = vadd.f32 %v658, %v726
      %v728 = vpop.f32.mrf.mxu0
      %v729 = vadd.f32 %v658, %v728
      %730 = vmatmul.bf16.gmra.mxu0 %v683
      %v731 = vpop.f32.mrf.mxu0
      %v732 = vadd.f32 %v658, %v731
      %v733 = vpop.f32.mrf.mxu0
      %v734 = vadd.f32 %v658, %v733
      %735 = vmatmul.bf16.gmra.mxu0 %v686
      %v736 = vpop.f32.mrf.mxu0
      %v737 = vadd.f32 %v658, %v736
      %v738 = vpop.f32.mrf.mxu0
      %v739 = vadd.f32 %v658, %v738
      %740 = vmatmul.bf16.gmra.mxu0 %v689
      %v741 = vpop.f32.mrf.mxu0
      %v742 = vadd.f32 %v658, %v741
      %v743 = vpop.f32.mrf.mxu0
      %v744 = vadd.f32 %v658, %v743
      %745 = vmatmul.bf16.gmra.mxu0 %v692
      %v746 = vpop.f32.mrf.mxu0
      %v747 = vadd.f32 %v658, %v746
      %v748 = vpop.f32.mrf.mxu0
      %v749 = vadd.f32 %v658, %v748
      %750 = vmatmul.bf16.gmra.mxu0 %v695
      %v751 = vpop.f32.mrf.mxu0
      %v752 = vadd.f32 %v658, %v751
      %v753 = vpop.f32.mrf.mxu0
      %v754 = vadd.f32 %v658, %v753
      %755 = vdwg.mxu0
      %v756 = vmax.f32 %v707, 0.0
      %v757 = vmax.f32 %v709, 0.0
      %v758 = vmax.f32 %v712, 0.0
      %v759 = vmax.f32 %v714, 0.0
      %v760 = vmax.f32 %v717, 0.0
      %v761 = vmax.f32 %v719, 0.0
      %v762 = vmax.f32 %v722, 0.0
      %v763 = vmax.f32 %v724, 0.0
      %v764 = vmax.f32 %v727, 0.0
      %v765 = vmax.f32 %v729, 0.0
      %v766 = vmax.f32 %v732, 0.0
      %v767 = vmax.f32 %v734, 0.0
      %v768 = vmax.f32 %v737, 0.0
      %v769 = vmax.f32 %v739, 0.0
      %v770 = vmax.f32 %v742, 0.0
      %v771 = vmax.f32 %v744, 0.0
      %v772 = vmax.f32 %v747, 0.0
      %v773 = vmax.f32 %v749, 0.0
      %v774 = vmax.f32 %v752, 0.0
      %v775 = vmax.f32 %v754, 0.0
      %v776 = vpack.c.bf16 %v756, %v756
      %v777 = vpack.c.bf16 %v757, %v757
      %v778 = vpack.c.bf16 %v758, %v758
      %v779 = vpack.c.bf16 %v759, %v759
      %v780 = vpack.c.bf16 %v760, %v760
      %v781 = vpack.c.bf16 %v761, %v761
      %v782 = vpack.c.bf16 %v762, %v762
      %v783 = vpack.c.bf16 %v763, %v763
      %v784 = vpack.c.bf16 %v764, %v764
      %v785 = vpack.c.bf16 %v765, %v765
      %v786 = vpack.c.bf16 %v766, %v766
      %v787 = vpack.c.bf16 %v767, %v767
      %v788 = vpack.c.bf16 %v768, %v768
      %v789 = vpack.c.bf16 %v769, %v769
      %v790 = vpack.c.bf16 %v770, %v770
      %v791 = vpack.c.bf16 %v771, %v771
      %v792 = vpack.c.bf16 %v772, %v772
      %v793 = vpack.c.bf16 %v773, %v773
      %v794 = vpack.c.bf16 %v774, %v774
      %v795 = vpack.c.bf16 %v775, %v775
      %796 = vst [vmem:[#allocation2] sm:$0xf] 0
      %797 = vst [vmem:[#allocation2 + $0x4] sm:$0xf] 0
      %798 = vst [vmem:[#allocation2 + $0x18] sm:$0xf] 0
      %799 = vst [vmem:[#allocation2 + $0x1c] sm:$0xf] 0
      %800 = vst [vmem:[#allocation2 + $0x30] sm:$0xf] 0
      %801 = vst [vmem:[#allocation2 + $0x34] sm:$0xf] 0
      %802 = vst [vmem:[#allocation2 + $0x48] sm:$0xf] 0
      %803 = vst [vmem:[#allocation2 + $0x4c] sm:$0xf] 0
      %804 = vst [vmem:[#allocation2 + $0x60] sm:$0xf] 0
      %805 = vst [vmem:[#allocation2 + $0x64] sm:$0xf] 0
      %806 = vst [vmem:[#allocation2 + $0x78] sm:$0xf] 0
      %807 = vst [vmem:[#allocation2 + $0x7c] sm:$0xf] 0
      %808 = vst [vmem:[#allocation2 + $0x90] sm:$0xf] 0
      %809 = vst [vmem:[#allocation2 + $0x94] sm:$0xf] 0
      %810 = vst [vmem:[#allocation2 + $0xa8] sm:$0xf] 0
      %811 = vst [vmem:[#allocation2 + $0xac] sm:$0xf] 0
      %812 = vst [vmem:[#allocation2 + $0xc0] sm:$0xf] 0
      %813 = vst [vmem:[#allocation2 + $0xc4] sm:$0xf] 0
      %814 = vst [vmem:[#allocation2 + $0xd8] sm:$0xf] 0
      %815 = vst [vmem:[#allocation2 + $0xdc] sm:$0xf] 0
      %816 = vst [vmem:[#allocation2 + $0x10] sm:$0xf] 0
      %817 = vst [vmem:[#allocation2 + $0x14] sm:$0xf] 0
      %818 = vst [vmem:[#allocation2 + $0x28] sm:$0xf] 0
      %819 = vst [vmem:[#allocation2 + $0x2c] sm:$0xf] 0
      %820 = vst [vmem:[#allocation2 + $0x40] sm:$0xf] 0
      %821 = vst [vmem:[#allocation2 + $0x44] sm:$0xf] 0
      %822 = vst [vmem:[#allocation2 + $0x58] sm:$0xf] 0
      %823 = vst [vmem:[#allocation2 + $0x5c] sm:$0xf] 0
      %824 = vst [vmem:[#allocation2 + $0x70] sm:$0xf] 0
      %825 = vst [vmem:[#allocation2 + $0x74] sm:$0xf] 0
      %826 = vst [vmem:[#allocation2 + $0x88] sm:$0xf] 0
      %827 = vst [vmem:[#allocation2 + $0x8c] sm:$0xf] 0
      %828 = vst [vmem:[#allocation2 + $0xa0] sm:$0xf] 0
      %829 = vst [vmem:[#allocation2 + $0xa4] sm:$0xf] 0
      %830 = vst [vmem:[#allocation2 + $0xb8] sm:$0xf] 0
      %831 = vst [vmem:[#allocation2 + $0xbc] sm:$0xf] 0
      %832 = vst [vmem:[#allocation2 + $0xd0] sm:$0xf] 0
      %833 = vst [vmem:[#allocation2 + $0xd4] sm:$0xf] 0
      %834 = vst [vmem:[#allocation2 + $0xe8] sm:$0xf] 0
      %835 = vst [vmem:[#allocation2 + $0xec] sm:$0xf] 0
      %836 = vst [vmem:[#allocation2 + $0x8] sm:$0xf] %v776
      %837 = vst [vmem:[#allocation2 + $0xc] sm:$0xf] %v777
      %838 = vst [vmem:[#allocation2 + $0x20] sm:$0xf] %v778
      %839 = vst [vmem:[#allocation2 + $0x24] sm:$0xf] %v779
      %840 = vst [vmem:[#allocation2 + $0x38] sm:$0xf] %v780
      %841 = vst [vmem:[#allocation2 + $0x3c] sm:$0xf] %v781
      %842 = vst [vmem:[#allocation2 + $0x50] sm:$0xf] %v782
      %843 = vst [vmem:[#allocation2 + $0x54] sm:$0xf] %v783
      %844 = vst [vmem:[#allocation2 + $0x68] sm:$0xf] %v784
      %845 = vst [vmem:[#allocation2 + $0x6c] sm:$0xf] %v785
      %846 = vst [vmem:[#allocation2 + $0x80] sm:$0xf] %v786
      %847 = vst [vmem:[#allocation2 + $0x84] sm:$0xf] %v787
      %848 = vst [vmem:[#allocation2 + $0x98] sm:$0xf] %v788
      %849 = vst [vmem:[#allocation2 + $0x9c] sm:$0xf] %v789
      %850 = vst [vmem:[#allocation2 + $0xb0] sm:$0xf] %v790
      %851 = vst [vmem:[#allocation2 + $0xb4] sm:$0xf] %v791
      %852 = vst [vmem:[#allocation2 + $0xc8] sm:$0xf] %v792
      %853 = vst [vmem:[#allocation2 + $0xcc] sm:$0xf] %v793
      %854 = vst [vmem:[#allocation2 + $0xe0] sm:$0xf] %v794
      %855 = vst [vmem:[#allocation2 + $0xe4] sm:$0xf] %v795
      %p856 = scmp.eq.s32.totalorder %s27, 0
      // Predicated region
      $region65: #{bottleneck_forward.1} parent=63 // pred_check
        %p857 = pneg %p856
      $region66: #{bottleneck_forward.1} parent=63 // pred_check_branch
        %859 = sbr.rel (%p857) target = $region68
      $region67: #{bottleneck_forward.1} parent=63 // pred_region
        %860 = vst [vmem:[#allocation2 + $0x8] sm:$0xf] 0
        %861 = vst [vmem:[#allocation2 + $0xc] sm:$0xf] 0
      $region68: #{bottleneck_forward.1} parent=63 // pred_fallthru
        _
      %p862 = scmp.eq.s32.totalorder %s27, 1
      // Predicated region
      $region69: #{bottleneck_forward.1} parent=63 // pred_check
        %p863 = pneg %p862
      $region70: #{bottleneck_forward.1} parent=63 // pred_check_branch
        %865 = sbr.rel (%p863) target = $region72
      $region71: #{bottleneck_forward.1} parent=63 // pred_region
        %s866 = scalar_lea.vmem [#allocation2], 216
        %867 = vst [vmem:[%s866 + $0x8] sm:$0xf] 0
        %868 = vst [vmem:[%s866 + $0xc] sm:$0xf] 0
      $region72: #{bottleneck_forward.1} parent=63 // pred_fallthru
        _
      %v869 = vld [vmem:[#allocation2 + $0x4] sm:$0x8]
      %v870 = vld [vmem:[#allocation2 + $0x8] sm:$0xf]
      %v871 = vld [vmem:[#allocation2 + $0xc] sm:$0xf]
      %v872 = vld [vmem:[#allocation2 + $0x1c] sm:$0x8]
      %v873 = vld [vmem:[#allocation2 + $0x20] sm:$0xf]
      %v874 = vld [vmem:[#allocation2 + $0x24] sm:$0xf]
      %v875 = vld [vmem:[#allocation2 + $0x34] sm:$0x8]
      %v876 = vld [vmem:[#allocation2 + $0x38] sm:$0xf]
      %v877 = vld [vmem:[#allocation2 + $0x3c] sm:$0xf]
      %v878 = vld [vmem:[#allocation2 + $0x4c] sm:$0x8]
      %v879 = vld [vmem:[#allocation2 + $0x50] sm:$0xf]
      %v880 = vld [vmem:[#allocation2 + $0x54] sm:$0xf]
      %v881 = vld [vmem:[#allocation2 + $0x64] sm:$0x8]
      %v882 = vld [vmem:[#allocation2 + $0x68] sm:$0xf]
      %v883 = vld [vmem:[#allocation2 + $0x6c] sm:$0xf]
      %v884 = vld [vmem:[#allocation2 + $0x7c] sm:$0x8]
      %v885 = vld [vmem:[#allocation2 + $0x80] sm:$0xf]
      %v886 = vld [vmem:[#allocation2 + $0x84] sm:$0xf]
      %v887 = vld [vmem:[#allocation2 + $0x94] sm:$0x8]
      %v888 = vld [vmem:[#allocation2 + $0x98] sm:$0xf]
      %v889 = vld [vmem:[#allocation2 + $0x9c] sm:$0xf]
      %v890 = vld [vmem:[#allocation2 + $0xac] sm:$0x8]
      %v891 = vld [vmem:[#allocation2 + $0xb0] sm:$0xf]
      %v892 = vld [vmem:[#allocation2 + $0xb4] sm:$0xf]
      %vm893 = vsmask.f32 256
      %vm894 = vsmask.f32 4368
      %vm895 = vmor %vm893, %vm894
      %v897 = vshrl.u32 %v869, 16
      %v899 = vrot.slane %v897, 7
      %v900 = vrot.slane %v899, 4
      %v902 = vshrl.u32 %v870, 16
      %v904 = vrot.slane %v902, 7
      %v905 = vshll.u32 %v870, 16
      %v907 = vor.u32 %v904, %v905
      %v908 = vsel %vm895, %v900, %v907
      %v909 = vrot.slane %v904, 4
      %v911 = vshrl.u32 %v871, 16
      %v913 = vrot.slane %v911, 7
      %v914 = vshll.u32 %v871, 16
      %v916 = vor.u32 %v913, %v914
      %v917 = vsel %vm895, %v909, %v916
      %v919 = vshrl.u32 %v872, 16
      %v921 = vrot.slane %v919, 7
      %v922 = vrot.slane %v921, 4
      %v924 = vshrl.u32 %v873, 16
      %v926 = vrot.slane %v924, 7
      %v927 = vshll.u32 %v873, 16
      %v929 = vor.u32 %v926, %v927
      %v930 = vsel %vm895, %v922, %v929
      %v931 = vrot.slane %v926, 4
      %v933 = vshrl.u32 %v874, 16
      %v935 = vrot.slane %v933, 7
      %v936 = vshll.u32 %v874, 16
      %v938 = vor.u32 %v935, %v936
      %v939 = vsel %vm895, %v931, %v938
      %v941 = vshrl.u32 %v875, 16
      %v943 = vrot.slane %v941, 7
      %v944 = vrot.slane %v943, 4
      %v946 = vshrl.u32 %v876, 16
      %v948 = vrot.slane %v946, 7
      %v949 = vshll.u32 %v876, 16
      %v951 = vor.u32 %v948, %v949
      %v952 = vsel %vm895, %v944, %v951
      %v953 = vrot.slane %v948, 4
      %v955 = vshrl.u32 %v877, 16
      %v957 = vrot.slane %v955, 7
      %v958 = vshll.u32 %v877, 16
      %v960 = vor.u32 %v957, %v958
      %v961 = vsel %vm895, %v953, %v960
      %v963 = vshrl.u32 %v878, 16
      %v965 = vrot.slane %v963, 7
      %v966 = vrot.slane %v965, 4
      %v968 = vshrl.u32 %v879, 16
      %v970 = vrot.slane %v968, 7
      %v971 = vshll.u32 %v879, 16
      %v973 = vor.u32 %v970, %v971
      %v974 = vsel %vm895, %v966, %v973
      %v975 = vrot.slane %v970, 4
      %v977 = vshrl.u32 %v880, 16
      %v979 = vrot.slane %v977, 7
      %v980 = vshll.u32 %v880, 16
      %v982 = vor.u32 %v979, %v980
      %v983 = vsel %vm895, %v975, %v982
      %v985 = vshrl.u32 %v881, 16
      %v987 = vrot.slane %v985, 7
      %v988 = vrot.slane %v987, 4
      %v990 = vshrl.u32 %v882, 16
      %v992 = vrot.slane %v990, 7
      %v993 = vshll.u32 %v882, 16
      %v995 = vor.u32 %v992, %v993
      %v996 = vsel %vm895, %v988, %v995
      %v997 = vrot.slane %v992, 4
      %v999 = vshrl.u32 %v883, 16
      %v1001 = vrot.slane %v999, 7
      %v1002 = vshll.u32 %v883, 16
      %v1004 = vor.u32 %v1001, %v1002
      %v1005 = vsel %vm895, %v997, %v1004
      %v1007 = vshrl.u32 %v884, 16
      %v1009 = vrot.slane %v1007, 7
      %v1010 = vrot.slane %v1009, 4
      %v1012 = vshrl.u32 %v885, 16
      %v1014 = vrot.slane %v1012, 7
      %v1015 = vshll.u32 %v885, 16
      %v1017 = vor.u32 %v1014, %v1015
      %v1018 = vsel %vm895, %v1010, %v1017
      %v1019 = vrot.slane %v1014, 4
      %v1021 = vshrl.u32 %v886, 16
      %v1023 = vrot.slane %v1021, 7
      %v1024 = vshll.u32 %v886, 16
      %v1026 = vor.u32 %v1023, %v1024
      %v1027 = vsel %vm895, %v1019, %v1026
      %v1029 = vshrl.u32 %v887, 16
      %v1031 = vrot.slane %v1029, 7
      %v1032 = vrot.slane %v1031, 4
      %v1034 = vshrl.u32 %v888, 16
      %v1036 = vrot.slane %v1034, 7
      %v1037 = vshll.u32 %v888, 16
      %v1039 = vor.u32 %v1036, %v1037
      %v1040 = vsel %vm895, %v1032, %v1039
      %v1041 = vrot.slane %v1036, 4
      %v1043 = vshrl.u32 %v889, 16
      %v1045 = vrot.slane %v1043, 7
      %v1046 = vshll.u32 %v889, 16
      %v1048 = vor.u32 %v1045, %v1046
      %v1049 = vsel %vm895, %v1041, %v1048
      %v1051 = vshrl.u32 %v890, 16
      %v1053 = vrot.slane %v1051, 7
      %v1054 = vrot.slane %v1053, 4
      %v1056 = vshrl.u32 %v891, 16
      %v1058 = vrot.slane %v1056, 7
      %v1059 = vshll.u32 %v891, 16
      %v1061 = vor.u32 %v1058, %v1059
      %v1062 = vsel %vm895, %v1054, %v1061
      %v1063 = vrot.slane %v1058, 4
      %v1065 = vshrl.u32 %v892, 16
      %v1067 = vrot.slane %v1065, 7
      %v1068 = vshll.u32 %v892, 16
      %v1070 = vor.u32 %v1067, %v1068
      %v1071 = vsel %vm895, %v1063, %v1070
      %v1072 = vld [vmem:[%s7] sm:$0xf]
      %v1073 = vld [vmem:[%s7 + $0x4] sm:$0xf]
      %v1074 = vld [vmem:[%s7 + $0x8] sm:$0xf]
      %v1075 = vld [vmem:[%s7 + $0xc] sm:$0xf]
      %v1076 = vld [vmem:[%s7 + $0x10] sm:$0xf]
      %v1077 = vld [vmem:[%s7 + $0x14] sm:$0xf]
      %v1078 = vld [vmem:[%s7 + $0x18] sm:$0xf]
      %v1079 = vld [vmem:[%s7 + $0x1c] sm:$0xf]
      %v1080 = vld [vmem:[%s7 + $0x20] sm:$0xf]
      %v1081 = vld [vmem:[%s7 + $0x24] sm:$0xf]
      %v1082 = vld [vmem:[%s7 + $0x28] sm:$0xf]
      %v1083 = vld [vmem:[%s7 + $0x2c] sm:$0xf]
      %v1084 = vld [vmem:[%s7 + $0x30] sm:$0xf]
      %v1085 = vld [vmem:[%s7 + $0x34] sm:$0xf]
      %v1086 = vld [vmem:[%s7 + $0x38] sm:$0xf]
      %v1087 = vld [vmem:[%s7 + $0x3c] sm:$0xf]
      %v1088 = vld [vmem:[%s7 + $0x40] sm:$0xf]
      %v1089 = vld [vmem:[%s7 + $0x44] sm:$0xf]
      %v1090 = vld [vmem:[%s7 + $0x48] sm:$0xf]
      %v1091 = vld [vmem:[%s7 + $0x4c] sm:$0xf]
      %v1092 = vld [vmem:[%s7 + $0x50] sm:$0xf]
      %v1093 = vld [vmem:[%s7 + $0x54] sm:$0xf]
      %v1094 = vld [vmem:[%s7 + $0x58] sm:$0xf]
      %v1095 = vld [vmem:[%s7 + $0x5c] sm:$0xf]
      %v1096 = vld [vmem:[%s7 + $0x60] sm:$0xf]
      %v1097 = vld [vmem:[%s7 + $0x64] sm:$0xf]
      %v1098 = vld [vmem:[%s7 + $0x68] sm:$0xf]
      %v1099 = vld [vmem:[%s7 + $0x6c] sm:$0xf]
      %v1100 = vld [vmem:[%s7 + $0x70] sm:$0xf]
      %v1101 = vld [vmem:[%s7 + $0x74] sm:$0xf]
      %v1102 = vld [vmem:[%s7 + $0x78] sm:$0xf]
      %v1103 = vld [vmem:[%s7 + $0x7c] sm:$0xf]
      %v1120 = vunpack.c.l.b16 %v870
      %v1121 = vunpack.c.l.b16 %v871
      %v1122 = vunpack.c.l.b16 %v873
      %v1123 = vunpack.c.l.b16 %v874
      %v1124 = vunpack.c.l.b16 %v876
      %v1125 = vunpack.c.l.b16 %v877
      %v1126 = vunpack.c.l.b16 %v879
      %v1127 = vunpack.c.l.b16 %v880
      %v1128 = vunpack.c.l.b16 %v882
      %v1129 = vunpack.c.l.b16 %v883
      %v1130 = vunpack.c.l.b16 %v885
      %v1131 = vunpack.c.l.b16 %v886
      %v1132 = vunpack.c.l.b16 %v888
      %v1133 = vunpack.c.l.b16 %v889
      %v1134 = vunpack.c.l.b16 %v891
      %v1135 = vunpack.c.l.b16 %v892
      %v1136 = vpack.c.b16 %v1121, %v1120
      %v1137 = vpack.c.b16 %v1123, %v1122
      %v1138 = vpack.c.b16 %v1125, %v1124
      %v1139 = vpack.c.b16 %v1127, %v1126
      %v1140 = vpack.c.b16 %v1129, %v1128
      %v1141 = vpack.c.b16 %v1131, %v1130
      %v1142 = vpack.c.b16 %v1133, %v1132
      %v1143 = vpack.c.b16 %v1135, %v1134
      %v1168 = vunpack.c.l.b16 %v1088
      %v1169 = vunpack.c.l.b16 %v1089
      %v1170 = vunpack.c.l.b16 %v1090
      %v1171 = vunpack.c.l.b16 %v1091
      %v1172 = vunpack.c.l.b16 %v1092
      %v1173 = vunpack.c.l.b16 %v1093
      %v1174 = vunpack.c.l.b16 %v1094
      %v1175 = vunpack.c.l.b16 %v1095
      %v1176 = vunpack.c.l.b16 %v1096
      %v1177 = vunpack.c.l.b16 %v1097
      %v1178 = vunpack.c.l.b16 %v1098
      %v1179 = vunpack.c.l.b16 %v1099
      %v1180 = vunpack.c.l.b16 %v1100
      %v1181 = vunpack.c.l.b16 %v1101
      %v1182 = vunpack.c.l.b16 %v1102
      %v1183 = vunpack.c.l.b16 %v1103
      %v1184 = vpack.c.b16 %v1169, %v1168
      %v1185 = vpack.c.b16 %v1171, %v1170
      %v1186 = vpack.c.b16 %v1173, %v1172
      %v1187 = vpack.c.b16 %v1175, %v1174
      %v1188 = vpack.c.b16 %v1177, %v1176
      %v1189 = vpack.c.b16 %v1179, %v1178
      %v1190 = vpack.c.b16 %v1181, %v1180
      %v1191 = vpack.c.b16 %v1183, %v1182
      %1200 = vmatpush.bf16.msra.mxu0 %v1191
      %1201 = vmatpush.bf16.msra.mxu0 %v1190
      %1202 = vmatpush.bf16.msra.mxu0 %v1189
      %1203 = vmatpush.bf16.msra.mxu0 %v1188
      %1204 = vmatpush.bf16.msra.mxu0 %v1187
      %1205 = vmatpush.bf16.msra.mxu0 %v1186
      %1206 = vmatpush.bf16.msra.mxu0 %v1185
      %1207 = vmatpush.bf16.msra.mxu0 %v1184
      %1208 = vmatmul.bf16.gmra.mxu0 %v1136
      %v1209 = vpop.f32.mrf.mxu0
      %v1210 = vadd.f32 0.0, %v1209
      %v1211 = vpop.f32.mrf.mxu0
      %v1212 = vadd.f32 0.0, %v1211
      %1213 = vmatmul.bf16.gmra.mxu0 %v1137
      %v1214 = vpop.f32.mrf.mxu0
      %v1215 = vadd.f32 0.0, %v1214
      %v1216 = vpop.f32.mrf.mxu0
      %v1217 = vadd.f32 0.0, %v1216
      %1218 = vmatmul.bf16.gmra.mxu0 %v1138
      %v1219 = vpop.f32.mrf.mxu0
      %v1220 = vadd.f32 0.0, %v1219
      %v1221 = vpop.f32.mrf.mxu0
      %v1222 = vadd.f32 0.0, %v1221
      %1223 = vmatmul.bf16.gmra.mxu0 %v1139
      %v1224 = vpop.f32.mrf.mxu0
      %v1225 = vadd.f32 0.0, %v1224
      %v1226 = vpop.f32.mrf.mxu0
      %v1227 = vadd.f32 0.0, %v1226
      %1228 = vmatmul.bf16.gmra.mxu0 %v1140
      %v1229 = vpop.f32.mrf.mxu0
      %v1230 = vadd.f32 0.0, %v1229
      %v1231 = vpop.f32.mrf.mxu0
      %v1232 = vadd.f32 0.0, %v1231
      %1233 = vmatmul.bf16.gmra.mxu0 %v1141
      %v1234 = vpop.f32.mrf.mxu0
      %v1235 = vadd.f32 0.0, %v1234
      %v1236 = vpop.f32.mrf.mxu0
      %v1237 = vadd.f32 0.0, %v1236
      %1238 = vmatmul.bf16.gmra.mxu0 %v1142
      %v1239 = vpop.f32.mrf.mxu0
      %v1240 = vadd.f32 0.0, %v1239
      %v1241 = vpop.f32.mrf.mxu0
      %v1242 = vadd.f32 0.0, %v1241
      %1243 = vmatmul.bf16.gmra.mxu0 %v1143
      %v1244 = vpop.f32.mrf.mxu0
      %v1245 = vadd.f32 0.0, %v1244
      %v1246 = vpop.f32.mrf.mxu0
      %v1247 = vadd.f32 0.0, %v1246
      %1248 = vdwg.mxu0
      %v1249 = vunpack.c.l.b16 %v908
      %v1250 = vunpack.c.l.b16 %v917
      %v1251 = vunpack.c.l.b16 %v930
      %v1252 = vunpack.c.l.b16 %v939
      %v1253 = vunpack.c.l.b16 %v952
      %v1254 = vunpack.c.l.b16 %v961
      %v1255 = vunpack.c.l.b16 %v974
      %v1256 = vunpack.c.l.b16 %v983
      %v1257 = vunpack.c.l.b16 %v996
      %v1258 = vunpack.c.l.b16 %v1005
      %v1259 = vunpack.c.l.b16 %v1018
      %v1260 = vunpack.c.l.b16 %v1027
      %v1261 = vunpack.c.l.b16 %v1040
      %v1262 = vunpack.c.l.b16 %v1049
      %v1263 = vunpack.c.l.b16 %v1062
      %v1264 = vunpack.c.l.b16 %v1071
      %v1265 = vpack.c.b16 %v1250, %v1249
      %v1266 = vpack.c.b16 %v1252, %v1251
      %v1267 = vpack.c.b16 %v1254, %v1253
      %v1268 = vpack.c.b16 %v1256, %v1255
      %v1269 = vpack.c.b16 %v1258, %v1257
      %v1270 = vpack.c.b16 %v1260, %v1259
      %v1271 = vpack.c.b16 %v1262, %v1261
      %v1272 = vpack.c.b16 %v1264, %v1263
      %v1297 = vunpack.c.l.b16 %v1072
      %v1298 = vunpack.c.l.b16 %v1073
      %v1299 = vunpack.c.l.b16 %v1074
      %v1300 = vunpack.c.l.b16 %v1075
      %v1301 = vunpack.c.l.b16 %v1076
      %v1302 = vunpack.c.l.b16 %v1077
      %v1303 = vunpack.c.l.b16 %v1078
      %v1304 = vunpack.c.l.b16 %v1079
      %v1305 = vunpack.c.l.b16 %v1080
      %v1306 = vunpack.c.l.b16 %v1081
      %v1307 = vunpack.c.l.b16 %v1082
      %v1308 = vunpack.c.l.b16 %v1083
      %v1309 = vunpack.c.l.b16 %v1084
      %v1310 = vunpack.c.l.b16 %v1085
      %v1311 = vunpack.c.l.b16 %v1086
      %v1312 = vunpack.c.l.b16 %v1087
      %v1313 = vpack.c.b16 %v1298, %v1297
      %v1314 = vpack.c.b16 %v1300, %v1299
      %v1315 = vpack.c.b16 %v1302, %v1301
      %v1316 = vpack.c.b16 %v1304, %v1303
      %v1317 = vpack.c.b16 %v1306, %v1305
      %v1318 = vpack.c.b16 %v1308, %v1307
      %v1319 = vpack.c.b16 %v1310, %v1309
      %v1320 = vpack.c.b16 %v1312, %v1311
      %1329 = vmatpush.bf16.msra.mxu0 %v1320
      %1330 = vmatpush.bf16.msra.mxu0 %v1319
      %1331 = vmatpush.bf16.msra.mxu0 %v1318
      %1332 = vmatpush.bf16.msra.mxu0 %v1317
      %1333 = vmatpush.bf16.msra.mxu0 %v1316
      %1334 = vmatpush.bf16.msra.mxu0 %v1315
      %1335 = vmatpush.bf16.msra.mxu0 %v1314
      %1336 = vmatpush.bf16.msra.mxu0 %v1313
      %1337 = vmatmul.bf16.gmra.mxu0 %v1265
      %v1338 = vpop.f32.mrf.mxu0
      %v1339 = vadd.f32 %v1210, %v1338
      %v1340 = vpop.f32.mrf.mxu0
      %v1341 = vadd.f32 %v1212, %v1340
      %1342 = vmatmul.bf16.gmra.mxu0 %v1266
      %v1343 = vpop.f32.mrf.mxu0
      %v1344 = vadd.f32 %v1215, %v1343
      %v1345 = vpop.f32.mrf.mxu0
      %v1346 = vadd.f32 %v1217, %v1345
      %1347 = vmatmul.bf16.gmra.mxu0 %v1267
      %v1348 = vpop.f32.mrf.mxu0
      %v1349 = vadd.f32 %v1220, %v1348
      %v1350 = vpop.f32.mrf.mxu0
      %v1351 = vadd.f32 %v1222, %v1350
      %1352 = vmatmul.bf16.gmra.mxu0 %v1268
      %v1353 = vpop.f32.mrf.mxu0
      %v1354 = vadd.f32 %v1225, %v1353
      %v1355 = vpop.f32.mrf.mxu0
      %v1356 = vadd.f32 %v1227, %v1355
      %1357 = vmatmul.bf16.gmra.mxu0 %v1269
      %v1358 = vpop.f32.mrf.mxu0
      %v1359 = vadd.f32 %v1230, %v1358
      %v1360 = vpop.f32.mrf.mxu0
      %v1361 = vadd.f32 %v1232, %v1360
      %1362 = vmatmul.bf16.gmra.mxu0 %v1270
      %v1363 = vpop.f32.mrf.mxu0
      %v1364 = vadd.f32 %v1235, %v1363
      %v1365 = vpop.f32.mrf.mxu0
      %v1366 = vadd.f32 %v1237, %v1365
      %1367 = vmatmul.bf16.gmra.mxu0 %v1271
      %v1368 = vpop.f32.mrf.mxu0
      %v1369 = vadd.f32 %v1240, %v1368
      %v1370 = vpop.f32.mrf.mxu0
      %v1371 = vadd.f32 %v1242, %v1370
      %1372 = vmatmul.bf16.gmra.mxu0 %v1272
      %v1373 = vpop.f32.mrf.mxu0
      %v1374 = vadd.f32 %v1245, %v1373
      %v1375 = vpop.f32.mrf.mxu0
      %v1376 = vadd.f32 %v1247, %v1375
      %1377 = vdwg.mxu0
      %v1378 = vld [vmem:[#allocation2 + $0x8] sm:$0xf]
      %v1379 = vld [vmem:[#allocation2 + $0xc] sm:$0xf]
      %v1380 = vld [vmem:[#allocation2 + $0x10] sm:$0x1]
      %v1381 = vld [vmem:[#allocation2 + $0x20] sm:$0xf]
      %v1382 = vld [vmem:[#allocation2 + $0x24] sm:$0xf]
      %v1383 = vld [vmem:[#allocation2 + $0x28] sm:$0x1]
      %v1384 = vld [vmem:[#allocation2 + $0x38] sm:$0xf]
      %v1385 = vld [vmem:[#allocation2 + $0x3c] sm:$0xf]
      %v1386 = vld [vmem:[#allocation2 + $0x40] sm:$0x1]
      %v1387 = vld [vmem:[#allocation2 + $0x50] sm:$0xf]
      %v1388 = vld [vmem:[#allocation2 + $0x54] sm:$0xf]
      %v1389 = vld [vmem:[#allocation2 + $0x58] sm:$0x1]
      %v1390 = vld [vmem:[#allocation2 + $0x68] sm:$0xf]
      %v1391 = vld [vmem:[#allocation2 + $0x6c] sm:$0xf]
      %v1392 = vld [vmem:[#allocation2 + $0x70] sm:$0x1]
      %v1393 = vld [vmem:[#allocation2 + $0x80] sm:$0xf]
      %v1394 = vld [vmem:[#allocation2 + $0x84] sm:$0xf]
      %v1395 = vld [vmem:[#allocation2 + $0x88] sm:$0x1]
      %v1396 = vld [vmem:[#allocation2 + $0x98] sm:$0xf]
      %v1397 = vld [vmem:[#allocation2 + $0x9c] sm:$0xf]
      %v1398 = vld [vmem:[#allocation2 + $0xa0] sm:$0x1]
      %v1399 = vld [vmem:[#allocation2 + $0xb0] sm:$0xf]
      %v1400 = vld [vmem:[#allocation2 + $0xb4] sm:$0xf]
      %v1401 = vld [vmem:[#allocation2 + $0xb8] sm:$0x1]
      %vm1402 = vsmask.f32 3328
      %vm1403 = vsmask.f32 7440
      %vm1404 = vmor %vm1402, %vm1403
      %v1406 = vshrl.u32 %v1378, 16
      %v1408 = vrot.slane %v1406, 4
      %v1409 = vshll.u32 %v1378, 16
      %v1411 = vrot.slane %v1409, 5
      %v1412 = vor.u32 %v1408, %v1411
      %v1413 = vrot.slane %v1412, 4
      %v1415 = vshll.u32 %v1379, 16
      %v1417 = vrot.slane %v1415, 5
      %v1418 = vsel %vm1404, %v1413, %v1417
      %v1419 = vshrl.u32 %v1379, 16
      %v1421 = vrot.slane %v1419, 4
      %v1422 = vor.u32 %v1421, %v1417
      %v1423 = vrot.slane %v1422, 4
      %v1425 = vshll.u32 %v1380, 16
      %v1427 = vrot.slane %v1425, 5
      %v1428 = vsel %vm1404, %v1423, %v1427
      %v1430 = vshrl.u32 %v1381, 16
      %v1432 = vrot.slane %v1430, 4
      %v1433 = vshll.u32 %v1381, 16
      %v1435 = vrot.slane %v1433, 5
      %v1436 = vor.u32 %v1432, %v1435
      %v1437 = vrot.slane %v1436, 4
      %v1439 = vshll.u32 %v1382, 16
      %v1441 = vrot.slane %v1439, 5
      %v1442 = vsel %vm1404, %v1437, %v1441
      %v1443 = vshrl.u32 %v1382, 16
      %v1445 = vrot.slane %v1443, 4
      %v1446 = vor.u32 %v1445, %v1441
      %v1447 = vrot.slane %v1446, 4
      %v1449 = vshll.u32 %v1383, 16
      %v1451 = vrot.slane %v1449, 5
      %v1452 = vsel %vm1404, %v1447, %v1451
      %v1454 = vshrl.u32 %v1384, 16
      %v1456 = vrot.slane %v1454, 4
      %v1457 = vshll.u32 %v1384, 16
      %v1459 = vrot.slane %v1457, 5
      %v1460 = vor.u32 %v1456, %v1459
      %v1461 = vrot.slane %v1460, 4
      %v1463 = vshll.u32 %v1385, 16
      %v1465 = vrot.slane %v1463, 5
      %v1466 = vsel %vm1404, %v1461, %v1465
      %v1467 = vshrl.u32 %v1385, 16
      %v1469 = vrot.slane %v1467, 4
      %v1470 = vor.u32 %v1469, %v1465
      %v1471 = vrot.slane %v1470, 4
      %v1473 = vshll.u32 %v1386, 16
      %v1475 = vrot.slane %v1473, 5
      %v1476 = vsel %vm1404, %v1471, %v1475
      %v1478 = vshrl.u32 %v1387, 16
      %v1480 = vrot.slane %v1478, 4
      %v1481 = vshll.u32 %v1387, 16
      %v1483 = vrot.slane %v1481, 5
      %v1484 = vor.u32 %v1480, %v1483
      %v1485 = vrot.slane %v1484, 4
      %v1487 = vshll.u32 %v1388, 16
      %v1489 = vrot.slane %v1487, 5
      %v1490 = vsel %vm1404, %v1485, %v1489
      %v1491 = vshrl.u32 %v1388, 16
      %v1493 = vrot.slane %v1491, 4
      %v1494 = vor.u32 %v1493, %v1489
      %v1495 = vrot.slane %v1494, 4
      %v1497 = vshll.u32 %v1389, 16
      %v1499 = vrot.slane %v1497, 5
      %v1500 = vsel %vm1404, %v1495, %v1499
      %v1502 = vshrl.u32 %v1390, 16
      %v1504 = vrot.slane %v1502, 4
      %v1505 = vshll.u32 %v1390, 16
      %v1507 = vrot.slane %v1505, 5
      %v1508 = vor.u32 %v1504, %v1507
      %v1509 = vrot.slane %v1508, 4
      %v1511 = vshll.u32 %v1391, 16
      %v1513 = vrot.slane %v1511, 5
      %v1514 = vsel %vm1404, %v1509, %v1513
      %v1515 = vshrl.u32 %v1391, 16
      %v1517 = vrot.slane %v1515, 4
      %v1518 = vor.u32 %v1517, %v1513
      %v1519 = vrot.slane %v1518, 4
      %v1521 = vshll.u32 %v1392, 16
      %v1523 = vrot.slane %v1521, 5
      %v1524 = vsel %vm1404, %v1519, %v1523
      %v1526 = vshrl.u32 %v1393, 16
      %v1528 = vrot.slane %v1526, 4
      %v1529 = vshll.u32 %v1393, 16
      %v1531 = vrot.slane %v1529, 5
      %v1532 = vor.u32 %v1528, %v1531
      %v1533 = vrot.slane %v1532, 4
      %v1535 = vshll.u32 %v1394, 16
      %v1537 = vrot.slane %v1535, 5
      %v1538 = vsel %vm1404, %v1533, %v1537
      %v1539 = vshrl.u32 %v1394, 16
      %v1541 = vrot.slane %v1539, 4
      %v1542 = vor.u32 %v1541, %v1537
      %v1543 = vrot.slane %v1542, 4
      %v1545 = vshll.u32 %v1395, 16
      %v1547 = vrot.slane %v1545, 5
      %v1548 = vsel %vm1404, %v1543, %v1547
      %v1550 = vshrl.u32 %v1396, 16
      %v1552 = vrot.slane %v1550, 4
      %v1553 = vshll.u32 %v1396, 16
      %v1555 = vrot.slane %v1553, 5
      %v1556 = vor.u32 %v1552, %v1555
      %v1557 = vrot.slane %v1556, 4
      %v1559 = vshll.u32 %v1397, 16
      %v1561 = vrot.slane %v1559, 5
      %v1562 = vsel %vm1404, %v1557, %v1561
      %v1563 = vshrl.u32 %v1397, 16
      %v1565 = vrot.slane %v1563, 4
      %v1566 = vor.u32 %v1565, %v1561
      %v1567 = vrot.slane %v1566, 4
      %v1569 = vshll.u32 %v1398, 16
      %v1571 = vrot.slane %v1569, 5
      %v1572 = vsel %vm1404, %v1567, %v1571
      %v1574 = vshrl.u32 %v1399, 16
      %v1576 = vrot.slane %v1574, 4
      %v1577 = vshll.u32 %v1399, 16
      %v1579 = vrot.slane %v1577, 5
      %v1580 = vor.u32 %v1576, %v1579
      %v1581 = vrot.slane %v1580, 4
      %v1583 = vshll.u32 %v1400, 16
      %v1585 = vrot.slane %v1583, 5
      %v1586 = vsel %vm1404, %v1581, %v1585
      %v1587 = vshrl.u32 %v1400, 16
      %v1589 = vrot.slane %v1587, 4
      %v1590 = vor.u32 %v1589, %v1585
      %v1591 = vrot.slane %v1590, 4
      %v1593 = vshll.u32 %v1401, 16
      %v1595 = vrot.slane %v1593, 5
      %v1596 = vsel %vm1404, %v1591, %v1595
      %v1597 = vld [vmem:[%s7 + $0x80] sm:$0xf]
      %v1598 = vld [vmem:[%s7 + $0x84] sm:$0xf]
      %v1599 = vld [vmem:[%s7 + $0x88] sm:$0xf]
      %v1600 = vld [vmem:[%s7 + $0x8c] sm:$0xf]
      %v1601 = vld [vmem:[%s7 + $0x90] sm:$0xf]
      %v1602 = vld [vmem:[%s7 + $0x94] sm:$0xf]
      %v1603 = vld [vmem:[%s7 + $0x98] sm:$0xf]
      %v1604 = vld [vmem:[%s7 + $0x9c] sm:$0xf]
      %v1605 = vld [vmem:[%s7 + $0xa0] sm:$0xf]
      %v1606 = vld [vmem:[%s7 + $0xa4] sm:$0xf]
      %v1607 = vld [vmem:[%s7 + $0xa8] sm:$0xf]
      %v1608 = vld [vmem:[%s7 + $0xac] sm:$0xf]
      %v1609 = vld [vmem:[%s7 + $0xb0] sm:$0xf]
      %v1610 = vld [vmem:[%s7 + $0xb4] sm:$0xf]
      %v1611 = vld [vmem:[%s7 + $0xb8] sm:$0xf]
      %v1612 = vld [vmem:[%s7 + $0xbc] sm:$0xf]
      %v1613 = vunpack.c.l.b16 %v1418
      %v1614 = vunpack.c.l.b16 %v1428
      %v1615 = vunpack.c.l.b16 %v1442
      %v1616 = vunpack.c.l.b16 %v1452
      %v1617 = vunpack.c.l.b16 %v1466
      %v1618 = vunpack.c.l.b16 %v1476
      %v1619 = vunpack.c.l.b16 %v1490
      %v1620 = vunpack.c.l.b16 %v1500
      %v1621 = vunpack.c.l.b16 %v1514
      %v1622 = vunpack.c.l.b16 %v1524
      %v1623 = vunpack.c.l.b16 %v1538
      %v1624 = vunpack.c.l.b16 %v1548
      %v1625 = vunpack.c.l.b16 %v1562
      %v1626 = vunpack.c.l.b16 %v1572
      %v1627 = vunpack.c.l.b16 %v1586
      %v1628 = vunpack.c.l.b16 %v1596
      %v1629 = vpack.c.b16 %v1614, %v1613
      %v1630 = vpack.c.b16 %v1616, %v1615
      %v1631 = vpack.c.b16 %v1618, %v1617
      %v1632 = vpack.c.b16 %v1620, %v1619
      %v1633 = vpack.c.b16 %v1622, %v1621
      %v1634 = vpack.c.b16 %v1624, %v1623
      %v1635 = vpack.c.b16 %v1626, %v1625
      %v1636 = vpack.c.b16 %v1628, %v1627
      %v1661 = vunpack.c.l.b16 %v1597
      %v1662 = vunpack.c.l.b16 %v1598
      %v1663 = vunpack.c.l.b16 %v1599
      %v1664 = vunpack.c.l.b16 %v1600
      %v1665 = vunpack.c.l.b16 %v1601
      %v1666 = vunpack.c.l.b16 %v1602
      %v1667 = vunpack.c.l.b16 %v1603
      %v1668 = vunpack.c.l.b16 %v1604
      %v1669 = vunpack.c.l.b16 %v1605
      %v1670 = vunpack.c.l.b16 %v1606
      %v1671 = vunpack.c.l.b16 %v1607
      %v1672 = vunpack.c.l.b16 %v1608
      %v1673 = vunpack.c.l.b16 %v1609
      %v1674 = vunpack.c.l.b16 %v1610
      %v1675 = vunpack.c.l.b16 %v1611
      %v1676 = vunpack.c.l.b16 %v1612
      %v1677 = vpack.c.b16 %v1662, %v1661
      %v1678 = vpack.c.b16 %v1664, %v1663
      %v1679 = vpack.c.b16 %v1666, %v1665
      %v1680 = vpack.c.b16 %v1668, %v1667
      %v1681 = vpack.c.b16 %v1670, %v1669
      %v1682 = vpack.c.b16 %v1672, %v1671
      %v1683 = vpack.c.b16 %v1674, %v1673
      %v1684 = vpack.c.b16 %v1676, %v1675
      %1693 = vmatpush.bf16.msra.mxu0 %v1684
      %1694 = vmatpush.bf16.msra.mxu0 %v1683
      %1695 = vmatpush.bf16.msra.mxu0 %v1682
      %1696 = vmatpush.bf16.msra.mxu0 %v1681
      %1697 = vmatpush.bf16.msra.mxu0 %v1680
      %1698 = vmatpush.bf16.msra.mxu0 %v1679
      %1699 = vmatpush.bf16.msra.mxu0 %v1678
      %1700 = vmatpush.bf16.msra.mxu0 %v1677
      %1701 = vmatmul.bf16.gmra.mxu0 %v1629
      %v1702 = vpop.f32.mrf.mxu0
      %v1703 = vadd.f32 0.0, %v1702
      %v1704 = vpop.f32.mrf.mxu0
      %v1705 = vadd.f32 0.0, %v1704
      %1706 = vmatmul.bf16.gmra.mxu0 %v1630
      %v1707 = vpop.f32.mrf.mxu0
      %v1708 = vadd.f32 0.0, %v1707
      %v1709 = vpop.f32.mrf.mxu0
      %v1710 = vadd.f32 0.0, %v1709
      %1711 = vmatmul.bf16.gmra.mxu0 %v1631
      %v1712 = vpop.f32.mrf.mxu0
      %v1713 = vadd.f32 0.0, %v1712
      %v1714 = vpop.f32.mrf.mxu0
      %v1715 = vadd.f32 0.0, %v1714
      %1716 = vmatmul.bf16.gmra.mxu0 %v1632
      %v1717 = vpop.f32.mrf.mxu0
      %v1718 = vadd.f32 0.0, %v1717
      %v1719 = vpop.f32.mrf.mxu0
      %v1720 = vadd.f32 0.0, %v1719
      %1721 = vmatmul.bf16.gmra.mxu0 %v1633
      %v1722 = vpop.f32.mrf.mxu0
      %v1723 = vadd.f32 0.0, %v1722
      %v1724 = vpop.f32.mrf.mxu0
      %v1725 = vadd.f32 0.0, %v1724
      %1726 = vmatmul.bf16.gmra.mxu0 %v1634
      %v1727 = vpop.f32.mrf.mxu0
      %v1728 = vadd.f32 0.0, %v1727
      %v1729 = vpop.f32.mrf.mxu0
      %v1730 = vadd.f32 0.0, %v1729
      %1731 = vmatmul.bf16.gmra.mxu0 %v1635
      %v1732 = vpop.f32.mrf.mxu0
      %v1733 = vadd.f32 0.0, %v1732
      %v1734 = vpop.f32.mrf.mxu0
      %v1735 = vadd.f32 0.0, %v1734
      %1736 = vmatmul.bf16.gmra.mxu0 %v1636
      %v1737 = vpop.f32.mrf.mxu0
      %v1738 = vadd.f32 0.0, %v1737
      %v1739 = vpop.f32.mrf.mxu0
      %v1740 = vadd.f32 0.0, %v1739
      %1741 = vdwg.mxu0
      %v1742 = vadd.f32 %v1339, %v1703
      %v1743 = vadd.f32 %v1341, %v1705
      %v1744 = vadd.f32 %v1344, %v1708
      %v1745 = vadd.f32 %v1346, %v1710
      %v1746 = vadd.f32 %v1349, %v1713
      %v1747 = vadd.f32 %v1351, %v1715
      %v1748 = vadd.f32 %v1354, %v1718
      %v1749 = vadd.f32 %v1356, %v1720
      %v1750 = vadd.f32 %v1359, %v1723
      %v1751 = vadd.f32 %v1361, %v1725
      %v1752 = vadd.f32 %v1364, %v1728
      %v1753 = vadd.f32 %v1366, %v1730
      %v1754 = vadd.f32 %v1369, %v1733
      %v1755 = vadd.f32 %v1371, %v1735
      %v1756 = vadd.f32 %v1374, %v1738
      %v1757 = vadd.f32 %v1376, %v1740
      %s1758 = scalar_lea.vmem [#allocation2], 24
      %v1759 = vld [vmem:[%s1758 + $0x4] sm:$0x8]
      %v1760 = vld [vmem:[%s1758 + $0x8] sm:$0xf]
      %v1761 = vld [vmem:[%s1758 + $0xc] sm:$0xf]
      %v1762 = vld [vmem:[%s1758 + $0x1c] sm:$0x8]
      %v1763 = vld [vmem:[%s1758 + $0x20] sm:$0xf]
      %v1764 = vld [vmem:[%s1758 + $0x24] sm:$0xf]
      %v1765 = vld [vmem:[%s1758 + $0x34] sm:$0x8]
      %v1766 = vld [vmem:[%s1758 + $0x38] sm:$0xf]
      %v1767 = vld [vmem:[%s1758 + $0x3c] sm:$0xf]
      %v1768 = vld [vmem:[%s1758 + $0x4c] sm:$0x8]
      %v1769 = vld [vmem:[%s1758 + $0x50] sm:$0xf]
      %v1770 = vld [vmem:[%s1758 + $0x54] sm:$0xf]
      %v1771 = vld [vmem:[%s1758 + $0x64] sm:$0x8]
      %v1772 = vld [vmem:[%s1758 + $0x68] sm:$0xf]
      %v1773 = vld [vmem:[%s1758 + $0x6c] sm:$0xf]
      %v1774 = vld [vmem:[%s1758 + $0x7c] sm:$0x8]
      %v1775 = vld [vmem:[%s1758 + $0x80] sm:$0xf]
      %v1776 = vld [vmem:[%s1758 + $0x84] sm:$0xf]
      %v1777 = vld [vmem:[%s1758 + $0x94] sm:$0x8]
      %v1778 = vld [vmem:[%s1758 + $0x98] sm:$0xf]
      %v1779 = vld [vmem:[%s1758 + $0x9c] sm:$0xf]
      %v1780 = vld [vmem:[%s1758 + $0xac] sm:$0x8]
      %v1781 = vld [vmem:[%s1758 + $0xb0] sm:$0xf]
      %v1782 = vld [vmem:[%s1758 + $0xb4] sm:$0xf]
      %v1784 = vshrl.u32 %v1759, 16
      %v1786 = vrot.slane %v1784, 7
      %v1787 = vrot.slane %v1786, 4
      %v1789 = vshrl.u32 %v1760, 16
      %v1791 = vrot.slane %v1789, 7
      %v1792 = vshll.u32 %v1760, 16
      %v1794 = vor.u32 %v1791, %v1792
      %v1795 = vsel %vm895, %v1787, %v1794
      %v1796 = vrot.slane %v1791, 4
      %v1798 = vshrl.u32 %v1761, 16
      %v1800 = vrot.slane %v1798, 7
      %v1801 = vshll.u32 %v1761, 16
      %v1803 = vor.u32 %v1800, %v1801
      %v1804 = vsel %vm895, %v1796, %v1803
      %v1806 = vshrl.u32 %v1762, 16
      %v1808 = vrot.slane %v1806, 7
      %v1809 = vrot.slane %v1808, 4
      %v1811 = vshrl.u32 %v1763, 16
      %v1813 = vrot.slane %v1811, 7
      %v1814 = vshll.u32 %v1763, 16
      %v1816 = vor.u32 %v1813, %v1814
      %v1817 = vsel %vm895, %v1809, %v1816
      %v1818 = vrot.slane %v1813, 4
      %v1820 = vshrl.u32 %v1764, 16
      %v1822 = vrot.slane %v1820, 7
      %v1823 = vshll.u32 %v1764, 16
      %v1825 = vor.u32 %v1822, %v1823
      %v1826 = vsel %vm895, %v1818, %v1825
      %v1828 = vshrl.u32 %v1765, 16
      %v1830 = vrot.slane %v1828, 7
      %v1831 = vrot.slane %v1830, 4
      %v1833 = vshrl.u32 %v1766, 16
      %v1835 = vrot.slane %v1833, 7
      %v1836 = vshll.u32 %v1766, 16
      %v1838 = vor.u32 %v1835, %v1836
      %v1839 = vsel %vm895, %v1831, %v1838
      %v1840 = vrot.slane %v1835, 4
      %v1842 = vshrl.u32 %v1767, 16
      %v1844 = vrot.slane %v1842, 7
      %v1845 = vshll.u32 %v1767, 16
      %v1847 = vor.u32 %v1844, %v1845
      %v1848 = vsel %vm895, %v1840, %v1847
      %v1850 = vshrl.u32 %v1768, 16
      %v1852 = vrot.slane %v1850, 7
      %v1853 = vrot.slane %v1852, 4
      %v1855 = vshrl.u32 %v1769, 16
      %v1857 = vrot.slane %v1855, 7
      %v1858 = vshll.u32 %v1769, 16
      %v1860 = vor.u32 %v1857, %v1858
      %v1861 = vsel %vm895, %v1853, %v1860
      %v1862 = vrot.slane %v1857, 4
      %v1864 = vshrl.u32 %v1770, 16
      %v1866 = vrot.slane %v1864, 7
      %v1867 = vshll.u32 %v1770, 16
      %v1869 = vor.u32 %v1866, %v1867
      %v1870 = vsel %vm895, %v1862, %v1869
      %v1872 = vshrl.u32 %v1771, 16
      %v1874 = vrot.slane %v1872, 7
      %v1875 = vrot.slane %v1874, 4
      %v1877 = vshrl.u32 %v1772, 16
      %v1879 = vrot.slane %v1877, 7
      %v1880 = vshll.u32 %v1772, 16
      %v1882 = vor.u32 %v1879, %v1880
      %v1883 = vsel %vm895, %v1875, %v1882
      %v1884 = vrot.slane %v1879, 4
      %v1886 = vshrl.u32 %v1773, 16
      %v1888 = vrot.slane %v1886, 7
      %v1889 = vshll.u32 %v1773, 16
      %v1891 = vor.u32 %v1888, %v1889
      %v1892 = vsel %vm895, %v1884, %v1891
      %v1894 = vshrl.u32 %v1774, 16
      %v1896 = vrot.slane %v1894, 7
      %v1897 = vrot.slane %v1896, 4
      %v1899 = vshrl.u32 %v1775, 16
      %v1901 = vrot.slane %v1899, 7
      %v1902 = vshll.u32 %v1775, 16
      %v1904 = vor.u32 %v1901, %v1902
      %v1905 = vsel %vm895, %v1897, %v1904
      %v1906 = vrot.slane %v1901, 4
      %v1908 = vshrl.u32 %v1776, 16
      %v1910 = vrot.slane %v1908, 7
      %v1911 = vshll.u32 %v1776, 16
      %v1913 = vor.u32 %v1910, %v1911
      %v1914 = vsel %vm895, %v1906, %v1913
      %v1916 = vshrl.u32 %v1777, 16
      %v1918 = vrot.slane %v1916, 7
      %v1919 = vrot.slane %v1918, 4
      %v1921 = vshrl.u32 %v1778, 16
      %v1923 = vrot.slane %v1921, 7
      %v1924 = vshll.u32 %v1778, 16
      %v1926 = vor.u32 %v1923, %v1924
      %v1927 = vsel %vm895, %v1919, %v1926
      %v1928 = vrot.slane %v1923, 4
      %v1930 = vshrl.u32 %v1779, 16
      %v1932 = vrot.slane %v1930, 7
      %v1933 = vshll.u32 %v1779, 16
      %v1935 = vor.u32 %v1932, %v1933
      %v1936 = vsel %vm895, %v1928, %v1935
      %v1938 = vshrl.u32 %v1780, 16
      %v1940 = vrot.slane %v1938, 7
      %v1941 = vrot.slane %v1940, 4
      %v1943 = vshrl.u32 %v1781, 16
      %v1945 = vrot.slane %v1943, 7
      %v1946 = vshll.u32 %v1781, 16
      %v1948 = vor.u32 %v1945, %v1946
      %v1949 = vsel %vm895, %v1941, %v1948
      %v1950 = vrot.slane %v1945, 4
      %v1952 = vshrl.u32 %v1782, 16
      %v1954 = vrot.slane %v1952, 7
      %v1955 = vshll.u32 %v1782, 16
      %v1957 = vor.u32 %v1954, %v1955
      %v1958 = vsel %vm895, %v1950, %v1957
      %v1959 = vld [vmem:[%s7 + $0xc0] sm:$0xf]
      %v1960 = vld [vmem:[%s7 + $0xc4] sm:$0xf]
      %v1961 = vld [vmem:[%s7 + $0xc8] sm:$0xf]
      %v1962 = vld [vmem:[%s7 + $0xcc] sm:$0xf]
      %v1963 = vld [vmem:[%s7 + $0xd0] sm:$0xf]
      %v1964 = vld [vmem:[%s7 + $0xd4] sm:$0xf]
      %v1965 = vld [vmem:[%s7 + $0xd8] sm:$0xf]
      %v1966 = vld [vmem:[%s7 + $0xdc] sm:$0xf]
      %v1967 = vld [vmem:[%s7 + $0xe0] sm:$0xf]
      %v1968 = vld [vmem:[%s7 + $0xe4] sm:$0xf]
      %v1969 = vld [vmem:[%s7 + $0xe8] sm:$0xf]
      %v1970 = vld [vmem:[%s7 + $0xec] sm:$0xf]
      %v1971 = vld [vmem:[%s7 + $0xf0] sm:$0xf]
      %v1972 = vld [vmem:[%s7 + $0xf4] sm:$0xf]
      %v1973 = vld [vmem:[%s7 + $0xf8] sm:$0xf]
      %v1974 = vld [vmem:[%s7 + $0xfc] sm:$0xf]
      %v1975 = vunpack.c.l.b16 %v1795
      %v1976 = vunpack.c.l.b16 %v1804
      %v1977 = vunpack.c.l.b16 %v1817
      %v1978 = vunpack.c.l.b16 %v1826
      %v1979 = vunpack.c.l.b16 %v1839
      %v1980 = vunpack.c.l.b16 %v1848
      %v1981 = vunpack.c.l.b16 %v1861
      %v1982 = vunpack.c.l.b16 %v1870
      %v1983 = vunpack.c.l.b16 %v1883
      %v1984 = vunpack.c.l.b16 %v1892
      %v1985 = vunpack.c.l.b16 %v1905
      %v1986 = vunpack.c.l.b16 %v1914
      %v1987 = vunpack.c.l.b16 %v1927
      %v1988 = vunpack.c.l.b16 %v1936
      %v1989 = vunpack.c.l.b16 %v1949
      %v1990 = vunpack.c.l.b16 %v1958
      %v1991 = vpack.c.b16 %v1976, %v1975
      %v1992 = vpack.c.b16 %v1978, %v1977
      %v1993 = vpack.c.b16 %v1980, %v1979
      %v1994 = vpack.c.b16 %v1982, %v1981
      %v1995 = vpack.c.b16 %v1984, %v1983
      %v1996 = vpack.c.b16 %v1986, %v1985
      %v1997 = vpack.c.b16 %v1988, %v1987
      %v1998 = vpack.c.b16 %v1990, %v1989
      %v2023 = vunpack.c.l.b16 %v1959
      %v2024 = vunpack.c.l.b16 %v1960
      %v2025 = vunpack.c.l.b16 %v1961
      %v2026 = vunpack.c.l.b16 %v1962
      %v2027 = vunpack.c.l.b16 %v1963
      %v2028 = vunpack.c.l.b16 %v1964
      %v2029 = vunpack.c.l.b16 %v1965
      %v2030 = vunpack.c.l.b16 %v1966
      %v2031 = vunpack.c.l.b16 %v1967
      %v2032 = vunpack.c.l.b16 %v1968
      %v2033 = vunpack.c.l.b16 %v1969
      %v2034 = vunpack.c.l.b16 %v1970
      %v2035 = vunpack.c.l.b16 %v1971
      %v2036 = vunpack.c.l.b16 %v1972
      %v2037 = vunpack.c.l.b16 %v1973
      %v2038 = vunpack.c.l.b16 %v1974
      %v2039 = vpack.c.b16 %v2024, %v2023
      %v2040 = vpack.c.b16 %v2026, %v2025
      %v2041 = vpack.c.b16 %v2028, %v2027
      %v2042 = vpack.c.b16 %v2030, %v2029
      %v2043 = vpack.c.b16 %v2032, %v2031
      %v2044 = vpack.c.b16 %v2034, %v2033
      %v2045 = vpack.c.b16 %v2036, %v2035
      %v2046 = vpack.c.b16 %v2038, %v2037
      %2055 = vmatpush.bf16.msra.mxu0 %v2046
      %2056 = vmatpush.bf16.msra.mxu0 %v2045
      %2057 = vmatpush.bf16.msra.mxu0 %v2044
      %2058 = vmatpush.bf16.msra.mxu0 %v2043
      %2059 = vmatpush.bf16.msra.mxu0 %v2042
      %2060 = vmatpush.bf16.msra.mxu0 %v2041
      %2061 = vmatpush.bf16.msra.mxu0 %v2040
      %2062 = vmatpush.bf16.msra.mxu0 %v2039
      %2063 = vmatmul.bf16.gmra.mxu0 %v1991
      %v2064 = vpop.f32.mrf.mxu0
      %v2065 = vadd.f32 0.0, %v2064
      %v2066 = vpop.f32.mrf.mxu0
      %v2067 = vadd.f32 0.0, %v2066
      %2068 = vmatmul.bf16.gmra.mxu0 %v1992
      %v2069 = vpop.f32.mrf.mxu0
      %v2070 = vadd.f32 0.0, %v2069
      %v2071 = vpop.f32.mrf.mxu0
      %v2072 = vadd.f32 0.0, %v2071
      %2073 = vmatmul.bf16.gmra.mxu0 %v1993
      %v2074 = vpop.f32.mrf.mxu0
      %v2075 = vadd.f32 0.0, %v2074
      %v2076 = vpop.f32.mrf.mxu0
      %v2077 = vadd.f32 0.0, %v2076
      %2078 = vmatmul.bf16.gmra.mxu0 %v1994
      %v2079 = vpop.f32.mrf.mxu0
      %v2080 = vadd.f32 0.0, %v2079
      %v2081 = vpop.f32.mrf.mxu0
      %v2082 = vadd.f32 0.0, %v2081
      %2083 = vmatmul.bf16.gmra.mxu0 %v1995
      %v2084 = vpop.f32.mrf.mxu0
      %v2085 = vadd.f32 0.0, %v2084
      %v2086 = vpop.f32.mrf.mxu0
      %v2087 = vadd.f32 0.0, %v2086
      %2088 = vmatmul.bf16.gmra.mxu0 %v1996
      %v2089 = vpop.f32.mrf.mxu0
      %v2090 = vadd.f32 0.0, %v2089
      %v2091 = vpop.f32.mrf.mxu0
      %v2092 = vadd.f32 0.0, %v2091
      %2093 = vmatmul.bf16.gmra.mxu0 %v1997
      %v2094 = vpop.f32.mrf.mxu0
      %v2095 = vadd.f32 0.0, %v2094
      %v2096 = vpop.f32.mrf.mxu0
      %v2097 = vadd.f32 0.0, %v2096
      %2098 = vmatmul.bf16.gmra.mxu0 %v1998
      %v2099 = vpop.f32.mrf.mxu0
      %v2100 = vadd.f32 0.0, %v2099
      %v2101 = vpop.f32.mrf.mxu0
      %v2102 = vadd.f32 0.0, %v2101
      %2103 = vdwg.mxu0
      %v2104 = vadd.f32 %v1742, %v2065
      %v2105 = vadd.f32 %v1743, %v2067
      %v2106 = vadd.f32 %v1744, %v2070
      %v2107 = vadd.f32 %v1745, %v2072
      %v2108 = vadd.f32 %v1746, %v2075
      %v2109 = vadd.f32 %v1747, %v2077
      %v2110 = vadd.f32 %v1748, %v2080
      %v2111 = vadd.f32 %v1749, %v2082
      %v2112 = vadd.f32 %v1750, %v2085
      %v2113 = vadd.f32 %v1751, %v2087
      %v2114 = vadd.f32 %v1752, %v2090
      %v2115 = vadd.f32 %v1753, %v2092
      %v2116 = vadd.f32 %v1754, %v2095
      %v2117 = vadd.f32 %v1755, %v2097
      %v2118 = vadd.f32 %v1756, %v2100
      %v2119 = vadd.f32 %v1757, %v2102
      %v2120 = vld [vmem:[%s7 + $0x100] sm:$0xf]
      %v2121 = vld [vmem:[%s7 + $0x104] sm:$0xf]
      %v2122 = vld [vmem:[%s7 + $0x108] sm:$0xf]
      %v2123 = vld [vmem:[%s7 + $0x10c] sm:$0xf]
      %v2124 = vld [vmem:[%s7 + $0x110] sm:$0xf]
      %v2125 = vld [vmem:[%s7 + $0x114] sm:$0xf]
      %v2126 = vld [vmem:[%s7 + $0x118] sm:$0xf]
      %v2127 = vld [vmem:[%s7 + $0x11c] sm:$0xf]
      %v2128 = vld [vmem:[%s7 + $0x120] sm:$0xf]
      %v2129 = vld [vmem:[%s7 + $0x124] sm:$0xf]
      %v2130 = vld [vmem:[%s7 + $0x128] sm:$0xf]
      %v2131 = vld [vmem:[%s7 + $0x12c] sm:$0xf]
      %v2132 = vld [vmem:[%s7 + $0x130] sm:$0xf]
      %v2133 = vld [vmem:[%s7 + $0x134] sm:$0xf]
      %v2134 = vld [vmem:[%s7 + $0x138] sm:$0xf]
      %v2135 = vld [vmem:[%s7 + $0x13c] sm:$0xf]
      %v2152 = vunpack.c.l.b16 %v1760
      %v2153 = vunpack.c.l.b16 %v1761
      %v2154 = vunpack.c.l.b16 %v1763
      %v2155 = vunpack.c.l.b16 %v1764
      %v2156 = vunpack.c.l.b16 %v1766
      %v2157 = vunpack.c.l.b16 %v1767
      %v2158 = vunpack.c.l.b16 %v1769
      %v2159 = vunpack.c.l.b16 %v1770
      %v2160 = vunpack.c.l.b16 %v1772
      %v2161 = vunpack.c.l.b16 %v1773
      %v2162 = vunpack.c.l.b16 %v1775
      %v2163 = vunpack.c.l.b16 %v1776
      %v2164 = vunpack.c.l.b16 %v1778
      %v2165 = vunpack.c.l.b16 %v1779
      %v2166 = vunpack.c.l.b16 %v1781
      %v2167 = vunpack.c.l.b16 %v1782
      %v2168 = vpack.c.b16 %v2153, %v2152
      %v2169 = vpack.c.b16 %v2155, %v2154
      %v2170 = vpack.c.b16 %v2157, %v2156
      %v2171 = vpack.c.b16 %v2159, %v2158
      %v2172 = vpack.c.b16 %v2161, %v2160
      %v2173 = vpack.c.b16 %v2163, %v2162
      %v2174 = vpack.c.b16 %v2165, %v2164
      %v2175 = vpack.c.b16 %v2167, %v2166
      %v2200 = vunpack.c.l.b16 %v2120
      %v2201 = vunpack.c.l.b16 %v2121
      %v2202 = vunpack.c.l.b16 %v2122
      %v2203 = vunpack.c.l.b16 %v2123
      %v2204 = vunpack.c.l.b16 %v2124
      %v2205 = vunpack.c.l.b16 %v2125
      %v2206 = vunpack.c.l.b16 %v2126
      %v2207 = vunpack.c.l.b16 %v2127
      %v2208 = vunpack.c.l.b16 %v2128
      %v2209 = vunpack.c.l.b16 %v2129
      %v2210 = vunpack.c.l.b16 %v2130
      %v2211 = vunpack.c.l.b16 %v2131
      %v2212 = vunpack.c.l.b16 %v2132
      %v2213 = vunpack.c.l.b16 %v2133
      %v2214 = vunpack.c.l.b16 %v2134
      %v2215 = vunpack.c.l.b16 %v2135
      %v2216 = vpack.c.b16 %v2201, %v2200
      %v2217 = vpack.c.b16 %v2203, %v2202
      %v2218 = vpack.c.b16 %v2205, %v2204
      %v2219 = vpack.c.b16 %v2207, %v2206
      %v2220 = vpack.c.b16 %v2209, %v2208
      %v2221 = vpack.c.b16 %v2211, %v2210
      %v2222 = vpack.c.b16 %v2213, %v2212
      %v2223 = vpack.c.b16 %v2215, %v2214
      %2232 = vmatpush.bf16.msra.mxu0 %v2223
      %2233 = vmatpush.bf16.msra.mxu0 %v2222
      %2234 = vmatpush.bf16.msra.mxu0 %v2221
      %2235 = vmatpush.bf16.msra.mxu0 %v2220
      %2236 = vmatpush.bf16.msra.mxu0 %v2219
      %2237 = vmatpush.bf16.msra.mxu0 %v2218
      %2238 = vmatpush.bf16.msra.mxu0 %v2217
      %2239 = vmatpush.bf16.msra.mxu0 %v2216
      %2240 = vmatmul.bf16.gmra.mxu0 %v2168
      %v2241 = vpop.f32.mrf.mxu0
      %v2242 = vadd.f32 0.0, %v2241
      %v2243 = vpop.f32.mrf.mxu0
      %v2244 = vadd.f32 0.0, %v2243
      %2245 = vmatmul.bf16.gmra.mxu0 %v2169
      %v2246 = vpop.f32.mrf.mxu0
      %v2247 = vadd.f32 0.0, %v2246
      %v2248 = vpop.f32.mrf.mxu0
      %v2249 = vadd.f32 0.0, %v2248
      %2250 = vmatmul.bf16.gmra.mxu0 %v2170
      %v2251 = vpop.f32.mrf.mxu0
      %v2252 = vadd.f32 0.0, %v2251
      %v2253 = vpop.f32.mrf.mxu0
      %v2254 = vadd.f32 0.0, %v2253
      %2255 = vmatmul.bf16.gmra.mxu0 %v2171
      %v2256 = vpop.f32.mrf.mxu0
      %v2257 = vadd.f32 0.0, %v2256
      %v2258 = vpop.f32.mrf.mxu0
      %v2259 = vadd.f32 0.0, %v2258
      %2260 = vmatmul.bf16.gmra.mxu0 %v2172
      %v2261 = vpop.f32.mrf.mxu0
      %v2262 = vadd.f32 0.0, %v2261
      %v2263 = vpop.f32.mrf.mxu0
      %v2264 = vadd.f32 0.0, %v2263
      %2265 = vmatmul.bf16.gmra.mxu0 %v2173
      %v2266 = vpop.f32.mrf.mxu0
      %v2267 = vadd.f32 0.0, %v2266
      %v2268 = vpop.f32.mrf.mxu0
      %v2269 = vadd.f32 0.0, %v2268
      %2270 = vmatmul.bf16.gmra.mxu0 %v2174
      %v2271 = vpop.f32.mrf.mxu0
      %v2272 = vadd.f32 0.0, %v2271
      %v2273 = vpop.f32.mrf.mxu0
      %v2274 = vadd.f32 0.0, %v2273
      %2275 = vmatmul.bf16.gmra.mxu0 %v2175
      %v2276 = vpop.f32.mrf.mxu0
      %v2277 = vadd.f32 0.0, %v2276
      %v2278 = vpop.f32.mrf.mxu0
      %v2279 = vadd.f32 0.0, %v2278
      %2280 = vdwg.mxu0
      %v2281 = vadd.f32 %v2104, %v2242
      %v2282 = vadd.f32 %v2105, %v2244
      %v2283 = vadd.f32 %v2106, %v2247
      %v2284 = vadd.f32 %v2107, %v2249
      %v2285 = vadd.f32 %v2108, %v2252
      %v2286 = vadd.f32 %v2109, %v2254
      %v2287 = vadd.f32 %v2110, %v2257
      %v2288 = vadd.f32 %v2111, %v2259
      %v2289 = vadd.f32 %v2112, %v2262
      %v2290 = vadd.f32 %v2113, %v2264
      %v2291 = vadd.f32 %v2114, %v2267
      %v2292 = vadd.f32 %v2115, %v2269
      %v2293 = vadd.f32 %v2116, %v2272
      %v2294 = vadd.f32 %v2117, %v2274
      %v2295 = vadd.f32 %v2118, %v2277
      %v2296 = vadd.f32 %v2119, %v2279
      %v2297 = vld [vmem:[%s1758 + $0x8] sm:$0xf]
      %v2298 = vld [vmem:[%s1758 + $0xc] sm:$0xf]
      %v2299 = vld [vmem:[%s1758 + $0x10] sm:$0x1]
      %v2300 = vld [vmem:[%s1758 + $0x20] sm:$0xf]
      %v2301 = vld [vmem:[%s1758 + $0x24] sm:$0xf]
      %v2302 = vld [vmem:[%s1758 + $0x28] sm:$0x1]
      %v2303 = vld [vmem:[%s1758 + $0x38] sm:$0xf]
      %v2304 = vld [vmem:[%s1758 + $0x3c] sm:$0xf]
      %v2305 = vld [vmem:[%s1758 + $0x40] sm:$0x1]
      %v2306 = vld [vmem:[%s1758 + $0x50] sm:$0xf]
      %v2307 = vld [vmem:[%s1758 + $0x54] sm:$0xf]
      %v2308 = vld [vmem:[%s1758 + $0x58] sm:$0x1]
      %v2309 = vld [vmem:[%s1758 + $0x68] sm:$0xf]
      %v2310 = vld [vmem:[%s1758 + $0x6c] sm:$0xf]
      %v2311 = vld [vmem:[%s1758 + $0x70] sm:$0x1]
      %v2312 = vld [vmem:[%s1758 + $0x80] sm:$0xf]
      %v2313 = vld [vmem:[%s1758 + $0x84] sm:$0xf]
      %v2314 = vld [vmem:[%s1758 + $0x88] sm:$0x1]
      %v2315 = vld [vmem:[%s1758 + $0x98] sm:$0xf]
      %v2316 = vld [vmem:[%s1758 + $0x9c] sm:$0xf]
      %v2317 = vld [vmem:[%s1758 + $0xa0] sm:$0x1]
      %v2318 = vld [vmem:[%s1758 + $0xb0] sm:$0xf]
      %v2319 = vld [vmem:[%s1758 + $0xb4] sm:$0xf]
      %v2320 = vld [vmem:[%s1758 + $0xb8] sm:$0x1]
      %v2322 = vshrl.u32 %v2297, 16
      %v2324 = vrot.slane %v2322, 4
      %v2325 = vshll.u32 %v2297, 16
      %v2327 = vrot.slane %v2325, 5
      %v2328 = vor.u32 %v2324, %v2327
      %v2329 = vrot.slane %v2328, 4
      %v2331 = vshll.u32 %v2298, 16
      %v2333 = vrot.slane %v2331, 5
      %v2334 = vsel %vm1404, %v2329, %v2333
      %v2335 = vshrl.u32 %v2298, 16
      %v2337 = vrot.slane %v2335, 4
      %v2338 = vor.u32 %v2337, %v2333
      %v2339 = vrot.slane %v2338, 4
      %v2341 = vshll.u32 %v2299, 16
      %v2343 = vrot.slane %v2341, 5
      %v2344 = vsel %vm1404, %v2339, %v2343
      %v2346 = vshrl.u32 %v2300, 16
      %v2348 = vrot.slane %v2346, 4
      %v2349 = vshll.u32 %v2300, 16
      %v2351 = vrot.slane %v2349, 5
      %v2352 = vor.u32 %v2348, %v2351
      %v2353 = vrot.slane %v2352, 4
      %v2355 = vshll.u32 %v2301, 16
      %v2357 = vrot.slane %v2355, 5
      %v2358 = vsel %vm1404, %v2353, %v2357
      %v2359 = vshrl.u32 %v2301, 16
      %v2361 = vrot.slane %v2359, 4
      %v2362 = vor.u32 %v2361, %v2357
      %v2363 = vrot.slane %v2362, 4
      %v2365 = vshll.u32 %v2302, 16
      %v2367 = vrot.slane %v2365, 5
      %v2368 = vsel %vm1404, %v2363, %v2367
      %v2370 = vshrl.u32 %v2303, 16
      %v2372 = vrot.slane %v2370, 4
      %v2373 = vshll.u32 %v2303, 16
      %v2375 = vrot.slane %v2373, 5
      %v2376 = vor.u32 %v2372, %v2375
      %v2377 = vrot.slane %v2376, 4
      %v2379 = vshll.u32 %v2304, 16
      %v2381 = vrot.slane %v2379, 5
      %v2382 = vsel %vm1404, %v2377, %v2381
      %v2383 = vshrl.u32 %v2304, 16
      %v2385 = vrot.slane %v2383, 4
      %v2386 = vor.u32 %v2385, %v2381
      %v2387 = vrot.slane %v2386, 4
      %v2389 = vshll.u32 %v2305, 16
      %v2391 = vrot.slane %v2389, 5
      %v2392 = vsel %vm1404, %v2387, %v2391
      %v2394 = vshrl.u32 %v2306, 16
      %v2396 = vrot.slane %v2394, 4
      %v2397 = vshll.u32 %v2306, 16
      %v2399 = vrot.slane %v2397, 5
      %v2400 = vor.u32 %v2396, %v2399
      %v2401 = vrot.slane %v2400, 4
      %v2403 = vshll.u32 %v2307, 16
      %v2405 = vrot.slane %v2403, 5
      %v2406 = vsel %vm1404, %v2401, %v2405
      %v2407 = vshrl.u32 %v2307, 16
      %v2409 = vrot.slane %v2407, 4
      %v2410 = vor.u32 %v2409, %v2405
      %v2411 = vrot.slane %v2410, 4
      %v2413 = vshll.u32 %v2308, 16
      %v2415 = vrot.slane %v2413, 5
      %v2416 = vsel %vm1404, %v2411, %v2415
      %v2418 = vshrl.u32 %v2309, 16
      %v2420 = vrot.slane %v2418, 4
      %v2421 = vshll.u32 %v2309, 16
      %v2423 = vrot.slane %v2421, 5
      %v2424 = vor.u32 %v2420, %v2423
      %v2425 = vrot.slane %v2424, 4
      %v2427 = vshll.u32 %v2310, 16
      %v2429 = vrot.slane %v2427, 5
      %v2430 = vsel %vm1404, %v2425, %v2429
      %v2431 = vshrl.u32 %v2310, 16
      %v2433 = vrot.slane %v2431, 4
      %v2434 = vor.u32 %v2433, %v2429
      %v2435 = vrot.slane %v2434, 4
      %v2437 = vshll.u32 %v2311, 16
      %v2439 = vrot.slane %v2437, 5
      %v2440 = vsel %vm1404, %v2435, %v2439
      %v2442 = vshrl.u32 %v2312, 16
      %v2444 = vrot.slane %v2442, 4
      %v2445 = vshll.u32 %v2312, 16
      %v2447 = vrot.slane %v2445, 5
      %v2448 = vor.u32 %v2444, %v2447
      %v2449 = vrot.slane %v2448, 4
      %v2451 = vshll.u32 %v2313, 16
      %v2453 = vrot.slane %v2451, 5
      %v2454 = vsel %vm1404, %v2449, %v2453
      %v2455 = vshrl.u32 %v2313, 16
      %v2457 = vrot.slane %v2455, 4
      %v2458 = vor.u32 %v2457, %v2453
      %v2459 = vrot.slane %v2458, 4
      %v2461 = vshll.u32 %v2314, 16
      %v2463 = vrot.slane %v2461, 5
      %v2464 = vsel %vm1404, %v2459, %v2463
      %v2466 = vshrl.u32 %v2315, 16
      %v2468 = vrot.slane %v2466, 4
      %v2469 = vshll.u32 %v2315, 16
      %v2471 = vrot.slane %v2469, 5
      %v2472 = vor.u32 %v2468, %v2471
      %v2473 = vrot.slane %v2472, 4
      %v2475 = vshll.u32 %v2316, 16
      %v2477 = vrot.slane %v2475, 5
      %v2478 = vsel %vm1404, %v2473, %v2477
      %v2479 = vshrl.u32 %v2316, 16
      %v2481 = vrot.slane %v2479, 4
      %v2482 = vor.u32 %v2481, %v2477
      %v2483 = vrot.slane %v2482, 4
      %v2485 = vshll.u32 %v2317, 16
      %v2487 = vrot.slane %v2485, 5
      %v2488 = vsel %vm1404, %v2483, %v2487
      %v2490 = vshrl.u32 %v2318, 16
      %v2492 = vrot.slane %v2490, 4
      %v2493 = vshll.u32 %v2318, 16
      %v2495 = vrot.slane %v2493, 5
      %v2496 = vor.u32 %v2492, %v2495
      %v2497 = vrot.slane %v2496, 4
      %v2499 = vshll.u32 %v2319, 16
      %v2501 = vrot.slane %v2499, 5
      %v2502 = vsel %vm1404, %v2497, %v2501
      %v2503 = vshrl.u32 %v2319, 16
      %v2505 = vrot.slane %v2503, 4
      %v2506 = vor.u32 %v2505, %v2501
      %v2507 = vrot.slane %v2506, 4
      %v2509 = vshll.u32 %v2320, 16
      %v2511 = vrot.slane %v2509, 5
      %v2512 = vsel %vm1404, %v2507, %v2511
      %v2513 = vld [vmem:[%s7 + $0x140] sm:$0xf]
      %v2514 = vld [vmem:[%s7 + $0x144] sm:$0xf]
      %v2515 = vld [vmem:[%s7 + $0x148] sm:$0xf]
      %v2516 = vld [vmem:[%s7 + $0x14c] sm:$0xf]
      %v2517 = vld [vmem:[%s7 + $0x150] sm:$0xf]
      %v2518 = vld [vmem:[%s7 + $0x154] sm:$0xf]
      %v2519 = vld [vmem:[%s7 + $0x158] sm:$0xf]
      %v2520 = vld [vmem:[%s7 + $0x15c] sm:$0xf]
      %v2521 = vld [vmem:[%s7 + $0x160] sm:$0xf]
      %v2522 = vld [vmem:[%s7 + $0x164] sm:$0xf]
      %v2523 = vld [vmem:[%s7 + $0x168] sm:$0xf]
      %v2524 = vld [vmem:[%s7 + $0x16c] sm:$0xf]
      %v2525 = vld [vmem:[%s7 + $0x170] sm:$0xf]
      %v2526 = vld [vmem:[%s7 + $0x174] sm:$0xf]
      %v2527 = vld [vmem:[%s7 + $0x178] sm:$0xf]
      %v2528 = vld [vmem:[%s7 + $0x17c] sm:$0xf]
      %v2529 = vunpack.c.l.b16 %v2334
      %v2530 = vunpack.c.l.b16 %v2344
      %v2531 = vunpack.c.l.b16 %v2358
      %v2532 = vunpack.c.l.b16 %v2368
      %v2533 = vunpack.c.l.b16 %v2382
      %v2534 = vunpack.c.l.b16 %v2392
      %v2535 = vunpack.c.l.b16 %v2406
      %v2536 = vunpack.c.l.b16 %v2416
      %v2537 = vunpack.c.l.b16 %v2430
      %v2538 = vunpack.c.l.b16 %v2440
      %v2539 = vunpack.c.l.b16 %v2454
      %v2540 = vunpack.c.l.b16 %v2464
      %v2541 = vunpack.c.l.b16 %v2478
      %v2542 = vunpack.c.l.b16 %v2488
      %v2543 = vunpack.c.l.b16 %v2502
      %v2544 = vunpack.c.l.b16 %v2512
      %v2545 = vpack.c.b16 %v2530, %v2529
      %v2546 = vpack.c.b16 %v2532, %v2531
      %v2547 = vpack.c.b16 %v2534, %v2533
      %v2548 = vpack.c.b16 %v2536, %v2535
      %v2549 = vpack.c.b16 %v2538, %v2537
      %v2550 = vpack.c.b16 %v2540, %v2539
      %v2551 = vpack.c.b16 %v2542, %v2541
      %v2552 = vpack.c.b16 %v2544, %v2543
      %v2577 = vunpack.c.l.b16 %v2513
      %v2578 = vunpack.c.l.b16 %v2514
      %v2579 = vunpack.c.l.b16 %v2515
      %v2580 = vunpack.c.l.b16 %v2516
      %v2581 = vunpack.c.l.b16 %v2517
      %v2582 = vunpack.c.l.b16 %v2518
      %v2583 = vunpack.c.l.b16 %v2519
      %v2584 = vunpack.c.l.b16 %v2520
      %v2585 = vunpack.c.l.b16 %v2521
      %v2586 = vunpack.c.l.b16 %v2522
      %v2587 = vunpack.c.l.b16 %v2523
      %v2588 = vunpack.c.l.b16 %v2524
      %v2589 = vunpack.c.l.b16 %v2525
      %v2590 = vunpack.c.l.b16 %v2526
      %v2591 = vunpack.c.l.b16 %v2527
      %v2592 = vunpack.c.l.b16 %v2528
      %v2593 = vpack.c.b16 %v2578, %v2577
      %v2594 = vpack.c.b16 %v2580, %v2579
      %v2595 = vpack.c.b16 %v2582, %v2581
      %v2596 = vpack.c.b16 %v2584, %v2583
      %v2597 = vpack.c.b16 %v2586, %v2585
      %v2598 = vpack.c.b16 %v2588, %v2587
      %v2599 = vpack.c.b16 %v2590, %v2589
      %v2600 = vpack.c.b16 %v2592, %v2591
      %2609 = vmatpush.bf16.msra.mxu0 %v2600
      %2610 = vmatpush.bf16.msra.mxu0 %v2599
      %2611 = vmatpush.bf16.msra.mxu0 %v2598
      %2612 = vmatpush.bf16.msra.mxu0 %v2597
      %2613 = vmatpush.bf16.msra.mxu0 %v2596
      %2614 = vmatpush.bf16.msra.mxu0 %v2595
      %2615 = vmatpush.bf16.msra.mxu0 %v2594
      %2616 = vmatpush.bf16.msra.mxu0 %v2593
      %2617 = vmatmul.bf16.gmra.mxu0 %v2545
      %v2618 = vpop.f32.mrf.mxu0
      %v2619 = vadd.f32 0.0, %v2618
      %v2620 = vpop.f32.mrf.mxu0
      %v2621 = vadd.f32 0.0, %v2620
      %2622 = vmatmul.bf16.gmra.mxu0 %v2546
      %v2623 = vpop.f32.mrf.mxu0
      %v2624 = vadd.f32 0.0, %v2623
      %v2625 = vpop.f32.mrf.mxu0
      %v2626 = vadd.f32 0.0, %v2625
      %2627 = vmatmul.bf16.gmra.mxu0 %v2547
      %v2628 = vpop.f32.mrf.mxu0
      %v2629 = vadd.f32 0.0, %v2628
      %v2630 = vpop.f32.mrf.mxu0
      %v2631 = vadd.f32 0.0, %v2630
      %2632 = vmatmul.bf16.gmra.mxu0 %v2548
      %v2633 = vpop.f32.mrf.mxu0
      %v2634 = vadd.f32 0.0, %v2633
      %v2635 = vpop.f32.mrf.mxu0
      %v2636 = vadd.f32 0.0, %v2635
      %2637 = vmatmul.bf16.gmra.mxu0 %v2549
      %v2638 = vpop.f32.mrf.mxu0
      %v2639 = vadd.f32 0.0, %v2638
      %v2640 = vpop.f32.mrf.mxu0
      %v2641 = vadd.f32 0.0, %v2640
      %2642 = vmatmul.bf16.gmra.mxu0 %v2550
      %v2643 = vpop.f32.mrf.mxu0
      %v2644 = vadd.f32 0.0, %v2643
      %v2645 = vpop.f32.mrf.mxu0
      %v2646 = vadd.f32 0.0, %v2645
      %2647 = vmatmul.bf16.gmra.mxu0 %v2551
      %v2648 = vpop.f32.mrf.mxu0
      %v2649 = vadd.f32 0.0, %v2648
      %v2650 = vpop.f32.mrf.mxu0
      %v2651 = vadd.f32 0.0, %v2650
      %2652 = vmatmul.bf16.gmra.mxu0 %v2552
      %v2653 = vpop.f32.mrf.mxu0
      %v2654 = vadd.f32 0.0, %v2653
      %v2655 = vpop.f32.mrf.mxu0
      %v2656 = vadd.f32 0.0, %v2655
      %2657 = vdwg.mxu0
      %v2658 = vadd.f32 %v2281, %v2619
      %v2659 = vadd.f32 %v2282, %v2621
      %v2660 = vadd.f32 %v2283, %v2624
      %v2661 = vadd.f32 %v2284, %v2626
      %v2662 = vadd.f32 %v2285, %v2629
      %v2663 = vadd.f32 %v2286, %v2631
      %v2664 = vadd.f32 %v2287, %v2634
      %v2665 = vadd.f32 %v2288, %v2636
      %v2666 = vadd.f32 %v2289, %v2639
      %v2667 = vadd.f32 %v2290, %v2641
      %v2668 = vadd.f32 %v2291, %v2644
      %v2669 = vadd.f32 %v2292, %v2646
      %v2670 = vadd.f32 %v2293, %v2649
      %v2671 = vadd.f32 %v2294, %v2651
      %v2672 = vadd.f32 %v2295, %v2654
      %v2673 = vadd.f32 %v2296, %v2656
      %s2674 = scalar_lea.vmem [#allocation2], 48
      %v2675 = vld [vmem:[%s2674 + $0x4] sm:$0x8]
      %v2676 = vld [vmem:[%s2674 + $0x8] sm:$0xf]
      %v2677 = vld [vmem:[%s2674 + $0xc] sm:$0xf]
      %v2678 = vld [vmem:[%s2674 + $0x1c] sm:$0x8]
      %v2679 = vld [vmem:[%s2674 + $0x20] sm:$0xf]
      %v2680 = vld [vmem:[%s2674 + $0x24] sm:$0xf]
      %v2681 = vld [vmem:[%s2674 + $0x34] sm:$0x8]
      %v2682 = vld [vmem:[%s2674 + $0x38] sm:$0xf]
      %v2683 = vld [vmem:[%s2674 + $0x3c] sm:$0xf]
      %v2684 = vld [vmem:[%s2674 + $0x4c] sm:$0x8]
      %v2685 = vld [vmem:[%s2674 + $0x50] sm:$0xf]
      %v2686 = vld [vmem:[%s2674 + $0x54] sm:$0xf]
      %v2687 = vld [vmem:[%s2674 + $0x64] sm:$0x8]
      %v2688 = vld [vmem:[%s2674 + $0x68] sm:$0xf]
      %v2689 = vld [vmem:[%s2674 + $0x6c] sm:$0xf]
      %v2690 = vld [vmem:[%s2674 + $0x7c] sm:$0x8]
      %v2691 = vld [vmem:[%s2674 + $0x80] sm:$0xf]
      %v2692 = vld [vmem:[%s2674 + $0x84] sm:$0xf]
      %v2693 = vld [vmem:[%s2674 + $0x94] sm:$0x8]
      %v2694 = vld [vmem:[%s2674 + $0x98] sm:$0xf]
      %v2695 = vld [vmem:[%s2674 + $0x9c] sm:$0xf]
      %v2696 = vld [vmem:[%s2674 + $0xac] sm:$0x8]
      %v2697 = vld [vmem:[%s2674 + $0xb0] sm:$0xf]
      %v2698 = vld [vmem:[%s2674 + $0xb4] sm:$0xf]
      %v2700 = vshrl.u32 %v2675, 16
      %v2702 = vrot.slane %v2700, 7
      %v2703 = vrot.slane %v2702, 4
      %v2705 = vshrl.u32 %v2676, 16
      %v2707 = vrot.slane %v2705, 7
      %v2708 = vshll.u32 %v2676, 16
      %v2710 = vor.u32 %v2707, %v2708
      %v2711 = vsel %vm895, %v2703, %v2710
      %v2712 = vrot.slane %v2707, 4
      %v2714 = vshrl.u32 %v2677, 16
      %v2716 = vrot.slane %v2714, 7
      %v2717 = vshll.u32 %v2677, 16
      %v2719 = vor.u32 %v2716, %v2717
      %v2720 = vsel %vm895, %v2712, %v2719
      %v2722 = vshrl.u32 %v2678, 16
      %v2724 = vrot.slane %v2722, 7
      %v2725 = vrot.slane %v2724, 4
      %v2727 = vshrl.u32 %v2679, 16
      %v2729 = vrot.slane %v2727, 7
      %v2730 = vshll.u32 %v2679, 16
      %v2732 = vor.u32 %v2729, %v2730
      %v2733 = vsel %vm895, %v2725, %v2732
      %v2734 = vrot.slane %v2729, 4
      %v2736 = vshrl.u32 %v2680, 16
      %v2738 = vrot.slane %v2736, 7
      %v2739 = vshll.u32 %v2680, 16
      %v2741 = vor.u32 %v2738, %v2739
      %v2742 = vsel %vm895, %v2734, %v2741
      %v2744 = vshrl.u32 %v2681, 16
      %v2746 = vrot.slane %v2744, 7
      %v2747 = vrot.slane %v2746, 4
      %v2749 = vshrl.u32 %v2682, 16
      %v2751 = vrot.slane %v2749, 7
      %v2752 = vshll.u32 %v2682, 16
      %v2754 = vor.u32 %v2751, %v2752
      %v2755 = vsel %vm895, %v2747, %v2754
      %v2756 = vrot.slane %v2751, 4
      %v2758 = vshrl.u32 %v2683, 16
      %v2760 = vrot.slane %v2758, 7
      %v2761 = vshll.u32 %v2683, 16
      %v2763 = vor.u32 %v2760, %v2761
      %v2764 = vsel %vm895, %v2756, %v2763
      %v2766 = vshrl.u32 %v2684, 16
      %v2768 = vrot.slane %v2766, 7
      %v2769 = vrot.slane %v2768, 4
      %v2771 = vshrl.u32 %v2685, 16
      %v2773 = vrot.slane %v2771, 7
      %v2774 = vshll.u32 %v2685, 16
      %v2776 = vor.u32 %v2773, %v2774
      %v2777 = vsel %vm895, %v2769, %v2776
      %v2778 = vrot.slane %v2773, 4
      %v2780 = vshrl.u32 %v2686, 16
      %v2782 = vrot.slane %v2780, 7
      %v2783 = vshll.u32 %v2686, 16
      %v2785 = vor.u32 %v2782, %v2783
      %v2786 = vsel %vm895, %v2778, %v2785
      %v2788 = vshrl.u32 %v2687, 16
      %v2790 = vrot.slane %v2788, 7
      %v2791 = vrot.slane %v2790, 4
      %v2793 = vshrl.u32 %v2688, 16
      %v2795 = vrot.slane %v2793, 7
      %v2796 = vshll.u32 %v2688, 16
      %v2798 = vor.u32 %v2795, %v2796
      %v2799 = vsel %vm895, %v2791, %v2798
      %v2800 = vrot.slane %v2795, 4
      %v2802 = vshrl.u32 %v2689, 16
      %v2804 = vrot.slane %v2802, 7
      %v2805 = vshll.u32 %v2689, 16
      %v2807 = vor.u32 %v2804, %v2805
      %v2808 = vsel %vm895, %v2800, %v2807
      %v2810 = vshrl.u32 %v2690, 16
      %v2812 = vrot.slane %v2810, 7
      %v2813 = vrot.slane %v2812, 4
      %v2815 = vshrl.u32 %v2691, 16
      %v2817 = vrot.slane %v2815, 7
      %v2818 = vshll.u32 %v2691, 16
      %v2820 = vor.u32 %v2817, %v2818
      %v2821 = vsel %vm895, %v2813, %v2820
      %v2822 = vrot.slane %v2817, 4
      %v2824 = vshrl.u32 %v2692, 16
      %v2826 = vrot.slane %v2824, 7
      %v2827 = vshll.u32 %v2692, 16
      %v2829 = vor.u32 %v2826, %v2827
      %v2830 = vsel %vm895, %v2822, %v2829
      %v2832 = vshrl.u32 %v2693, 16
      %v2834 = vrot.slane %v2832, 7
      %v2835 = vrot.slane %v2834, 4
      %v2837 = vshrl.u32 %v2694, 16
      %v2839 = vrot.slane %v2837, 7
      %v2840 = vshll.u32 %v2694, 16
      %v2842 = vor.u32 %v2839, %v2840
      %v2843 = vsel %vm895, %v2835, %v2842
      %v2844 = vrot.slane %v2839, 4
      %v2846 = vshrl.u32 %v2695, 16
      %v2848 = vrot.slane %v2846, 7
      %v2849 = vshll.u32 %v2695, 16
      %v2851 = vor.u32 %v2848, %v2849
      %v2852 = vsel %vm895, %v2844, %v2851
      %v2854 = vshrl.u32 %v2696, 16
      %v2856 = vrot.slane %v2854, 7
      %v2857 = vrot.slane %v2856, 4
      %v2859 = vshrl.u32 %v2697, 16
      %v2861 = vrot.slane %v2859, 7
      %v2862 = vshll.u32 %v2697, 16
      %v2864 = vor.u32 %v2861, %v2862
      %v2865 = vsel %vm895, %v2857, %v2864
      %v2866 = vrot.slane %v2861, 4
      %v2868 = vshrl.u32 %v2698, 16
      %v2870 = vrot.slane %v2868, 7
      %v2871 = vshll.u32 %v2698, 16
      %v2873 = vor.u32 %v2870, %v2871
      %v2874 = vsel %vm895, %v2866, %v2873
      %v2875 = vld [vmem:[%s7 + $0x180] sm:$0xf]
      %v2876 = vld [vmem:[%s7 + $0x184] sm:$0xf]
      %v2877 = vld [vmem:[%s7 + $0x188] sm:$0xf]
      %v2878 = vld [vmem:[%s7 + $0x18c] sm:$0xf]
      %v2879 = vld [vmem:[%s7 + $0x190] sm:$0xf]
      %v2880 = vld [vmem:[%s7 + $0x194] sm:$0xf]
      %v2881 = vld [vmem:[%s7 + $0x198] sm:$0xf]
      %v2882 = vld [vmem:[%s7 + $0x19c] sm:$0xf]
      %v2883 = vld [vmem:[%s7 + $0x1a0] sm:$0xf]
      %v2884 = vld [vmem:[%s7 + $0x1a4] sm:$0xf]
      %v2885 = vld [vmem:[%s7 + $0x1a8] sm:$0xf]
      %v2886 = vld [vmem:[%s7 + $0x1ac] sm:$0xf]
      %v2887 = vld [vmem:[%s7 + $0x1b0] sm:$0xf]
      %v2888 = vld [vmem:[%s7 + $0x1b4] sm:$0xf]
      %v2889 = vld [vmem:[%s7 + $0x1b8] sm:$0xf]
      %v2890 = vld [vmem:[%s7 + $0x1bc] sm:$0xf]
      %v2891 = vunpack.c.l.b16 %v2711
      %v2892 = vunpack.c.l.b16 %v2720
      %v2893 = vunpack.c.l.b16 %v2733
      %v2894 = vunpack.c.l.b16 %v2742
      %v2895 = vunpack.c.l.b16 %v2755
      %v2896 = vunpack.c.l.b16 %v2764
      %v2897 = vunpack.c.l.b16 %v2777
      %v2898 = vunpack.c.l.b16 %v2786
      %v2899 = vunpack.c.l.b16 %v2799
      %v2900 = vunpack.c.l.b16 %v2808
      %v2901 = vunpack.c.l.b16 %v2821
      %v2902 = vunpack.c.l.b16 %v2830
      %v2903 = vunpack.c.l.b16 %v2843
      %v2904 = vunpack.c.l.b16 %v2852
      %v2905 = vunpack.c.l.b16 %v2865
      %v2906 = vunpack.c.l.b16 %v2874
      %v2907 = vpack.c.b16 %v2892, %v2891
      %v2908 = vpack.c.b16 %v2894, %v2893
      %v2909 = vpack.c.b16 %v2896, %v2895
      %v2910 = vpack.c.b16 %v2898, %v2897
      %v2911 = vpack.c.b16 %v2900, %v2899
      %v2912 = vpack.c.b16 %v2902, %v2901
      %v2913 = vpack.c.b16 %v2904, %v2903
      %v2914 = vpack.c.b16 %v2906, %v2905
      %v2939 = vunpack.c.l.b16 %v2875
      %v2940 = vunpack.c.l.b16 %v2876
      %v2941 = vunpack.c.l.b16 %v2877
      %v2942 = vunpack.c.l.b16 %v2878
      %v2943 = vunpack.c.l.b16 %v2879
      %v2944 = vunpack.c.l.b16 %v2880
      %v2945 = vunpack.c.l.b16 %v2881
      %v2946 = vunpack.c.l.b16 %v2882
      %v2947 = vunpack.c.l.b16 %v2883
      %v2948 = vunpack.c.l.b16 %v2884
      %v2949 = vunpack.c.l.b16 %v2885
      %v2950 = vunpack.c.l.b16 %v2886
      %v2951 = vunpack.c.l.b16 %v2887
      %v2952 = vunpack.c.l.b16 %v2888
      %v2953 = vunpack.c.l.b16 %v2889
      %v2954 = vunpack.c.l.b16 %v2890
      %v2955 = vpack.c.b16 %v2940, %v2939
      %v2956 = vpack.c.b16 %v2942, %v2941
      %v2957 = vpack.c.b16 %v2944, %v2943
      %v2958 = vpack.c.b16 %v2946, %v2945
      %v2959 = vpack.c.b16 %v2948, %v2947
      %v2960 = vpack.c.b16 %v2950, %v2949
      %v2961 = vpack.c.b16 %v2952, %v2951
      %v2962 = vpack.c.b16 %v2954, %v2953
      %2971 = vmatpush.bf16.msra.mxu0 %v2962
      %2972 = vmatpush.bf16.msra.mxu0 %v2961
      %2973 = vmatpush.bf16.msra.mxu0 %v2960
      %2974 = vmatpush.bf16.msra.mxu0 %v2959
      %2975 = vmatpush.bf16.msra.mxu0 %v2958
      %2976 = vmatpush.bf16.msra.mxu0 %v2957
      %2977 = vmatpush.bf16.msra.mxu0 %v2956
      %2978 = vmatpush.bf16.msra.mxu0 %v2955
      %2979 = vmatmul.bf16.gmra.mxu0 %v2907
      %v2980 = vpop.f32.mrf.mxu0
      %v2981 = vadd.f32 0.0, %v2980
      %v2982 = vpop.f32.mrf.mxu0
      %v2983 = vadd.f32 0.0, %v2982
      %2984 = vmatmul.bf16.gmra.mxu0 %v2908
      %v2985 = vpop.f32.mrf.mxu0
      %v2986 = vadd.f32 0.0, %v2985
      %v2987 = vpop.f32.mrf.mxu0
      %v2988 = vadd.f32 0.0, %v2987
      %2989 = vmatmul.bf16.gmra.mxu0 %v2909
      %v2990 = vpop.f32.mrf.mxu0
      %v2991 = vadd.f32 0.0, %v2990
      %v2992 = vpop.f32.mrf.mxu0
      %v2993 = vadd.f32 0.0, %v2992
      %2994 = vmatmul.bf16.gmra.mxu0 %v2910
      %v2995 = vpop.f32.mrf.mxu0
      %v2996 = vadd.f32 0.0, %v2995
      %v2997 = vpop.f32.mrf.mxu0
      %v2998 = vadd.f32 0.0, %v2997
      %2999 = vmatmul.bf16.gmra.mxu0 %v2911
      %v3000 = vpop.f32.mrf.mxu0
      %v3001 = vadd.f32 0.0, %v3000
      %v3002 = vpop.f32.mrf.mxu0
      %v3003 = vadd.f32 0.0, %v3002
      %3004 = vmatmul.bf16.gmra.mxu0 %v2912
      %v3005 = vpop.f32.mrf.mxu0
      %v3006 = vadd.f32 0.0, %v3005
      %v3007 = vpop.f32.mrf.mxu0
      %v3008 = vadd.f32 0.0, %v3007
      %3009 = vmatmul.bf16.gmra.mxu0 %v2913
      %v3010 = vpop.f32.mrf.mxu0
      %v3011 = vadd.f32 0.0, %v3010
      %v3012 = vpop.f32.mrf.mxu0
      %v3013 = vadd.f32 0.0, %v3012
      %3014 = vmatmul.bf16.gmra.mxu0 %v2914
      %v3015 = vpop.f32.mrf.mxu0
      %v3016 = vadd.f32 0.0, %v3015
      %v3017 = vpop.f32.mrf.mxu0
      %v3018 = vadd.f32 0.0, %v3017
      %3019 = vdwg.mxu0
      %v3020 = vadd.f32 %v2658, %v2981
      %v3021 = vadd.f32 %v2659, %v2983
      %v3022 = vadd.f32 %v2660, %v2986
      %v3023 = vadd.f32 %v2661, %v2988
      %v3024 = vadd.f32 %v2662, %v2991
      %v3025 = vadd.f32 %v2663, %v2993
      %v3026 = vadd.f32 %v2664, %v2996
      %v3027 = vadd.f32 %v2665, %v2998
      %v3028 = vadd.f32 %v2666, %v3001
      %v3029 = vadd.f32 %v2667, %v3003
      %v3030 = vadd.f32 %v2668, %v3006
      %v3031 = vadd.f32 %v2669, %v3008
      %v3032 = vadd.f32 %v2670, %v3011
      %v3033 = vadd.f32 %v2671, %v3013
      %v3034 = vadd.f32 %v2672, %v3016
      %v3035 = vadd.f32 %v2673, %v3018
      %v3036 = vld [vmem:[%s7 + $0x1c0] sm:$0xf]
      %v3037 = vld [vmem:[%s7 + $0x1c4] sm:$0xf]
      %v3038 = vld [vmem:[%s7 + $0x1c8] sm:$0xf]
      %v3039 = vld [vmem:[%s7 + $0x1cc] sm:$0xf]
      %v3040 = vld [vmem:[%s7 + $0x1d0] sm:$0xf]
      %v3041 = vld [vmem:[%s7 + $0x1d4] sm:$0xf]
      %v3042 = vld [vmem:[%s7 + $0x1d8] sm:$0xf]
      %v3043 = vld [vmem:[%s7 + $0x1dc] sm:$0xf]
      %v3044 = vld [vmem:[%s7 + $0x1e0] sm:$0xf]
      %v3045 = vld [vmem:[%s7 + $0x1e4] sm:$0xf]
      %v3046 = vld [vmem:[%s7 + $0x1e8] sm:$0xf]
      %v3047 = vld [vmem:[%s7 + $0x1ec] sm:$0xf]
      %v3048 = vld [vmem:[%s7 + $0x1f0] sm:$0xf]
      %v3049 = vld [vmem:[%s7 + $0x1f4] sm:$0xf]
      %v3050 = vld [vmem:[%s7 + $0x1f8] sm:$0xf]
      %v3051 = vld [vmem:[%s7 + $0x1fc] sm:$0xf]
      %v3068 = vunpack.c.l.b16 %v2676
      %v3069 = vunpack.c.l.b16 %v2677
      %v3070 = vunpack.c.l.b16 %v2679
      %v3071 = vunpack.c.l.b16 %v2680
      %v3072 = vunpack.c.l.b16 %v2682
      %v3073 = vunpack.c.l.b16 %v2683
      %v3074 = vunpack.c.l.b16 %v2685
      %v3075 = vunpack.c.l.b16 %v2686
      %v3076 = vunpack.c.l.b16 %v2688
      %v3077 = vunpack.c.l.b16 %v2689
      %v3078 = vunpack.c.l.b16 %v2691
      %v3079 = vunpack.c.l.b16 %v2692
      %v3080 = vunpack.c.l.b16 %v2694
      %v3081 = vunpack.c.l.b16 %v2695
      %v3082 = vunpack.c.l.b16 %v2697
      %v3083 = vunpack.c.l.b16 %v2698
      %v3084 = vpack.c.b16 %v3069, %v3068
      %v3085 = vpack.c.b16 %v3071, %v3070
      %v3086 = vpack.c.b16 %v3073, %v3072
      %v3087 = vpack.c.b16 %v3075, %v3074
      %v3088 = vpack.c.b16 %v3077, %v3076
      %v3089 = vpack.c.b16 %v3079, %v3078
      %v3090 = vpack.c.b16 %v3081, %v3080
      %v3091 = vpack.c.b16 %v3083, %v3082
      %v3116 = vunpack.c.l.b16 %v3036
      %v3117 = vunpack.c.l.b16 %v3037
      %v3118 = vunpack.c.l.b16 %v3038
      %v3119 = vunpack.c.l.b16 %v3039
      %v3120 = vunpack.c.l.b16 %v3040
      %v3121 = vunpack.c.l.b16 %v3041
      %v3122 = vunpack.c.l.b16 %v3042
      %v3123 = vunpack.c.l.b16 %v3043
      %v3124 = vunpack.c.l.b16 %v3044
      %v3125 = vunpack.c.l.b16 %v3045
      %v3126 = vunpack.c.l.b16 %v3046
      %v3127 = vunpack.c.l.b16 %v3047
      %v3128 = vunpack.c.l.b16 %v3048
      %v3129 = vunpack.c.l.b16 %v3049
      %v3130 = vunpack.c.l.b16 %v3050
      %v3131 = vunpack.c.l.b16 %v3051
      %v3132 = vpack.c.b16 %v3117, %v3116
      %v3133 = vpack.c.b16 %v3119, %v3118
      %v3134 = vpack.c.b16 %v3121, %v3120
      %v3135 = vpack.c.b16 %v3123, %v3122
      %v3136 = vpack.c.b16 %v3125, %v3124
      %v3137 = vpack.c.b16 %v3127, %v3126
      %v3138 = vpack.c.b16 %v3129, %v3128
      %v3139 = vpack.c.b16 %v3131, %v3130
      %3148 = vmatpush.bf16.msra.mxu0 %v3139
      %3149 = vmatpush.bf16.msra.mxu0 %v3138
      %3150 = vmatpush.bf16.msra.mxu0 %v3137
      %3151 = vmatpush.bf16.msra.mxu0 %v3136
      %3152 = vmatpush.bf16.msra.mxu0 %v3135
      %3153 = vmatpush.bf16.msra.mxu0 %v3134
      %3154 = vmatpush.bf16.msra.mxu0 %v3133
      %3155 = vmatpush.bf16.msra.mxu0 %v3132
      %3156 = vmatmul.bf16.gmra.mxu0 %v3084
      %v3157 = vpop.f32.mrf.mxu0
      %v3158 = vadd.f32 0.0, %v3157
      %v3159 = vpop.f32.mrf.mxu0
      %v3160 = vadd.f32 0.0, %v3159
      %3161 = vmatmul.bf16.gmra.mxu0 %v3085
      %v3162 = vpop.f32.mrf.mxu0
      %v3163 = vadd.f32 0.0, %v3162
      %v3164 = vpop.f32.mrf.mxu0
      %v3165 = vadd.f32 0.0, %v3164
      %3166 = vmatmul.bf16.gmra.mxu0 %v3086
      %v3167 = vpop.f32.mrf.mxu0
      %v3168 = vadd.f32 0.0, %v3167
      %v3169 = vpop.f32.mrf.mxu0
      %v3170 = vadd.f32 0.0, %v3169
      %3171 = vmatmul.bf16.gmra.mxu0 %v3087
      %v3172 = vpop.f32.mrf.mxu0
      %v3173 = vadd.f32 0.0, %v3172
      %v3174 = vpop.f32.mrf.mxu0
      %v3175 = vadd.f32 0.0, %v3174
      %3176 = vmatmul.bf16.gmra.mxu0 %v3088
      %v3177 = vpop.f32.mrf.mxu0
      %v3178 = vadd.f32 0.0, %v3177
      %v3179 = vpop.f32.mrf.mxu0
      %v3180 = vadd.f32 0.0, %v3179
      %3181 = vmatmul.bf16.gmra.mxu0 %v3089
      %v3182 = vpop.f32.mrf.mxu0
      %v3183 = vadd.f32 0.0, %v3182
      %v3184 = vpop.f32.mrf.mxu0
      %v3185 = vadd.f32 0.0, %v3184
      %3186 = vmatmul.bf16.gmra.mxu0 %v3090
      %v3187 = vpop.f32.mrf.mxu0
      %v3188 = vadd.f32 0.0, %v3187
      %v3189 = vpop.f32.mrf.mxu0
      %v3190 = vadd.f32 0.0, %v3189
      %3191 = vmatmul.bf16.gmra.mxu0 %v3091
      %v3192 = vpop.f32.mrf.mxu0
      %v3193 = vadd.f32 0.0, %v3192
      %v3194 = vpop.f32.mrf.mxu0
      %v3195 = vadd.f32 0.0, %v3194
      %3196 = vdwg.mxu0
      %v3197 = vadd.f32 %v3020, %v3158
      %v3198 = vadd.f32 %v3021, %v3160
      %v3199 = vadd.f32 %v3022, %v3163
      %v3200 = vadd.f32 %v3023, %v3165
      %v3201 = vadd.f32 %v3024, %v3168
      %v3202 = vadd.f32 %v3025, %v3170
      %v3203 = vadd.f32 %v3026, %v3173
      %v3204 = vadd.f32 %v3027, %v3175
      %v3205 = vadd.f32 %v3028, %v3178
      %v3206 = vadd.f32 %v3029, %v3180
      %v3207 = vadd.f32 %v3030, %v3183
      %v3208 = vadd.f32 %v3031, %v3185
      %v3209 = vadd.f32 %v3032, %v3188
      %v3210 = vadd.f32 %v3033, %v3190
      %v3211 = vadd.f32 %v3034, %v3193
      %v3212 = vadd.f32 %v3035, %v3195
      %v3213 = vld [vmem:[%s2674 + $0x8] sm:$0xf]
      %v3214 = vld [vmem:[%s2674 + $0xc] sm:$0xf]
      %v3215 = vld [vmem:[%s2674 + $0x10] sm:$0x1]
      %v3216 = vld [vmem:[%s2674 + $0x20] sm:$0xf]
      %v3217 = vld [vmem:[%s2674 + $0x24] sm:$0xf]
      %v3218 = vld [vmem:[%s2674 + $0x28] sm:$0x1]
      %v3219 = vld [vmem:[%s2674 + $0x38] sm:$0xf]
      %v3220 = vld [vmem:[%s2674 + $0x3c] sm:$0xf]
      %v3221 = vld [vmem:[%s2674 + $0x40] sm:$0x1]
      %v3222 = vld [vmem:[%s2674 + $0x50] sm:$0xf]
      %v3223 = vld [vmem:[%s2674 + $0x54] sm:$0xf]
      %v3224 = vld [vmem:[%s2674 + $0x58] sm:$0x1]
      %v3225 = vld [vmem:[%s2674 + $0x68] sm:$0xf]
      %v3226 = vld [vmem:[%s2674 + $0x6c] sm:$0xf]
      %v3227 = vld [vmem:[%s2674 + $0x70] sm:$0x1]
      %v3228 = vld [vmem:[%s2674 + $0x80] sm:$0xf]
      %v3229 = vld [vmem:[%s2674 + $0x84] sm:$0xf]
      %v3230 = vld [vmem:[%s2674 + $0x88] sm:$0x1]
      %v3231 = vld [vmem:[%s2674 + $0x98] sm:$0xf]
      %v3232 = vld [vmem:[%s2674 + $0x9c] sm:$0xf]
      %v3233 = vld [vmem:[%s2674 + $0xa0] sm:$0x1]
      %v3234 = vld [vmem:[%s2674 + $0xb0] sm:$0xf]
      %v3235 = vld [vmem:[%s2674 + $0xb4] sm:$0xf]
      %v3236 = vld [vmem:[%s2674 + $0xb8] sm:$0x1]
      %v3238 = vshrl.u32 %v3213, 16
      %v3240 = vrot.slane %v3238, 4
      %v3241 = vshll.u32 %v3213, 16
      %v3243 = vrot.slane %v3241, 5
      %v3244 = vor.u32 %v3240, %v3243
      %v3245 = vrot.slane %v3244, 4
      %v3247 = vshll.u32 %v3214, 16
      %v3249 = vrot.slane %v3247, 5
      %v3250 = vsel %vm1404, %v3245, %v3249
      %v3251 = vshrl.u32 %v3214, 16
      %v3253 = vrot.slane %v3251, 4
      %v3254 = vor.u32 %v3253, %v3249
      %v3255 = vrot.slane %v3254, 4
      %v3257 = vshll.u32 %v3215, 16
      %v3259 = vrot.slane %v3257, 5
      %v3260 = vsel %vm1404, %v3255, %v3259
      %v3262 = vshrl.u32 %v3216, 16
      %v3264 = vrot.slane %v3262, 4
      %v3265 = vshll.u32 %v3216, 16
      %v3267 = vrot.slane %v3265, 5
      %v3268 = vor.u32 %v3264, %v3267
      %v3269 = vrot.slane %v3268, 4
      %v3271 = vshll.u32 %v3217, 16
      %v3273 = vrot.slane %v3271, 5
      %v3274 = vsel %vm1404, %v3269, %v3273
      %v3275 = vshrl.u32 %v3217, 16
      %v3277 = vrot.slane %v3275, 4
      %v3278 = vor.u32 %v3277, %v3273
      %v3279 = vrot.slane %v3278, 4
      %v3281 = vshll.u32 %v3218, 16
      %v3283 = vrot.slane %v3281, 5
      %v3284 = vsel %vm1404, %v3279, %v3283
      %v3286 = vshrl.u32 %v3219, 16
      %v3288 = vrot.slane %v3286, 4
      %v3289 = vshll.u32 %v3219, 16
      %v3291 = vrot.slane %v3289, 5
      %v3292 = vor.u32 %v3288, %v3291
      %v3293 = vrot.slane %v3292, 4
      %v3295 = vshll.u32 %v3220, 16
      %v3297 = vrot.slane %v3295, 5
      %v3298 = vsel %vm1404, %v3293, %v3297
      %v3299 = vshrl.u32 %v3220, 16
      %v3301 = vrot.slane %v3299, 4
      %v3302 = vor.u32 %v3301, %v3297
      %v3303 = vrot.slane %v3302, 4
      %v3305 = vshll.u32 %v3221, 16
      %v3307 = vrot.slane %v3305, 5
      %v3308 = vsel %vm1404, %v3303, %v3307
      %v3310 = vshrl.u32 %v3222, 16
      %v3312 = vrot.slane %v3310, 4
      %v3313 = vshll.u32 %v3222, 16
      %v3315 = vrot.slane %v3313, 5
      %v3316 = vor.u32 %v3312, %v3315
      %v3317 = vrot.slane %v3316, 4
      %v3319 = vshll.u32 %v3223, 16
      %v3321 = vrot.slane %v3319, 5
      %v3322 = vsel %vm1404, %v3317, %v3321
      %v3323 = vshrl.u32 %v3223, 16
      %v3325 = vrot.slane %v3323, 4
      %v3326 = vor.u32 %v3325, %v3321
      %v3327 = vrot.slane %v3326, 4
      %v3329 = vshll.u32 %v3224, 16
      %v3331 = vrot.slane %v3329, 5
      %v3332 = vsel %vm1404, %v3327, %v3331
      %v3334 = vshrl.u32 %v3225, 16
      %v3336 = vrot.slane %v3334, 4
      %v3337 = vshll.u32 %v3225, 16
      %v3339 = vrot.slane %v3337, 5
      %v3340 = vor.u32 %v3336, %v3339
      %v3341 = vrot.slane %v3340, 4
      %v3343 = vshll.u32 %v3226, 16
      %v3345 = vrot.slane %v3343, 5
      %v3346 = vsel %vm1404, %v3341, %v3345
      %v3347 = vshrl.u32 %v3226, 16
      %v3349 = vrot.slane %v3347, 4
      %v3350 = vor.u32 %v3349, %v3345
      %v3351 = vrot.slane %v3350, 4
      %v3353 = vshll.u32 %v3227, 16
      %v3355 = vrot.slane %v3353, 5
      %v3356 = vsel %vm1404, %v3351, %v3355
      %v3358 = vshrl.u32 %v3228, 16
      %v3360 = vrot.slane %v3358, 4
      %v3361 = vshll.u32 %v3228, 16
      %v3363 = vrot.slane %v3361, 5
      %v3364 = vor.u32 %v3360, %v3363
      %v3365 = vrot.slane %v3364, 4
      %v3367 = vshll.u32 %v3229, 16
      %v3369 = vrot.slane %v3367, 5
      %v3370 = vsel %vm1404, %v3365, %v3369
      %v3371 = vshrl.u32 %v3229, 16
      %v3373 = vrot.slane %v3371, 4
      %v3374 = vor.u32 %v3373, %v3369
      %v3375 = vrot.slane %v3374, 4
      %v3377 = vshll.u32 %v3230, 16
      %v3379 = vrot.slane %v3377, 5
      %v3380 = vsel %vm1404, %v3375, %v3379
      %v3382 = vshrl.u32 %v3231, 16
      %v3384 = vrot.slane %v3382, 4
      %v3385 = vshll.u32 %v3231, 16
      %v3387 = vrot.slane %v3385, 5
      %v3388 = vor.u32 %v3384, %v3387
      %v3389 = vrot.slane %v3388, 4
      %v3391 = vshll.u32 %v3232, 16
      %v3393 = vrot.slane %v3391, 5
      %v3394 = vsel %vm1404, %v3389, %v3393
      %v3395 = vshrl.u32 %v3232, 16
      %v3397 = vrot.slane %v3395, 4
      %v3398 = vor.u32 %v3397, %v3393
      %v3399 = vrot.slane %v3398, 4
      %v3401 = vshll.u32 %v3233, 16
      %v3403 = vrot.slane %v3401, 5
      %v3404 = vsel %vm1404, %v3399, %v3403
      %v3406 = vshrl.u32 %v3234, 16
      %v3408 = vrot.slane %v3406, 4
      %v3409 = vshll.u32 %v3234, 16
      %v3411 = vrot.slane %v3409, 5
      %v3412 = vor.u32 %v3408, %v3411
      %v3413 = vrot.slane %v3412, 4
      %v3415 = vshll.u32 %v3235, 16
      %v3417 = vrot.slane %v3415, 5
      %v3418 = vsel %vm1404, %v3413, %v3417
      %v3419 = vshrl.u32 %v3235, 16
      %v3421 = vrot.slane %v3419, 4
      %v3422 = vor.u32 %v3421, %v3417
      %v3423 = vrot.slane %v3422, 4
      %v3425 = vshll.u32 %v3236, 16
      %v3427 = vrot.slane %v3425, 5
      %v3428 = vsel %vm1404, %v3423, %v3427
      %v3429 = vld [vmem:[%s7 + $0x200] sm:$0xf]
      %v3430 = vld [vmem:[%s7 + $0x204] sm:$0xf]
      %v3431 = vld [vmem:[%s7 + $0x208] sm:$0xf]
      %v3432 = vld [vmem:[%s7 + $0x20c] sm:$0xf]
      %v3433 = vld [vmem:[%s7 + $0x210] sm:$0xf]
      %v3434 = vld [vmem:[%s7 + $0x214] sm:$0xf]
      %v3435 = vld [vmem:[%s7 + $0x218] sm:$0xf]
      %v3436 = vld [vmem:[%s7 + $0x21c] sm:$0xf]
      %v3437 = vld [vmem:[%s7 + $0x220] sm:$0xf]
      %v3438 = vld [vmem:[%s7 + $0x224] sm:$0xf]
      %v3439 = vld [vmem:[%s7 + $0x228] sm:$0xf]
      %v3440 = vld [vmem:[%s7 + $0x22c] sm:$0xf]
      %v3441 = vld [vmem:[%s7 + $0x230] sm:$0xf]
      %v3442 = vld [vmem:[%s7 + $0x234] sm:$0xf]
      %v3443 = vld [vmem:[%s7 + $0x238] sm:$0xf]
      %v3444 = vld [vmem:[%s7 + $0x23c] sm:$0xf]
      %v3445 = vunpack.c.l.b16 %v3250
      %v3446 = vunpack.c.l.b16 %v3260
      %v3447 = vunpack.c.l.b16 %v3274
      %v3448 = vunpack.c.l.b16 %v3284
      %v3449 = vunpack.c.l.b16 %v3298
      %v3450 = vunpack.c.l.b16 %v3308
      %v3451 = vunpack.c.l.b16 %v3322
      %v3452 = vunpack.c.l.b16 %v3332
      %v3453 = vunpack.c.l.b16 %v3346
      %v3454 = vunpack.c.l.b16 %v3356
      %v3455 = vunpack.c.l.b16 %v3370
      %v3456 = vunpack.c.l.b16 %v3380
      %v3457 = vunpack.c.l.b16 %v3394
      %v3458 = vunpack.c.l.b16 %v3404
      %v3459 = vunpack.c.l.b16 %v3418
      %v3460 = vunpack.c.l.b16 %v3428
      %v3461 = vpack.c.b16 %v3446, %v3445
      %v3462 = vpack.c.b16 %v3448, %v3447
      %v3463 = vpack.c.b16 %v3450, %v3449
      %v3464 = vpack.c.b16 %v3452, %v3451
      %v3465 = vpack.c.b16 %v3454, %v3453
      %v3466 = vpack.c.b16 %v3456, %v3455
      %v3467 = vpack.c.b16 %v3458, %v3457
      %v3468 = vpack.c.b16 %v3460, %v3459
      %v3493 = vunpack.c.l.b16 %v3429
      %v3494 = vunpack.c.l.b16 %v3430
      %v3495 = vunpack.c.l.b16 %v3431
      %v3496 = vunpack.c.l.b16 %v3432
      %v3497 = vunpack.c.l.b16 %v3433
      %v3498 = vunpack.c.l.b16 %v3434
      %v3499 = vunpack.c.l.b16 %v3435
      %v3500 = vunpack.c.l.b16 %v3436
      %v3501 = vunpack.c.l.b16 %v3437
      %v3502 = vunpack.c.l.b16 %v3438
      %v3503 = vunpack.c.l.b16 %v3439
      %v3504 = vunpack.c.l.b16 %v3440
      %v3505 = vunpack.c.l.b16 %v3441
      %v3506 = vunpack.c.l.b16 %v3442
      %v3507 = vunpack.c.l.b16 %v3443
      %v3508 = vunpack.c.l.b16 %v3444
      %v3509 = vpack.c.b16 %v3494, %v3493
      %v3510 = vpack.c.b16 %v3496, %v3495
      %v3511 = vpack.c.b16 %v3498, %v3497
      %v3512 = vpack.c.b16 %v3500, %v3499
      %v3513 = vpack.c.b16 %v3502, %v3501
      %v3514 = vpack.c.b16 %v3504, %v3503
      %v3515 = vpack.c.b16 %v3506, %v3505
      %v3516 = vpack.c.b16 %v3508, %v3507
      %3525 = vmatpush.bf16.msra.mxu0 %v3516
      %3526 = vmatpush.bf16.msra.mxu0 %v3515
      %3527 = vmatpush.bf16.msra.mxu0 %v3514
      %3528 = vmatpush.bf16.msra.mxu0 %v3513
      %3529 = vmatpush.bf16.msra.mxu0 %v3512
      %3530 = vmatpush.bf16.msra.mxu0 %v3511
      %3531 = vmatpush.bf16.msra.mxu0 %v3510
      %3532 = vmatpush.bf16.msra.mxu0 %v3509
      %3533 = vmatmul.bf16.gmra.mxu0 %v3461
      %v3534 = vpop.f32.mrf.mxu0
      %v3535 = vadd.f32 0.0, %v3534
      %v3536 = vpop.f32.mrf.mxu0
      %v3537 = vadd.f32 0.0, %v3536
      %3538 = vmatmul.bf16.gmra.mxu0 %v3462
      %v3539 = vpop.f32.mrf.mxu0
      %v3540 = vadd.f32 0.0, %v3539
      %v3541 = vpop.f32.mrf.mxu0
      %v3542 = vadd.f32 0.0, %v3541
      %3543 = vmatmul.bf16.gmra.mxu0 %v3463
      %v3544 = vpop.f32.mrf.mxu0
      %v3545 = vadd.f32 0.0, %v3544
      %v3546 = vpop.f32.mrf.mxu0
      %v3547 = vadd.f32 0.0, %v3546
      %3548 = vmatmul.bf16.gmra.mxu0 %v3464
      %v3549 = vpop.f32.mrf.mxu0
      %v3550 = vadd.f32 0.0, %v3549
      %v3551 = vpop.f32.mrf.mxu0
      %v3552 = vadd.f32 0.0, %v3551
      %3553 = vmatmul.bf16.gmra.mxu0 %v3465
      %v3554 = vpop.f32.mrf.mxu0
      %v3555 = vadd.f32 0.0, %v3554
      %v3556 = vpop.f32.mrf.mxu0
      %v3557 = vadd.f32 0.0, %v3556
      %3558 = vmatmul.bf16.gmra.mxu0 %v3466
      %v3559 = vpop.f32.mrf.mxu0
      %v3560 = vadd.f32 0.0, %v3559
      %v3561 = vpop.f32.mrf.mxu0
      %v3562 = vadd.f32 0.0, %v3561
      %3563 = vmatmul.bf16.gmra.mxu0 %v3467
      %v3564 = vpop.f32.mrf.mxu0
      %v3565 = vadd.f32 0.0, %v3564
      %v3566 = vpop.f32.mrf.mxu0
      %v3567 = vadd.f32 0.0, %v3566
      %3568 = vmatmul.bf16.gmra.mxu0 %v3468
      %v3569 = vpop.f32.mrf.mxu0
      %v3570 = vadd.f32 0.0, %v3569
      %v3571 = vpop.f32.mrf.mxu0
      %v3572 = vadd.f32 0.0, %v3571
      %3573 = vdwg.mxu0
      %v3574 = vadd.f32 %v3197, %v3535
      %v3575 = vadd.f32 %v3198, %v3537
      %v3576 = vadd.f32 %v3199, %v3540
      %v3577 = vadd.f32 %v3200, %v3542
      %v3578 = vadd.f32 %v3201, %v3545
      %v3579 = vadd.f32 %v3202, %v3547
      %v3580 = vadd.f32 %v3203, %v3550
      %v3581 = vadd.f32 %v3204, %v3552
      %v3582 = vadd.f32 %v3205, %v3555
      %v3583 = vadd.f32 %v3206, %v3557
      %v3584 = vadd.f32 %v3207, %v3560
      %v3585 = vadd.f32 %v3208, %v3562
      %v3586 = vadd.f32 %v3209, %v3565
      %v3587 = vadd.f32 %v3210, %v3567
      %v3588 = vadd.f32 %v3211, %v3570
      %v3589 = vadd.f32 %v3212, %v3572
      %v3590 = vld [vmem:[%s8] sm:$0x1]
      %v3592 = vperm.slane %v3590, 0
      %v3594 = vadd.f32 %v3574, %v3592
      %v3595 = vadd.f32 %v3575, %v3592
      %v3596 = vadd.f32 %v3576, %v3592
      %v3597 = vadd.f32 %v3577, %v3592
      %v3598 = vadd.f32 %v3578, %v3592
      %v3599 = vadd.f32 %v3579, %v3592
      %v3600 = vadd.f32 %v3580, %v3592
      %v3601 = vadd.f32 %v3581, %v3592
      %v3602 = vadd.f32 %v3582, %v3592
      %v3603 = vadd.f32 %v3583, %v3592
      %v3604 = vadd.f32 %v3584, %v3592
      %v3605 = vadd.f32 %v3585, %v3592
      %v3606 = vadd.f32 %v3586, %v3592
      %v3607 = vadd.f32 %v3587, %v3592
      %v3608 = vadd.f32 %v3588, %v3592
      %v3609 = vadd.f32 %v3589, %v3592
      %v3610 = vmax.f32 %v3594, 0.0
      %v3611 = vmax.f32 %v3595, 0.0
      %v3612 = vmax.f32 %v3596, 0.0
      %v3613 = vmax.f32 %v3597, 0.0
      %v3614 = vmax.f32 %v3598, 0.0
      %v3615 = vmax.f32 %v3599, 0.0
      %v3616 = vmax.f32 %v3600, 0.0
      %v3617 = vmax.f32 %v3601, 0.0
      %v3618 = vmax.f32 %v3602, 0.0
      %v3619 = vmax.f32 %v3603, 0.0
      %v3620 = vmax.f32 %v3604, 0.0
      %v3621 = vmax.f32 %v3605, 0.0
      %v3622 = vmax.f32 %v3606, 0.0
      %v3623 = vmax.f32 %v3607, 0.0
      %v3624 = vmax.f32 %v3608, 0.0
      %v3625 = vmax.f32 %v3609, 0.0
      %v3626 = vpack.c.bf16 %v3611, %v3610
      %v3627 = vpack.c.bf16 %v3613, %v3612
      %v3628 = vpack.c.bf16 %v3615, %v3614
      %v3629 = vpack.c.bf16 %v3617, %v3616
      %v3630 = vpack.c.bf16 %v3619, %v3618
      %v3631 = vpack.c.bf16 %v3621, %v3620
      %v3632 = vpack.c.bf16 %v3623, %v3622
      %v3633 = vpack.c.bf16 %v3625, %v3624
      %v3634 = vld [vmem:[%s9] sm:$0xf]
      %v3635 = vld [vmem:[%s9 + $0x4] sm:$0xf]
      %v3636 = vld [vmem:[%s9 + $0x8] sm:$0xf]
      %v3637 = vld [vmem:[%s9 + $0xc] sm:$0xf]
      %v3638 = vld [vmem:[%s9 + $0x10] sm:$0xf]
      %v3639 = vld [vmem:[%s9 + $0x14] sm:$0xf]
      %v3640 = vld [vmem:[%s9 + $0x18] sm:$0xf]
      %v3641 = vld [vmem:[%s9 + $0x1c] sm:$0xf]
      %v3642 = vld [vmem:[%s9 + $0x20] sm:$0xf]
      %v3643 = vld [vmem:[%s9 + $0x24] sm:$0xf]
      %v3644 = vld [vmem:[%s9 + $0x28] sm:$0xf]
      %v3645 = vld [vmem:[%s9 + $0x2c] sm:$0xf]
      %v3646 = vld [vmem:[%s9 + $0x30] sm:$0xf]
      %v3647 = vld [vmem:[%s9 + $0x34] sm:$0xf]
      %v3648 = vld [vmem:[%s9 + $0x38] sm:$0xf]
      %v3649 = vld [vmem:[%s9 + $0x3c] sm:$0xf]
      %v3650 = vld [vmem:[%s10] sm:$0x1]
      %v3652 = vperm.slane %v3650, 0
      %v3670 = vunpack.c.l.b16 %v3634
      %v3671 = vunpack.c.l.b16 %v3635
      %v3672 = vunpack.c.l.b16 %v3636
      %v3673 = vunpack.c.l.b16 %v3637
      %v3674 = vunpack.c.l.b16 %v3638
      %v3675 = vunpack.c.l.b16 %v3639
      %v3676 = vunpack.c.l.b16 %v3640
      %v3677 = vunpack.c.l.b16 %v3641
      %v3678 = vunpack.c.l.b16 %v3642
      %v3679 = vunpack.c.l.b16 %v3643
      %v3680 = vunpack.c.l.b16 %v3644
      %v3681 = vunpack.c.l.b16 %v3645
      %v3682 = vunpack.c.l.b16 %v3646
      %v3683 = vunpack.c.l.b16 %v3647
      %v3684 = vunpack.c.l.b16 %v3648
      %v3685 = vunpack.c.l.b16 %v3649
      %v3686 = vpack.c.b16 %v3671, %v3670
      %v3687 = vpack.c.b16 %v3673, %v3672
      %v3688 = vpack.c.b16 %v3675, %v3674
      %v3689 = vpack.c.b16 %v3677, %v3676
      %v3690 = vpack.c.b16 %v3679, %v3678
      %v3691 = vpack.c.b16 %v3681, %v3680
      %v3692 = vpack.c.b16 %v3683, %v3682
      %v3693 = vpack.c.b16 %v3685, %v3684
      %3702 = vmatpush.bf16.msra.mxu0 %v3693
      %3703 = vmatpush.bf16.msra.mxu0 %v3692
      %3704 = vmatpush.bf16.msra.mxu0 %v3691
      %3705 = vmatpush.bf16.msra.mxu0 %v3690
      %3706 = vmatpush.bf16.msra.mxu0 %v3689
      %3707 = vmatpush.bf16.msra.mxu0 %v3688
      %3708 = vmatpush.bf16.msra.mxu0 %v3687
      %3709 = vmatpush.bf16.msra.mxu0 %v3686
      %3710 = vmatmul.bf16.gmra.mxu0 %v3626
      %v3711 = vpop.f32.mrf.mxu0
      %v3712 = vadd.f32 %v3652, %v3711
      %v3713 = vpop.f32.mrf.mxu0
      %v3714 = vadd.f32 %v3652, %v3713
      %3715 = vmatmul.bf16.gmra.mxu0 %v3627
      %v3716 = vpop.f32.mrf.mxu0
      %v3717 = vadd.f32 %v3652, %v3716
      %v3718 = vpop.f32.mrf.mxu0
      %v3719 = vadd.f32 %v3652, %v3718
      %3720 = vmatmul.bf16.gmra.mxu0 %v3628
      %v3721 = vpop.f32.mrf.mxu0
      %v3722 = vadd.f32 %v3652, %v3721
      %v3723 = vpop.f32.mrf.mxu0
      %v3724 = vadd.f32 %v3652, %v3723
      %3725 = vmatmul.bf16.gmra.mxu0 %v3629
      %v3726 = vpop.f32.mrf.mxu0
      %v3727 = vadd.f32 %v3652, %v3726
      %v3728 = vpop.f32.mrf.mxu0
      %v3729 = vadd.f32 %v3652, %v3728
      %3730 = vmatmul.bf16.gmra.mxu0 %v3630
      %v3731 = vpop.f32.mrf.mxu0
      %v3732 = vadd.f32 %v3652, %v3731
      %v3733 = vpop.f32.mrf.mxu0
      %v3734 = vadd.f32 %v3652, %v3733
      %3735 = vmatmul.bf16.gmra.mxu0 %v3631
      %v3736 = vpop.f32.mrf.mxu0
      %v3737 = vadd.f32 %v3652, %v3736
      %v3738 = vpop.f32.mrf.mxu0
      %v3739 = vadd.f32 %v3652, %v3738
      %3740 = vmatmul.bf16.gmra.mxu0 %v3632
      %v3741 = vpop.f32.mrf.mxu0
      %v3742 = vadd.f32 %v3652, %v3741
      %v3743 = vpop.f32.mrf.mxu0
      %v3744 = vadd.f32 %v3652, %v3743
      %3745 = vmatmul.bf16.gmra.mxu0 %v3633
      %v3746 = vpop.f32.mrf.mxu0
      %v3747 = vadd.f32 %v3652, %v3746
      %v3748 = vpop.f32.mrf.mxu0
      %v3749 = vadd.f32 %v3652, %v3748
      %3750 = vdwg.mxu0
      %v3751 = vld [vmem:[%s508] sm:$0xff]
      %v3752 = vld [vmem:[%s508 + $0x8] sm:$0xff]
      %v3753 = vld [vmem:[%s508 + $0x10] sm:$0xff]
      %v3754 = vld [vmem:[%s508 + $0x18] sm:$0xff]
      %v3755 = vld [vmem:[%s508 + $0x20] sm:$0xff]
      %v3756 = vld [vmem:[%s508 + $0x28] sm:$0xff]
      %v3757 = vld [vmem:[%s508 + $0x30] sm:$0xff]
      %v3758 = vld [vmem:[%s508 + $0x38] sm:$0xff]
      %v3759 = vld [vmem:[%s508 + $0x40] sm:$0xff]
      %v3760 = vld [vmem:[%s508 + $0x48] sm:$0xff]
      %v3761 = vld [vmem:[%s508 + $0x50] sm:$0xff]
      %v3762 = vld [vmem:[%s508 + $0x58] sm:$0xff]
      %v3763 = vld [vmem:[%s508 + $0x60] sm:$0xff]
      %v3764 = vld [vmem:[%s508 + $0x68] sm:$0xff]
      %v3765 = vld [vmem:[%s508 + $0x70] sm:$0xff]
      %v3766 = vld [vmem:[%s508 + $0x78] sm:$0xff]
      %v3767 = vadd.f32 %v3712, %v3751
      %v3768 = vadd.f32 %v3714, %v3752
      %v3769 = vadd.f32 %v3717, %v3753
      %v3770 = vadd.f32 %v3719, %v3754
      %v3771 = vadd.f32 %v3722, %v3755
      %v3772 = vadd.f32 %v3724, %v3756
      %v3773 = vadd.f32 %v3727, %v3757
      %v3774 = vadd.f32 %v3729, %v3758
      %v3775 = vadd.f32 %v3732, %v3759
      %v3776 = vadd.f32 %v3734, %v3760
      %v3777 = vadd.f32 %v3737, %v3761
      %v3778 = vadd.f32 %v3739, %v3762
      %v3779 = vadd.f32 %v3742, %v3763
      %v3780 = vadd.f32 %v3744, %v3764
      %v3781 = vadd.f32 %v3747, %v3765
      %v3782 = vadd.f32 %v3749, %v3766
      %3783 = vst.msk [vmem:[%s553] sm:$0xff] %vm666, %v3767
      %3784 = vst.msk [vmem:[%s553 + $0x8] sm:$0xff] %vm666, %v3768
      %3785 = vst.msk [vmem:[%s553 + $0x10] sm:$0xff] %vm666, %v3769
      %3786 = vst.msk [vmem:[%s553 + $0x18] sm:$0xff] %vm666, %v3770
      %3787 = vst.msk [vmem:[%s553 + $0x20] sm:$0xff] %vm666, %v3771
      %3788 = vst.msk [vmem:[%s553 + $0x28] sm:$0xff] %vm666, %v3772
      %3789 = vst.msk [vmem:[%s553 + $0x30] sm:$0xff] %vm666, %v3773
      %3790 = vst.msk [vmem:[%s553 + $0x38] sm:$0xff] %vm666, %v3774
      %3791 = vst.msk [vmem:[%s553 + $0x40] sm:$0xff] %vm666, %v3775
      %3792 = vst.msk [vmem:[%s553 + $0x48] sm:$0xff] %vm666, %v3776
      %3793 = vst.msk [vmem:[%s553 + $0x50] sm:$0xff] %vm666, %v3777
      %3794 = vst.msk [vmem:[%s553 + $0x58] sm:$0xff] %vm666, %v3778
      %3795 = vst.msk [vmem:[%s553 + $0x60] sm:$0xff] %vm666, %v3779
      %3796 = vst.msk [vmem:[%s553 + $0x68] sm:$0xff] %vm666, %v3780
      %3797 = vst.msk [vmem:[%s553 + $0x70] sm:$0xff] %vm666, %v3781
      %3798 = vst.msk [vmem:[%s553 + $0x78] sm:$0xff] %vm666, %v3782
      %s3799 = smul.u32 8, %s27
      %p3800 = scmp.lt.s32.totalorder %s26, 1
      %s3801 = scalar_select %p3800, %s26, 1
      %p3802 = scmp.lt.s32.totalorder %s3799, 15
      %s3803 = scalar_select %p3802, %s3799, 15
      %s3804 = smul.addr %s3803, 2
      %s3805 = smul.addr %s3801, 32
      %s3806 = sadd.s32 %s3804, %s3805
      %s3807 = smul.addr %s3806, 8
      %s3808 = scalar_lea.vmem %s11, %s3807
      // Predicated region
      $region73: #{bottleneck_forward.1} parent=63 // pred_check
        %p3809 = pneg %p322
      $region74: #{bottleneck_forward.1} parent=63 // pred_check_branch
        %3811 = sbr.rel (%p3809) target = $region76
      $region75: #{bottleneck_forward.1} parent=63 // pred_region
        %s3812 = smul.u32 8, %s27
      $region76: #{bottleneck_forward.1} parent=63 // pred_fallthru
        _
    $region64: #{bottleneck_forward.1} parent=5 // pred_fallthru
      _
    %p3813 = scmp.le.s32.totalorder 2, %s17
    // Predicated region
    $region77: #{bottleneck_forward.1} parent=5 // pred_check
      %p3814 = pneg %p3813
    $region78: #{bottleneck_forward.1} parent=5 // pred_check_branch
      %3816 = sbr.rel (%p3814) target = $region80
    $region79: #{bottleneck_forward.1} parent=5 // pred_region
      %s3817 = ssub.s32 %s17, 2
      // Predicated region
      $region81: #{bottleneck_forward.1} parent=79 // pred_check
        %p3818 = pneg %p328
      $region82: #{bottleneck_forward.1} parent=79 // pred_check_branch
        %3820 = sbr.rel (%p3818) target = $region84
      $region83: #{bottleneck_forward.1} parent=79 // pred_region
        %s3821 = smul.u32 8, %s29
        %p3822 = scmp.lt.s32.totalorder %s28, 1
        %s3823 = scalar_select %p3822, %s28, 1
        %p3824 = scmp.lt.s32.totalorder %s3821, 15
        %s3825 = scalar_select %p3824, %s3821, 15
        %s3826 = smul.addr %s3825, 2
        %s3827 = smul.addr %s3823, 32
        %s3828 = sadd.s32 %s3826, %s3827
        %s3829 = smul.addr %s3828, 8
        %s3830 = scalar_lea.vmem %s11, %s3829
      $region84: #{bottleneck_forward.1} parent=79 // pred_fallthru
        _
    $region80: #{bottleneck_forward.1} parent=5 // pred_fallthru
      _
  $region6: #{bottleneck_forward.1} parent=0 // loop_footer
    %s21 = sadd.s32 1, %s17
  $region7: #{bottleneck_forward.1} parent=0 // loop_footer_branch
    %16 = sbr.rel target = $region3
  $region8: #{bottleneck_forward.1} parent=0 // loop_exit
    _

</llo_original>
